<compile_context>
chip_gen: v7x
topology: tpu7x:2x2x1
jax: 0.10.0
libtpu: 0.0.40
codegen_flags: <defaults>
</compile_context>

<pallas_src>
import functools
import math

import jax
import jax.numpy as jnp
from jax.experimental import pallas as pl
from jax.experimental.pallas import tpu as pltpu

_EPS = 1e-5
_MASK_NEG = -1e30
_MXU_DTYPE = jnp.bfloat16


def _ln(x, g, b):
    """LayerNorm over the last dim (PyTorch semantics, eps=1e-5), f32 stats."""
    mean = jnp.mean(x, axis=-1, keepdims=True)
    var = jnp.mean((x - mean) ** 2, axis=-1, keepdims=True)
    return (x - mean) * jax.lax.rsqrt(var + _EPS) * g + b


# ------------------- single-buffering feature probe -------------------------

@functools.lru_cache(maxsize=1)
def _single_buffering_supported():
    """Probe whether pipeline_mode=pl.Buffered(1) compiles & runs on this stack."""
    def _probe(x_ref, o_ref):
        o_ref[...] = x_ref[...] + 1.0

    try:
        fn = pl.pallas_call(
            _probe,
            out_shape=jax.ShapeDtypeStruct((8, 128), jnp.float32),
            grid=(1,),
            in_specs=[pl.BlockSpec((8, 128), lambda i: (0, 0),
                                   pipeline_mode=pl.Buffered(1))],
            out_specs=pl.BlockSpec((8, 128), lambda i: (0, 0)),
        )
        jax.block_until_ready(fn(jnp.zeros((8, 128), jnp.float32)))
        return True
    except Exception:       # fall back to default double buffering
        return False


def _const_spec(shape):
    """BlockSpec for a grid-invariant (resident) operand; single-buffer if possible."""
    idx = lambda *_: (0,) * len(shape)
    if _single_buffering_supported():
        return pl.BlockSpec(shape, idx, pipeline_mode=pl.Buffered(1))
    return pl.BlockSpec(shape, idx)


def _vmem_limit(est_bytes):
    """Explicit scoped-VMEM ceiling with headroom (safe on v5e/v6e/v7x)."""
    return int(min(64 << 20, max(32 << 20, 2 * est_bytes + (4 << 20))))


# ---------------------- fused attention block kernel ------------------------

def _attn_block_kernel(*refs, scale, heads, d_k, has_kv, norm_kv):
    """Pre-LN MHA block (fused, residual included) for one (batch, q-tile) step.

    x_ref:   (1, tq, D)  residual stream (query side)
    kv_ref:  (1, Sk, D)  key/value source (only present when has_kv)
    bias:    (1, tq|Sq, Sk) additive mask bias, shared across heads
    wq/wk/wv/wo: (D, D) bf16 full-width projections; bq/bk/bv/bo: (1, D) f32
    """
    if has_kv:
        (x_ref, kv_ref, bias_ref, g_ref, b_ref,
         wq_ref, bq_ref, wk_ref, bk_ref, wv_ref, bv_ref,
         wo_ref, bo_ref, o_ref) = refs
    else:
        (x_ref, bias_ref, g_ref, b_ref,
         wq_ref, bq_ref, wk_ref, bk_ref, wv_ref, bv_ref,
         wo_ref, bo_ref, o_ref) = refs
        kv_ref = None

    x = x_ref[0]                                   # (tq, D) f32
    g = g_ref[...]
    beta = b_ref[...]
    z = _ln(x, g, beta)                            # (tq, D) f32
    if has_kv:
        kv = kv_ref[0]                             # (Sk, D)
        if norm_kv:                                # self-attn with tiled q: LN full x
            kv = _ln(kv, g, beta)
    else:
        kv = z                                     # self-attn: reuse LN output in VMEM

    z16 = z.astype(_MXU_DTYPE)
    kv16 = kv.astype(_MXU_DTYPE)

    # Full-width projections: one N = D matmul each (MXU fully fed).
    q = jnp.dot(z16, wq_ref[...], preferred_element_type=jnp.float32) + bq_ref[...]
    k = jnp.dot(kv16, wk_ref[...], preferred_element_type=jnp.float32) + bk_ref[...]
    v = jnp.dot(kv16, wv_ref[...], preferred_element_type=jnp.float32) + bv_ref[...]
    q16 = q.astype(_MXU_DTYPE)
    k16 = k.astype(_MXU_DTYPE)
    v16 = v.astype(_MXU_DTYPE)

    bias = bias_ref[0]                             # (tq, Sk) f32

    ctx_parts = []
    for h in range(heads):                         # static unroll; heads = lane slices
        sl = slice(h * d_k, (h + 1) * d_k)
        # q @ k^T without materializing a transpose: contract the last dims.
        s = jax.lax.dot_general(q16[:, sl], k16[:, sl],
                                (((1,), (1,)), ((), ())),
                                preferred_element_type=jnp.float32)
        s = s * scale + bias                       # (tq, Sk) f32
        m = jnp.max(s, axis=-1, keepdims=True)     # softmax over the key axis
        p = jnp.exp(s - m)
        p = p / jnp.sum(p, axis=-1, keepdims=True)
        ctx_parts.append(jnp.dot(p.astype(_MXU_DTYPE), v16[:, sl],
                                 preferred_element_type=jnp.float32))

    # Merge heads along lanes, then ONE K = D output projection.
    ctx16 = jnp.concatenate(ctx_parts, axis=-1).astype(_MXU_DTYPE)   # (tq, D)
    out = jnp.dot(ctx16, wo_ref[...], preferred_element_type=jnp.float32)
    o_ref[0] = x + out + bo_ref[...]               # fused residual add


def _attention_block(p, x, kv, bias, ln_g, ln_b, *, heads, self_attn, q_tile=256):
    """x: (B, Sq, D); kv: (B, Sk, D); bias: (1|B, Sq, Sk) -> (B, Sq, D)."""
    B, Sq, D = x.shape
    d_k = D // heads
    scale = 1.0 / math.sqrt(d_k)
    Sk = Sq if self_attn else kv.shape[1]

    tq = Sq if (Sq <= q_tile or Sq % q_tile != 0) else q_tile
    nq = Sq // tq
    # Self-attention with a single q-tile needs no separate KV stream at all.
    has_kv = (not self_attn) or (nq > 1)
    norm_kv = self_attn and has_kv

    Bb = bias.shape[0]
    bias_batched = Bb > 1
    bias_resident = (not bias_batched) and nq == 1

    kern = functools.partial(_attn_block_kernel, scale=scale, heads=heads,
                             d_k=d_k, has_kv=has_kv, norm_kv=norm_kv)

    in_specs = [pl.BlockSpec((1, tq, D), lambda b, qi: (b, qi, 0))]
    args = [x]
    if has_kv:
        in_specs.append(pl.BlockSpec((1, Sk, D), lambda b, qi: (b, 0, 0)))
        args.append(x if self_attn else kv)
    if bias_resident:
        in_specs.append(_const_spec((1, Sq, Sk)))          # held resident in VMEM
    elif bias_batched:
        in_specs.append(pl.BlockSpec((1, tq, Sk), lambda b, qi: (b, qi, 0)))
    else:
        in_specs.append(pl.BlockSpec((1, tq, Sk), lambda b, qi: (0, qi, 0)))
    args.append(bias)

    in_specs += [_const_spec((1, D)), _const_spec((1, D)),
                 _const_spec((D, D)), _const_spec((1, D)),
                 _const_spec((D, D)), _const_spec((1, D)),
                 _const_spec((D, D)), _const_spec((1, D)),
                 _const_spec((D, D)), _const_spec((1, D))]
    args += [ln_g.reshape(1, D), ln_b.reshape(1, D),
             p["wq"], p["bq"], p["wk"], p["bk"], p["wv"], p["bv"],
             p["wo"], p["bo"]]

    # VMEM footprint estimate (bytes): streamed blocks (x/kv/bias), bf16 weights,
    # f32 biases/LN params, and live intermediates (q/k/v, per-head scores, ctx).
    est = 4 * 2 * 2 * tq * D
    if has_kv:
        est += 4 * 2 * Sk * D
    est += 4 * (1 if bias_resident else 2) * tq * Sk
    est += 2 * 4 * D * D + 4 * 10 * D
    est += 4 * (3 * max(tq, Sk) * D + 2 * tq * Sk + 2 * tq * D)

    flops = int(2 * B * D * D * (2 * Sq + 2 * Sk) + 4 * B * Sq * Sk * D)
    transcendentals = int(B * heads * Sq * Sk)
    bytes_accessed = int(4 * (2 * B * Sq * D + (B * Sk * D if has_kv else 0)
                              + Bb * Sq * Sk) + 2 * 4 * D * D + 4 * 10 * D)

    return pl.pallas_call(
        kern,
        out_shape=jax.ShapeDtypeStruct((B, Sq, D), jnp.float32),
        grid=(B, nq),
        in_specs=in_specs,
        out_specs=pl.BlockSpec((1, tq, D), lambda b, qi: (b, qi, 0)),
        compiler_params=pltpu.CompilerParams(
            dimension_semantics=("parallel", "parallel"),
            vmem_limit_bytes=_vmem_limit(est)),
        cost_estimate=pl.CostEstimate(flops=flops, transcendentals=transcendentals,
                                      bytes_accessed=bytes_accessed),
    )(*args)


# --------------------------- fused FFN block kernel --------------------------

def _ffn_block_kernel(x_ref, g_ref, b_ref, w1_ref, b1_ref, w2_ref, b2_ref, o_ref):
    x = x_ref[...]                                   # (tm, D) f32
    z = _ln(x, g_ref[...], b_ref[...]).astype(_MXU_DTYPE)
    h = jnp.dot(z, w1_ref[...], preferred_element_type=jnp.float32) + b1_ref[...]
    h = jnp.maximum(h, 0.0).astype(_MXU_DTYPE)       # (tm, d_ff) never leaves VMEM
    y = jnp.dot(h, w2_ref[...], preferred_element_type=jnp.float32) + b2_ref[...]
    o_ref[...] = x + y                               # fused residual add


def _ffn_block(p, x, ln_g, ln_b, *, row_tile=512):
    B, S, D = x.shape
    M = B * S
    d_ff = p["w1"].shape[1]
    tm = M if (M <= row_tile or M % row_tile != 0) else row_tile
    xf = x.reshape(M, D)

    # TODO(synk): add a d_ff K-tile grid axis (with a VMEM accumulator) when
    # 2*D*d_ff bf16 weights approach the scoped VMEM limit (largest d_ff on v7x).
    est = (4 * 2 * 2 * tm * D + 2 * 2 * D * d_ff + 4 * (d_ff + 3 * D)
           + 4 * tm * d_ff)

    out = pl.pallas_call(
        _ffn_block_kernel,
        out_shape=jax.ShapeDtypeStruct((M, D), jnp.float32),
        grid=(pl.cdiv(M, tm),),
        in_specs=[
            pl.BlockSpec((tm, D), lambda i: (i, 0)),
            _const_spec((1, D)), _const_spec((1, D)),
            _const_spec((D, d_ff)), _const_spec((1, d_ff)),
            _const_spec((d_ff, D)), _const_spec((1, D)),
        ],
        out_specs=pl.BlockSpec((tm, D), lambda i: (i, 0)),
        compiler_params=pltpu.CompilerParams(
            dimension_semantics=("parallel",),
            vmem_limit_bytes=_vmem_limit(est)),
        cost_estimate=pl.CostEstimate(
            flops=int(4 * M * D * d_ff), transcendentals=0,
            bytes_accessed=int(4 * 2 * M * D + 2 * 2 * D * d_ff + 4 * (d_ff + 3 * D))),
    )(xf, ln_g.reshape(1, D), ln_b.reshape(1, D),
      p["w1"], p["b1"], p["w2"], p["b2"])
    return out.reshape(B, S, D)


# ------------------------------ final LayerNorm ------------------------------

def _layernorm_kernel(x_ref, g_ref, b_ref, o_ref):
    o_ref[...] = _ln(x_ref[...], g_ref[...], b_ref[...])


def _layer_norm_rows(x, gamma, beta, *, row_tile=512):
    M, D = x.shape
    tm = M if (M <= row_tile or M % row_tile != 0) else row_tile
    return pl.pallas_call(
        _layernorm_kernel,
        out_shape=jax.ShapeDtypeStruct((M, D), jnp.float32),
        grid=(pl.cdiv(M, tm),),
        in_specs=[pl.BlockSpec((tm, D), lambda i: (i, 0)),
                  _const_spec((1, D)), _const_spec((1, D))],
        out_specs=pl.BlockSpec((tm, D), lambda i: (i, 0)),
        compiler_params=pltpu.CompilerParams(dimension_semantics=("parallel",)),
    )(x, gamma.reshape(1, D), beta.reshape(1, D))


# -------------------------------- model (glue) -------------------------------

def _mask_to_bias(mask, Sq, Sk):
    """mask: (Sq|1, Sk, B|1), nonzero = keep -> additive bias (B|1, Sq, Sk)."""
    bias = jnp.where(mask == 0, _MASK_NEG, 0.0).astype(jnp.float32)
    bias = jnp.transpose(bias, (2, 0, 1))            # (B|1, Sq|1, Sk)
    return jnp.broadcast_to(bias, (bias.shape[0], Sq, Sk))


def decoder_forward(params, x, memory, src_mask, tgt_mask, *, heads):
    """x: (S, B, D); memory: (Sm, B, D); masks: (q|1, k, b|1), nonzero = keep."""
    S, B, D = x.shape
    Sm = memory.shape[0]

    # Single layout change for the whole stack: (seq, batch, D) -> (batch, seq, D).
    xb = jnp.transpose(x, (1, 0, 2))
    memb = jnp.transpose(memory, (1, 0, 2))
    # Batch-invariant masks stay (1, Sq, Sk) and are held resident in VMEM.
    tgt_bias = _mask_to_bias(tgt_mask, S, S)
    src_bias = _mask_to_bias(src_mask, S, Sm)

    # Dropout layers are identity at inference and are omitted.
    for lp in params["layers"]:
        xb = _attention_block(lp["self_attn"], xb, xb, tgt_bias,
                              lp["ln_sa_g"], lp["ln_sa_b"],
                              heads=heads, self_attn=True)
        xb = _attention_block(lp["src_attn"], xb, memb, src_bias,
                              lp["ln_src_g"], lp["ln_src_b"],
                              heads=heads, self_attn=False)
        xb = _ffn_block(lp["ff"], xb, lp["ln_ff_g"], lp["ln_ff_b"])

    out = _layer_norm_rows(xb.reshape(B * S, D), params["norm_g"], params["norm_b"])
    return jnp.transpose(out.reshape(B, S, D), (1, 0, 2))


# ------------------------------ parameter init -------------------------------

def _init_linear(key, fan_in, fan_out, w_dtype=jnp.float32):
    k1, k2 = jax.random.split(key)
    bound = 1.0 / math.sqrt(fan_in)
    w = jax.random.uniform(k1, (fan_in, fan_out), jnp.float32, -bound, bound)
    b = jax.random.uniform(k2, (fan_out,), jnp.float32, -bound, bound)
    return w.astype(w_dtype), b


def _init_mha(key, d_model):
    """MHA params: full-width (D, D) bf16 weights, f32 (1, D) biases."""
    ks = jax.random.split(key, 4)
    wq, bq = _init_linear(ks[0], d_model, d_model, _MXU_DTYPE)
    wk, bk = _init_linear(ks[1], d_model, d_model, _MXU_DTYPE)
    wv, bv = _init_linear(ks[2], d_model, d_model, _MXU_DTYPE)
    wo, bo = _init_linear(ks[3], d_model, d_model, _MXU_DTYPE)
    return dict(wq=wq, bq=bq.reshape(1, d_model),
                wk=wk, bk=bk.reshape(1, d_model),
                wv=wv, bv=bv.reshape(1, d_model),
                wo=wo, bo=bo.reshape(1, d_model))


def init_decoder_params(key, n_layers, d_model, d_ff, heads):
    del heads  # weights are stored un-split; heads are static lane slices in-kernel
    layers = []
    keys = jax.random.split(key, n_layers)
    for lk in keys:
        k_sa, k_src, k_ff1, k_ff2 = jax.random.split(lk, 4)
        w1, b1 = _init_linear(k_ff1, d_model, d_ff, _MXU_DTYPE)
        w2, b2 = _init_linear(k_ff2, d_ff, d_model, _MXU_DTYPE)
        layers.append(dict(
            ln_sa_g=jnp.ones((d_model,), jnp.float32),
            ln_sa_b=jnp.zeros((d_model,), jnp.float32),
            ln_src_g=jnp.ones((d_model,), jnp.float32),
            ln_src_b=jnp.zeros((d_model,), jnp.float32),
            ln_ff_g=jnp.ones((d_model,), jnp.float32),
            ln_ff_b=jnp.zeros((d_model,), jnp.float32),
            self_attn=_init_mha(k_sa, d_model),
            src_attn=_init_mha(k_src, d_model),
            ff=dict(w1=w1, b1=b1.reshape(1, d_ff), w2=w2, b2=b2.reshape(1, d_model)),
        ))
    return dict(layers=layers,
                norm_g=jnp.ones((d_model,), jnp.float32),
                norm_b=jnp.zeros((d_model,), jnp.float32))


# ----------------------------------- demo ------------------------------------

if __name__ == "__main__":
    S, Sm, B = 8, 8, 2                 # target seq len, memory seq len, batch
    d_model, heads, d_ff = 32, 4, 64   # NOTE: real runs should keep D, d_k multiples of 128
    n_layers = 2

    _single_buffering_supported()      # prime the Buffered(1) feature probe (eager)

    root = jax.random.PRNGKey(0)
    k_p, k_x, k_m = jax.random.split(root, 3)

    params = init_decoder_params(k_p, n_layers, d_model, d_ff, heads)
    x = jax.random.normal(k_x, (S, B, d_model), jnp.float32)        # (seq, batch, D)
    memory = jax.random.normal(k_m, (Sm, B, d_model), jnp.float32)  # encoder output

    # masks follow the PyTorch convention (q_len|1, k_len, batch|1), nonzero = keep
    tgt_mask = jnp.tril(jnp.ones((S, S), jnp.float32))[:, :, None]   # causal
    src_mask = jnp.ones((1, Sm, 1), jnp.float32)                     # full visibility

    fwd = jax.jit(decoder_forward, static_argnames=("heads",))
    out = fwd(params, x, memory, src_mask, tgt_mask, heads=heads)
    out = jax.block_until_ready(out)

    assert out.shape == (S, B, d_model)
    assert bool(jnp.all(jnp.isfinite(out)))
    print("KERNEL_OK")
</pallas_src>

<mosaic_0001>
module attributes {stable_mosaic.version = 11 : i64} {
  func.func @_probe(%arg0: i32, %arg1: memref<8x128xf32, #tpu.memory_space<vmem>>, %arg2: memref<8x128xf32, #tpu.memory_space<vmem>>) attributes {dimension_semantics = [#tpu.dimension_semantics<arbitrary>], iteration_bounds = array<i64: 1>, scalar_prefetch = 0 : i64, scratch_operands = 0 : i64, tpu.core_type = #tpu.core_type<tc>, window_params = [{pipeline_mode = #tpu.pipeline_mode<synchronous>, transform_indices = @transform_0, window_bounds = array<i64: 8, 128>}, {pipeline_mode = #tpu.pipeline_mode<synchronous>, transform_indices = @transform_1, window_bounds = array<i64: 8, 128>}]} {
    %c0 = arith.constant 0 : index
    %c0_0 = arith.constant 0 : index
    %0 = vector.load %arg1[%c0, %c0_0] : memref<8x128xf32, #tpu.memory_space<vmem>>, vector<8x128xf32>
    %cst = arith.constant 1.000000e+00 : f32
    %1 = vector.broadcast %cst : f32 to vector<8x128xf32>
    %2 = arith.addf %0, %1 : vector<8x128xf32>
    %c0_1 = arith.constant 0 : index
    %c0_2 = arith.constant 0 : index
    %3 = vector.load %arg2[%c0_1, %c0_2] : memref<8x128xf32, #tpu.memory_space<vmem>>, vector<8x128xf32>
    tpu.vector_store %arg2[%c0_1, %c0_2], %2 {strides = array<i32>} : memref<8x128xf32, #tpu.memory_space<vmem>>, vector<8x128xf32>,
    return
  }
  func.func @transform_0(%arg0: i32) -> (i32, i32) {
    %c0_i32 = arith.constant 0 : i32
    %c0_i32_0 = arith.constant 0 : i32
    %c0_i32_1 = arith.constant 0 : i32
    return %c0_i32, %c0_i32_0 : i32, i32
  }
  func.func @transform_1(%arg0: i32) -> (i32, i32) {
    %c0_i32 = arith.constant 0 : i32
    %c0_i32_0 = arith.constant 0 : i32
    %c0_i32_1 = arith.constant 0 : i32
    return %c0_i32, %c0_i32_0 : i32, i32
  }
}

module attributes {stable_mosaic.version = 11 : i64} {
  func.func @_attn_block_kernel(%arg0: i32, %arg1: i32, %arg2: memref<1x8x32xf32, #tpu.memory_space<vmem>>, %arg3: memref<1x8x8xf32, #tpu.memory_space<vmem>>, %arg4: memref<1x32xf32, #tpu.memory_space<vmem>>, %arg5: memref<1x32xf32, #tpu.memory_space<vmem>>, %arg6: memref<32x32xbf16, #tpu.memory_space<vmem>>, %arg7: memref<1x32xf32, #tpu.memory_space<vmem>>, %arg8: memref<32x32xbf16, #tpu.memory_space<vmem>>, %arg9: memref<1x32xf32, #tpu.memory_space<vmem>>, %arg10: memref<32x32xbf16, #tpu.memory_space<vmem>>, %arg11: memref<1x32xf32, #tpu.memory_space<vmem>>, %arg12: memref<32x32xbf16, #tpu.memory_space<vmem>>, %arg13: memref<1x32xf32, #tpu.memory_space<vmem>>, %arg14: memref<1x8x32xf32, #tpu.memory_space<vmem>>) attributes {dimension_semantics = [#tpu.dimension_semantics<parallel>, #tpu.dimension_semantics<parallel>], iteration_bounds = array<i64: 2, 1>, scalar_prefetch = 0 : i64, scratch_operands = 0 : i64, tpu.core_type = #tpu.core_type<tc>, window_params = [{transform_indices = @transform_0, window_bounds = array<i64: 1, 8, 32>}, {pipeline_mode = #tpu.pipeline_mode<synchronous>, transform_indices = @transform_1, window_bounds = array<i64: 1, 8, 8>}, {pipeline_mode = #tpu.pipeline_mode<synchronous>, transform_indices = @transform_2, window_bounds = array<i64: 1, 32>}, {pipeline_mode = #tpu.pipeline_mode<synchronous>, transform_indices = @transform_3, window_bounds = array<i64: 1, 32>}, {pipeline_mode = #tpu.pipeline_mode<synchronous>, transform_indices = @transform_4, window_bounds = array<i64: 32, 32>}, {pipeline_mode = #tpu.pipeline_mode<synchronous>, transform_indices = @transform_5, window_bounds = array<i64: 1, 32>}, {pipeline_mode = #tpu.pipeline_mode<synchronous>, transform_indices = @transform_6, window_bounds = array<i64: 32, 32>}, {pipeline_mode = #tpu.pipeline_mode<synchronous>, transform_indices = @transform_7, window_bounds = array<i64: 1, 32>}, {pipeline_mode = #tpu.pipeline_mode<synchronous>, transform_indices = @transform_8, window_bounds = array<i64: 32, 32>}, {pipeline_mode = #tpu.pipeline_mode<synchronous>, transform_indices = @transform_9, window_bounds = array<i64: 1, 32>}, {pipeline_mode = #tpu.pipeline_mode<synchronous>, transform_indices = @transform_10, window_bounds = array<i64: 32, 32>}, {pipeline_mode = #tpu.pipeline_mode<synchronous>, transform_indices = @transform_11, window_bounds = array<i64: 1, 32>}, {transform_indices = @transform_12, window_bounds = array<i64: 1, 8, 32>}]} {
    %c0 = arith.constant 0 : index
    %c0_0 = arith.constant 0 : index
    %c0_1 = arith.constant 0 : index
    %0 = vector.load %arg2[%c0, %c0_0, %c0_1] : memref<1x8x32xf32, #tpu.memory_space<vmem>>, vector<1x8x32xf32>
    %1 = vector.shape_cast %0 : vector<1x8x32xf32> to vector<8x32xf32>
    %c0_2 = arith.constant 0 : index
    %c0_3 = arith.constant 0 : index
    %2 = vector.load %arg4[%c0_2, %c0_3] : memref<1x32xf32, #tpu.memory_space<vmem>>, vector<1x32xf32>
    %c0_4 = arith.constant 0 : index
    %c0_5 = arith.constant 0 : index
    %3 = vector.load %arg5[%c0_4, %c0_5] : memref<1x32xf32, #tpu.memory_space<vmem>>, vector<1x32xf32>
    %cst = arith.constant dense<0.000000e+00> : vector<8xf32>
    %4 = vector.multi_reduction <add>, %1, %cst [1] : vector<8x32xf32> to vector<8xf32>
    %5 = vector.shape_cast %4 : vector<8xf32> to vector<8x1xf32>
    %cst_6 = arith.constant 3.200000e+01 : f32
    %6 = vector.broadcast %cst_6 : f32 to vector<8x1xf32>
    %7 = arith.divf %5, %6 : vector<8x1xf32>
    %8 = vector.broadcast %7 : vector<8x1xf32> to vector<8x32xf32>
    %9 = arith.subf %1, %8 : vector<8x32xf32>
    %10 = arith.mulf %9, %9 : vector<8x32xf32>
    %cst_7 = arith.constant dense<0.000000e+00> : vector<8xf32>
    %11 = vector.multi_reduction <add>, %10, %cst_7 [1] : vector<8x32xf32> to vector<8xf32>
    %12 = vector.shape_cast %11 : vector<8xf32> to vector<8x1xf32>
    %cst_8 = arith.constant 3.200000e+01 : f32
    %13 = vector.broadcast %cst_8 : f32 to vector<8x1xf32>
    %14 = arith.divf %12, %13 : vector<8x1xf32>
    %15 = vector.broadcast %7 : vector<8x1xf32> to vector<8x32xf32>
    %16 = arith.subf %1, %15 : vector<8x32xf32>
    %cst_9 = arith.constant 9.99999974E-6 : f32
    %17 = vector.broadcast %cst_9 : f32 to vector<8x1xf32>
    %18 = arith.addf %14, %17 : vector<8x1xf32>
    %19 = math.rsqrt %18 : vector<8x1xf32>
    %20 = vector.broadcast %19 : vector<8x1xf32> to vector<8x32xf32>
    %21 = arith.mulf %16, %20 : vector<8x32xf32>
    %22 = vector.broadcast %2 : vector<1x32xf32> to vector<8x32xf32>
    %23 = arith.mulf %21, %22 : vector<8x32xf32>
    %24 = vector.broadcast %3 : vector<1x32xf32> to vector<8x32xf32>
    %25 = arith.addf %23, %24 : vector<8x32xf32>
    %26 = arith.truncf %25 : vector<8x32xf32> to vector<8x32xbf16>
    %27 = arith.truncf %25 : vector<8x32xf32> to vector<8x32xbf16>
    %c0_10 = arith.constant 0 : index
    %c0_11 = arith.constant 0 : index
    %28 = vector.load %arg6[%c0_10, %c0_11] : memref<32x32xbf16, #tpu.memory_space<vmem>>, vector<32x32xbf16>
    %cst_12 = arith.constant dense<0.000000e+00> : vector<8x32xf32>
    %29 = tpu.matmul %26, %28, %cst_12 {dimension_numbers = #tpu.dot_dimension_numbers<[1], [0], [0], [1], [0, 0, 1, 1], [], []>} : vector<8x32xbf16>, vector<32x32xbf16>, vector<8x32xf32> -> vector<8x32xf32>
    %c0_13 = arith.constant 0 : index
    %c0_14 = arith.constant 0 : index
    %30 = vector.load %arg7[%c0_13, %c0_14] : memref<1x32xf32, #tpu.memory_space<vmem>>, vector<1x32xf32>
    %31 = vector.broadcast %30 : vector<1x32xf32> to vector<8x32xf32>
    %32 = arith.addf %29, %31 : vector<8x32xf32>
    %c0_15 = arith.constant 0 : index
    %c0_16 = arith.constant 0 : index
    %33 = vector.load %arg8[%c0_15, %c0_16] : memref<32x32xbf16, #tpu.memory_space<vmem>>, vector<32x32xbf16>
    %cst_17 = arith.constant dense<0.000000e+00> : vector<8x32xf32>
    %34 = tpu.matmul %27, %33, %cst_17 {dimension_numbers = #tpu.dot_dimension_numbers<[1], [0], [0], [1], [0, 0, 1, 1], [], []>} : vector<8x32xbf16>, vector<32x32xbf16>, vector<8x32xf32> -> vector<8x32xf32>
    %c0_18 = arith.constant 0 : index
    %c0_19 = arith.constant 0 : index
    %35 = vector.load %arg9[%c0_18, %c0_19] : memref<1x32xf32, #tpu.memory_space<vmem>>, vector<1x32xf32>
    %36 = vector.broadcast %35 : vector<1x32xf32> to vector<8x32xf32>
    %37 = arith.addf %34, %36 : vector<8x32xf32>
    %c0_20 = arith.constant 0 : index
    %c0_21 = arith.constant 0 : index
    %38 = vector.load %arg10[%c0_20, %c0_21] : memref<32x32xbf16, #tpu.memory_space<vmem>>, vector<32x32xbf16>
    %cst_22 = arith.constant dense<0.000000e+00> : vector<8x32xf32>
    %39 = tpu.matmul %27, %38, %cst_22 {dimension_numbers = #tpu.dot_dimension_numbers<[1], [0], [0], [1], [0, 0, 1, 1], [], []>} : vector<8x32xbf16>, vector<32x32xbf16>, vector<8x32xf32> -> vector<8x32xf32>
    %c0_23 = arith.constant 0 : index
    %c0_24 = arith.constant 0 : index
    %40 = vector.load %arg11[%c0_23, %c0_24] : memref<1x32xf32, #tpu.memory_space<vmem>>, vector<1x32xf32>
    %41 = vector.broadcast %40 : vector<1x32xf32> to vector<8x32xf32>
    %42 = arith.addf %39, %41 : vector<8x32xf32>
    %43 = arith.truncf %32 : vector<8x32xf32> to vector<8x32xbf16>
    %44 = arith.truncf %37 : vector<8x32xf32> to vector<8x32xbf16>
    %45 = arith.truncf %42 : vector<8x32xf32> to vector<8x32xbf16>
    %c0_25 = arith.constant 0 : index
    %c0_26 = arith.constant 0 : index
    %c0_27 = arith.constant 0 : index
    %46 = vector.load %arg3[%c0_25, %c0_26, %c0_27] : memref<1x8x8xf32, #tpu.memory_space<vmem>>, vector<1x8x8xf32>
    %47 = vector.shape_cast %46 : vector<1x8x8xf32> to vector<8x8xf32>
    %48 = vector.extract_strided_slice %43 {offsets = [0, 0], sizes = [8, 8], strides = [1, 1]} : vector<8x32xbf16> to vector<8x8xbf16>
    %49 = vector.extract_strided_slice %44 {offsets = [0, 0], sizes = [8, 8], strides = [1, 1]} : vector<8x32xbf16> to vector<8x8xbf16>
    %cst_28 = arith.constant dense<0.000000e+00> : vector<8x8xf32>
    %50 = tpu.matmul %48, %49, %cst_28 {dimension_numbers = #tpu.dot_dimension_numbers<[1], [1], [0], [0], [0, 0, 1, 0], [], []>} : vector<8x8xbf16>, vector<8x8xbf16>, vector<8x8xf32> -> vector<8x8xf32>
    %cst_29 = arith.constant 0.353553385 : f32
    %51 = vector.broadcast %cst_29 : f32 to vector<8x8xf32>
    %52 = arith.mulf %50, %51 : vector<8x8xf32>
    %53 = arith.addf %52, %47 : vector<8x8xf32>
    %cst_30 = arith.constant dense<0xFF800000> : vector<8xf32>
    %54 = vector.multi_reduction <maximumf>, %53, %cst_30 [1] : vector<8x8xf32> to vector<8xf32>
    %55 = vector.shape_cast %54 : vector<8xf32> to vector<8x1xf32>
    %56 = vector.broadcast %55 : vector<8x1xf32> to vector<8x8xf32>
    %57 = arith.subf %53, %56 : vector<8x8xf32>
    %58 = math.exp %57 : vector<8x8xf32>
    %cst_31 = arith.constant dense<0.000000e+00> : vector<8xf32>
    %59 = vector.multi_reduction <add>, %58, %cst_31 [1] : vector<8x8xf32> to vector<8xf32>
    %60 = vector.shape_cast %59 : vector<8xf32> to vector<8x1xf32>
    %61 = vector.broadcast %60 : vector<8x1xf32> to vector<8x8xf32>
    %62 = arith.divf %58, %61 : vector<8x8xf32>
    %63 = arith.truncf %62 : vector<8x8xf32> to vector<8x8xbf16>
    %64 = vector.extract_strided_slice %45 {offsets = [0, 0], sizes = [8, 8], strides = [1, 1]} : vector<8x32xbf16> to vector<8x8xbf16>
    %cst_32 = arith.constant dense<0.000000e+00> : vector<8x8xf32>
    %65 = tpu.matmul %63, %64, %cst_32 {dimension_numbers = #tpu.dot_dimension_numbers<[1], [0], [0], [1], [0, 0, 1, 1], [], []>} : vector<8x8xbf16>, vector<8x8xbf16>, vector<8x8xf32> -> vector<8x8xf32>
    %66 = vector.extract_strided_slice %43 {offsets = [0, 8], sizes = [8, 8], strides = [1, 1]} : vector<8x32xbf16> to vector<8x8xbf16>
    %67 = vector.extract_strided_slice %44 {offsets = [0, 8], sizes = [8, 8], strides = [1, 1]} : vector<8x32xbf16> to vector<8x8xbf16>
    %cst_33 = arith.constant dense<0.000000e+00> : vector<8x8xf32>
    %68 = tpu.matmul %66, %67, %cst_33 {dimension_numbers = #tpu.dot_dimension_numbers<[1], [1], [0], [0], [0, 0, 1, 0], [], []>} : vector<8x8xbf16>, vector<8x8xbf16>, vector<8x8xf32> -> vector<8x8xf32>
    %cst_34 = arith.constant 0.353553385 : f32
    %69 = vector.broadcast %cst_34 : f32 to vector<8x8xf32>
    %70 = arith.mulf %68, %69 : vector<8x8xf32>
    %71 = arith.addf %70, %47 : vector<8x8xf32>
    %cst_35 = arith.constant dense<0xFF800000> : vector<8xf32>
    %72 = vector.multi_reduction <maximumf>, %71, %cst_35 [1] : vector<8x8xf32> to vector<8xf32>
    %73 = vector.shape_cast %72 : vector<8xf32> to vector<8x1xf32>
    %74 = vector.broadcast %73 : vector<8x1xf32> to vector<8x8xf32>
    %75 = arith.subf %71, %74 : vector<8x8xf32>
    %76 = math.exp %75 : vector<8x8xf32>
    %cst_36 = arith.constant dense<0.000000e+00> : vector<8xf32>
    %77 = vector.multi_reduction <add>, %76, %cst_36 [1] : vector<8x8xf32> to vector<8xf32>
    %78 = vector.shape_cast %77 : vector<8xf32> to vector<8x1xf32>
    %79 = vector.broadcast %78 : vector<8x1xf32> to vector<8x8xf32>
    %80 = arith.divf %76, %79 : vector<8x8xf32>
    %81 = arith.truncf %80 : vector<8x8xf32> to vector<8x8xbf16>
    %82 = vector.extract_strided_slice %45 {offsets = [0, 8], sizes = [8, 8], strides = [1, 1]} : vector<8x32xbf16> to vector<8x8xbf16>
    %cst_37 = arith.constant dense<0.000000e+00> : vector<8x8xf32>
    %83 = tpu.matmul %81, %82, %cst_37 {dimension_numbers = #tpu.dot_dimension_numbers<[1], [0], [0], [1], [0, 0, 1, 1], [], []>} : vector<8x8xbf16>, vector<8x8xbf16>, vector<8x8xf32> -> vector<8x8xf32>
    %84 = vector.extract_strided_slice %43 {offsets = [0, 16], sizes = [8, 8], strides = [1, 1]} : vector<8x32xbf16> to vector<8x8xbf16>
    %85 = vector.extract_strided_slice %44 {offsets = [0, 16], sizes = [8, 8], strides = [1, 1]} : vector<8x32xbf16> to vector<8x8xbf16>
    %cst_38 = arith.constant dense<0.000000e+00> : vector<8x8xf32>
    %86 = tpu.matmul %84, %85, %cst_38 {dimension_numbers = #tpu.dot_dimension_numbers<[1], [1], [0], [0], [0, 0, 1, 0], [], []>} : vector<8x8xbf16>, vector<8x8xbf16>, vector<8x8xf32> -> vector<8x8xf32>
    %cst_39 = arith.constant 0.353553385 : f32
    %87 = vector.broadcast %cst_39 : f32 to vector<8x8xf32>
    %88 = arith.mulf %86, %87 : vector<8x8xf32>
    %89 = arith.addf %88, %47 : vector<8x8xf32>
    %cst_40 = arith.constant dense<0xFF800000> : vector<8xf32>
    %90 = vector.multi_reduction <maximumf>, %89, %cst_40 [1] : vector<8x8xf32> to vector<8xf32>
    %91 = vector.shape_cast %90 : vector<8xf32> to vector<8x1xf32>
    %92 = vector.broadcast %91 : vector<8x1xf32> to vector<8x8xf32>
    %93 = arith.subf %89, %92 : vector<8x8xf32>
    %94 = math.exp %93 : vector<8x8xf32>
    %cst_41 = arith.constant dense<0.000000e+00> : vector<8xf32>
    %95 = vector.multi_reduction <add>, %94, %cst_41 [1] : vector<8x8xf32> to vector<8xf32>
    %96 = vector.shape_cast %95 : vector<8xf32> to vector<8x1xf32>
    %97 = vector.broadcast %96 : vector<8x1xf32> to vector<8x8xf32>
    %98 = arith.divf %94, %97 : vector<8x8xf32>
    %99 = arith.truncf %98 : vector<8x8xf32> to vector<8x8xbf16>
    %100 = vector.extract_strided_slice %45 {offsets = [0, 16], sizes = [8, 8], strides = [1, 1]} : vector<8x32xbf16> to vector<8x8xbf16>
    %cst_42 = arith.constant dense<0.000000e+00> : vector<8x8xf32>
    %101 = tpu.matmul %99, %100, %cst_42 {dimension_numbers = #tpu.dot_dimension_numbers<[1], [0], [0], [1], [0, 0, 1, 1], [], []>} : vector<8x8xbf16>, vector<8x8xbf16>, vector<8x8xf32> -> vector<8x8xf32>
    %102 = vector.extract_strided_slice %43 {offsets = [0, 24], sizes = [8, 8], strides = [1, 1]} : vector<8x32xbf16> to vector<8x8xbf16>
    %103 = vector.extract_strided_slice %44 {offsets = [0, 24], sizes = [8, 8], strides = [1, 1]} : vector<8x32xbf16> to vector<8x8xbf16>
    %cst_43 = arith.constant dense<0.000000e+00> : vector<8x8xf32>
    %104 = tpu.matmul %102, %103, %cst_43 {dimension_numbers = #tpu.dot_dimension_numbers<[1], [1], [0], [0], [0, 0, 1, 0], [], []>} : vector<8x8xbf16>, vector<8x8xbf16>, vector<8x8xf32> -> vector<8x8xf32>
    %cst_44 = arith.constant 0.353553385 : f32
    %105 = vector.broadcast %cst_44 : f32 to vector<8x8xf32>
    %106 = arith.mulf %104, %105 : vector<8x8xf32>
    %107 = arith.addf %106, %47 : vector<8x8xf32>
    %cst_45 = arith.constant dense<0xFF800000> : vector<8xf32>
    %108 = vector.multi_reduction <maximumf>, %107, %cst_45 [1] : vector<8x8xf32> to vector<8xf32>
    %109 = vector.shape_cast %108 : vector<8xf32> to vector<8x1xf32>
    %110 = vector.broadcast %109 : vector<8x1xf32> to vector<8x8xf32>
    %111 = arith.subf %107, %110 : vector<8x8xf32>
    %112 = math.exp %111 : vector<8x8xf32>
    %cst_46 = arith.constant dense<0.000000e+00> : vector<8xf32>
    %113 = vector.multi_reduction <add>, %112, %cst_46 [1] : vector<8x8xf32> to vector<8xf32>
    %114 = vector.shape_cast %113 : vector<8xf32> to vector<8x1xf32>
    %115 = vector.broadcast %114 : vector<8x1xf32> to vector<8x8xf32>
    %116 = arith.divf %112, %115 : vector<8x8xf32>
    %117 = arith.truncf %116 : vector<8x8xf32> to vector<8x8xbf16>
    %118 = vector.extract_strided_slice %45 {offsets = [0, 24], sizes = [8, 8], strides = [1, 1]} : vector<8x32xbf16> to vector<8x8xbf16>
    %cst_47 = arith.constant dense<0.000000e+00> : vector<8x8xf32>
    %119 = tpu.matmul %117, %118, %cst_47 {dimension_numbers = #tpu.dot_dimension_numbers<[1], [0], [0], [1], [0, 0, 1, 1], [], []>} : vector<8x8xbf16>, vector<8x8xbf16>, vector<8x8xf32> -> vector<8x8xf32>
    %120 = tpu.concatenate %65, %83, %101, %119 in 1 : vector<8x8xf32>, vector<8x8xf32>, vector<8x8xf32>, vector<8x8xf32> -> vector<8x32xf32>
    %121 = arith.truncf %120 : vector<8x32xf32> to vector<8x32xbf16>
    %c0_48 = arith.constant 0 : index
    %c0_49 = arith.constant 0 : index
    %122 = vector.load %arg12[%c0_48, %c0_49] : memref<32x32xbf16, #tpu.memory_space<vmem>>, vector<32x32xbf16>
    %cst_50 = arith.constant dense<0.000000e+00> : vector<8x32xf32>
    %123 = tpu.matmul %121, %122, %cst_50 {dimension_numbers = #tpu.dot_dimension_numbers<[1], [0], [0], [1], [0, 0, 1, 1], [], []>} : vector<8x32xbf16>, vector<32x32xbf16>, vector<8x32xf32> -> vector<8x32xf32>
    %124 = arith.addf %1, %123 : vector<8x32xf32>
    %c0_51 = arith.constant 0 : index
    %c0_52 = arith.constant 0 : index
    %125 = vector.load %arg13[%c0_51, %c0_52] : memref<1x32xf32, #tpu.memory_space<vmem>>, vector<1x32xf32>
    %126 = vector.broadcast %125 : vector<1x32xf32> to vector<8x32xf32>
    %127 = arith.addf %124, %126 : vector<8x32xf32>
    %c0_53 = arith.constant 0 : index
    %c0_54 = arith.constant 0 : index
    %c0_55 = arith.constant 0 : index
    %128 = vector.load %arg14[%c0_53, %c0_54, %c0_55] : memref<1x8x32xf32, #tpu.memory_space<vmem>>, vector<1x8x32xf32>
    %129 = vector.shape_cast %128 : vector<1x8x32xf32> to vector<8x32xf32>
    %130 = vector.shape_cast %127 : vector<8x32xf32> to vector<1x8x32xf32>
    tpu.vector_store %arg14[%c0_53, %c0_54, %c0_55], %130 {strides = array<i32>} : memref<1x8x32xf32, #tpu.memory_space<vmem>>, vector<1x8x32xf32>,
    return
  }
  func.func @transform_0(%arg0: i32, %arg1: i32) -> (i32, i32, i32) {
    %c0_i32 = arith.constant 0 : i32
    %c0_i32_0 = arith.constant 0 : i32
    return %arg0, %arg1, %c0_i32 : i32, i32, i32
  }
  func.func @transform_1(%arg0: i32, %arg1: i32) -> (i32, i32, i32) {
    %c0_i32 = arith.constant 0 : i32
    %c0_i32_0 = arith.constant 0 : i32
    %c0_i32_1 = arith.constant 0 : i32
    %c0_i32_2 = arith.constant 0 : i32
    return %c0_i32, %c0_i32_0, %c0_i32_1 : i32, i32, i32
  }
  func.func @transform_2(%arg0: i32, %arg1: i32) -> (i32, i32) {
    %c0_i32 = arith.constant 0 : i32
    %c0_i32_0 = arith.constant 0 : i32
    %c0_i32_1 = arith.constant 0 : i32
    return %c0_i32, %c0_i32_0 : i32, i32
  }
  func.func @transform_3(%arg0: i32, %arg1: i32) -> (i32, i32) {
    %c0_i32 = arith.constant 0 : i32
    %c0_i32_0 = arith.constant 0 : i32
    %c0_i32_1 = arith.constant 0 : i32
    return %c0_i32, %c0_i32_0 : i32, i32
  }
  func.func @transform_4(%arg0: i32, %arg1: i32) -> (i32, i32) {
    %c0_i32 = arith.constant 0 : i32
    %c0_i32_0 = arith.constant 0 : i32
    %c0_i32_1 = arith.constant 0 : i32
    return %c0_i32, %c0_i32_0 : i32, i32
  }
  func.func @transform_5(%arg0: i32, %arg1: i32) -> (i32, i32) {
    %c0_i32 = arith.constant 0 : i32
    %c0_i32_0 = arith.constant 0 : i32
    %c0_i32_1 = arith.constant 0 : i32
    return %c0_i32, %c0_i32_0 : i32, i32
  }
  func.func @transform_6(%arg0: i32, %arg1: i32) -> (i32, i32) {
    %c0_i32 = arith.constant 0 : i32
    %c0_i32_0 = arith.constant 0 : i32
    %c0_i32_1 = arith.constant 0 : i32
    return %c0_i32, %c0_i32_0 : i32, i32
  }
  func.func @transform_7(%arg0: i32, %arg1: i32) -> (i32, i32) {
    %c0_i32 = arith.constant 0 : i32
    %c0_i32_0 = arith.constant 0 : i32
    %c0_i32_1 = arith.constant 0 : i32
    return %c0_i32, %c0_i32_0 : i32, i32
  }
  func.func @transform_8(%arg0: i32, %arg1: i32) -> (i32, i32) {
    %c0_i32 = arith.constant 0 : i32
    %c0_i32_0 = arith.constant 0 : i32
    %c0_i32_1 = arith.constant 0 : i32
    return %c0_i32, %c0_i32_0 : i32, i32
  }
  func.func @transform_9(%arg0: i32, %arg1: i32) -> (i32, i32) {
    %c0_i32 = arith.constant 0 : i32
    %c0_i32_0 = arith.constant 0 : i32
    %c0_i32_1 = arith.constant 0 : i32
    return %c0_i32, %c0_i32_0 : i32, i32
  }
  func.func @transform_10(%arg0: i32, %arg1: i32) -> (i32, i32) {
    %c0_i32 = arith.constant 0 : i32
    %c0_i32_0 = arith.constant 0 : i32
    %c0_i32_1 = arith.constant 0 : i32
    return %c0_i32, %c0_i32_0 : i32, i32
  }
  func.func @transform_11(%arg0: i32, %arg1: i32) -> (i32, i32) {
    %c0_i32 = arith.constant 0 : i32
    %c0_i32_0 = arith.constant 0 : i32
    %c0_i32_1 = arith.constant 0 : i32
    return %c0_i32, %c0_i32_0 : i32, i32
  }
  func.func @transform_12(%arg0: i32, %arg1: i32) -> (i32, i32, i32) {
    %c0_i32 = arith.constant 0 : i32
    %c0_i32_0 = arith.constant 0 : i32
    return %arg0, %arg1, %c0_i32 : i32, i32, i32
  }
}

module attributes {stable_mosaic.version = 11 : i64} {
  func.func @_ffn_block_kernel(%arg0: i32, %arg1: memref<16x32xf32, #tpu.memory_space<vmem>>, %arg2: memref<1x32xf32, #tpu.memory_space<vmem>>, %arg3: memref<1x32xf32, #tpu.memory_space<vmem>>, %arg4: memref<32x64xbf16, #tpu.memory_space<vmem>>, %arg5: memref<1x64xf32, #tpu.memory_space<vmem>>, %arg6: memref<64x32xbf16, #tpu.memory_space<vmem>>, %arg7: memref<1x32xf32, #tpu.memory_space<vmem>>, %arg8: memref<16x32xf32, #tpu.memory_space<vmem>>) attributes {dimension_semantics = [#tpu.dimension_semantics<parallel>], iteration_bounds = array<i64: 1>, scalar_prefetch = 0 : i64, scratch_operands = 0 : i64, tpu.core_type = #tpu.core_type<tc>, window_params = [{transform_indices = @transform_0, window_bounds = array<i64: 16, 32>}, {pipeline_mode = #tpu.pipeline_mode<synchronous>, transform_indices = @transform_1, window_bounds = array<i64: 1, 32>}, {pipeline_mode = #tpu.pipeline_mode<synchronous>, transform_indices = @transform_2, window_bounds = array<i64: 1, 32>}, {pipeline_mode = #tpu.pipeline_mode<synchronous>, transform_indices = @transform_3, window_bounds = array<i64: 32, 64>}, {pipeline_mode = #tpu.pipeline_mode<synchronous>, transform_indices = @transform_4, window_bounds = array<i64: 1, 64>}, {pipeline_mode = #tpu.pipeline_mode<synchronous>, transform_indices = @transform_5, window_bounds = array<i64: 64, 32>}, {pipeline_mode = #tpu.pipeline_mode<synchronous>, transform_indices = @transform_6, window_bounds = array<i64: 1, 32>}, {transform_indices = @transform_7, window_bounds = array<i64: 16, 32>}]} {
    %c0 = arith.constant 0 : index
    %c0_0 = arith.constant 0 : index
    %0 = vector.load %arg1[%c0, %c0_0] : memref<16x32xf32, #tpu.memory_space<vmem>>, vector<16x32xf32>
    %c0_1 = arith.constant 0 : index
    %c0_2 = arith.constant 0 : index
    %1 = vector.load %arg2[%c0_1, %c0_2] : memref<1x32xf32, #tpu.memory_space<vmem>>, vector<1x32xf32>
    %c0_3 = arith.constant 0 : index
    %c0_4 = arith.constant 0 : index
    %2 = vector.load %arg3[%c0_3, %c0_4] : memref<1x32xf32, #tpu.memory_space<vmem>>, vector<1x32xf32>
    %cst = arith.constant dense<0.000000e+00> : vector<16xf32>
    %3 = vector.multi_reduction <add>, %0, %cst [1] : vector<16x32xf32> to vector<16xf32>
    %4 = vector.shape_cast %3 : vector<16xf32> to vector<16x1xf32>
    %cst_5 = arith.constant 3.200000e+01 : f32
    %5 = vector.broadcast %cst_5 : f32 to vector<16x1xf32>
    %6 = arith.divf %4, %5 : vector<16x1xf32>
    %7 = vector.broadcast %6 : vector<16x1xf32> to vector<16x32xf32>
    %8 = arith.subf %0, %7 : vector<16x32xf32>
    %9 = arith.mulf %8, %8 : vector<16x32xf32>
    %cst_6 = arith.constant dense<0.000000e+00> : vector<16xf32>
    %10 = vector.multi_reduction <add>, %9, %cst_6 [1] : vector<16x32xf32> to vector<16xf32>
    %11 = vector.shape_cast %10 : vector<16xf32> to vector<16x1xf32>
    %cst_7 = arith.constant 3.200000e+01 : f32
    %12 = vector.broadcast %cst_7 : f32 to vector<16x1xf32>
    %13 = arith.divf %11, %12 : vector<16x1xf32>
    %14 = vector.broadcast %6 : vector<16x1xf32> to vector<16x32xf32>
    %15 = arith.subf %0, %14 : vector<16x32xf32>
    %cst_8 = arith.constant 9.99999974E-6 : f32
    %16 = vector.broadcast %cst_8 : f32 to vector<16x1xf32>
    %17 = arith.addf %13, %16 : vector<16x1xf32>
    %18 = math.rsqrt %17 : vector<16x1xf32>
    %19 = vector.broadcast %18 : vector<16x1xf32> to vector<16x32xf32>
    %20 = arith.mulf %15, %19 : vector<16x32xf32>
    %21 = vector.broadcast %1 : vector<1x32xf32> to vector<16x32xf32>
    %22 = arith.mulf %20, %21 : vector<16x32xf32>
    %23 = vector.broadcast %2 : vector<1x32xf32> to vector<16x32xf32>
    %24 = arith.addf %22, %23 : vector<16x32xf32>
    %25 = arith.truncf %24 : vector<16x32xf32> to vector<16x32xbf16>
    %c0_9 = arith.constant 0 : index
    %c0_10 = arith.constant 0 : index
    %26 = vector.load %arg4[%c0_9, %c0_10] : memref<32x64xbf16, #tpu.memory_space<vmem>>, vector<32x64xbf16>
    %cst_11 = arith.constant dense<0.000000e+00> : vector<16x64xf32>
    %27 = tpu.matmul %25, %26, %cst_11 {dimension_numbers = #tpu.dot_dimension_numbers<[1], [0], [0], [1], [0, 0, 1, 1], [], []>} : vector<16x32xbf16>, vector<32x64xbf16>, vector<16x64xf32> -> vector<16x64xf32>
    %c0_12 = arith.constant 0 : index
    %c0_13 = arith.constant 0 : index
    %28 = vector.load %arg5[%c0_12, %c0_13] : memref<1x64xf32, #tpu.memory_space<vmem>>, vector<1x64xf32>
    %29 = vector.broadcast %28 : vector<1x64xf32> to vector<16x64xf32>
    %30 = arith.addf %27, %29 : vector<16x64xf32>
    %cst_14 = arith.constant 0.000000e+00 : f32
    %31 = vector.broadcast %cst_14 : f32 to vector<16x64xf32>
    %32 = arith.maximumf %30, %31 : vector<16x64xf32>
    %33 = arith.truncf %32 : vector<16x64xf32> to vector<16x64xbf16>
    %c0_15 = arith.constant 0 : index
    %c0_16 = arith.constant 0 : index
    %34 = vector.load %arg6[%c0_15, %c0_16] : memref<64x32xbf16, #tpu.memory_space<vmem>>, vector<64x32xbf16>
    %cst_17 = arith.constant dense<0.000000e+00> : vector<16x32xf32>
    %35 = tpu.matmul %33, %34, %cst_17 {dimension_numbers = #tpu.dot_dimension_numbers<[1], [0], [0], [1], [0, 0, 1, 1], [], []>} : vector<16x64xbf16>, vector<64x32xbf16>, vector<16x32xf32> -> vector<16x32xf32>
    %c0_18 = arith.constant 0 : index
    %c0_19 = arith.constant 0 : index
    %36 = vector.load %arg7[%c0_18, %c0_19] : memref<1x32xf32, #tpu.memory_space<vmem>>, vector<1x32xf32>
    %37 = vector.broadcast %36 : vector<1x32xf32> to vector<16x32xf32>
    %38 = arith.addf %35, %37 : vector<16x32xf32>
    %39 = arith.addf %0, %38 : vector<16x32xf32>
    %c0_20 = arith.constant 0 : index
    %c0_21 = arith.constant 0 : index
    %40 = vector.load %arg8[%c0_20, %c0_21] : memref<16x32xf32, #tpu.memory_space<vmem>>, vector<16x32xf32>
    tpu.vector_store %arg8[%c0_20, %c0_21], %39 {strides = array<i32>} : memref<16x32xf32, #tpu.memory_space<vmem>>, vector<16x32xf32>,
    return
  }
  func.func @transform_0(%arg0: i32) -> (i32, i32) {
    %c0_i32 = arith.constant 0 : i32
    %c0_i32_0 = arith.constant 0 : i32
    return %arg0, %c0_i32 : i32, i32
  }
  func.func @transform_1(%arg0: i32) -> (i32, i32) {
    %c0_i32 = arith.constant 0 : i32
    %c0_i32_0 = arith.constant 0 : i32
    %c0_i32_1 = arith.constant 0 : i32
    return %c0_i32, %c0_i32_0 : i32, i32
  }
  func.func @transform_2(%arg0: i32) -> (i32, i32) {
    %c0_i32 = arith.constant 0 : i32
    %c0_i32_0 = arith.constant 0 : i32
    %c0_i32_1 = arith.constant 0 : i32
    return %c0_i32, %c0_i32_0 : i32, i32
  }
  func.func @transform_3(%arg0: i32) -> (i32, i32) {
    %c0_i32 = arith.constant 0 : i32
    %c0_i32_0 = arith.constant 0 : i32
    %c0_i32_1 = arith.constant 0 : i32
    return %c0_i32, %c0_i32_0 : i32, i32
  }
  func.func @transform_4(%arg0: i32) -> (i32, i32) {
    %c0_i32 = arith.constant 0 : i32
    %c0_i32_0 = arith.constant 0 : i32
    %c0_i32_1 = arith.constant 0 : i32
    return %c0_i32, %c0_i32_0 : i32, i32
  }
  func.func @transform_5(%arg0: i32) -> (i32, i32) {
    %c0_i32 = arith.constant 0 : i32
    %c0_i32_0 = arith.constant 0 : i32
    %c0_i32_1 = arith.constant 0 : i32
    return %c0_i32, %c0_i32_0 : i32, i32
  }
  func.func @transform_6(%arg0: i32) -> (i32, i32) {
    %c0_i32 = arith.constant 0 : i32
    %c0_i32_0 = arith.constant 0 : i32
    %c0_i32_1 = arith.constant 0 : i32
    return %c0_i32, %c0_i32_0 : i32, i32
  }
  func.func @transform_7(%arg0: i32) -> (i32, i32) {
    %c0_i32 = arith.constant 0 : i32
    %c0_i32_0 = arith.constant 0 : i32
    return %arg0, %c0_i32 : i32, i32
  }
}

module attributes {stable_mosaic.version = 11 : i64} {
  func.func @_attn_block_kernel(%arg0: i32, %arg1: i32, %arg2: memref<1x8x32xf32, #tpu.memory_space<vmem>>, %arg3: memref<1x8x32xf32, #tpu.memory_space<vmem>>, %arg4: memref<1x8x8xf32, #tpu.memory_space<vmem>>, %arg5: memref<1x32xf32, #tpu.memory_space<vmem>>, %arg6: memref<1x32xf32, #tpu.memory_space<vmem>>, %arg7: memref<32x32xbf16, #tpu.memory_space<vmem>>, %arg8: memref<1x32xf32, #tpu.memory_space<vmem>>, %arg9: memref<32x32xbf16, #tpu.memory_space<vmem>>, %arg10: memref<1x32xf32, #tpu.memory_space<vmem>>, %arg11: memref<32x32xbf16, #tpu.memory_space<vmem>>, %arg12: memref<1x32xf32, #tpu.memory_space<vmem>>, %arg13: memref<32x32xbf16, #tpu.memory_space<vmem>>, %arg14: memref<1x32xf32, #tpu.memory_space<vmem>>, %arg15: memref<1x8x32xf32, #tpu.memory_space<vmem>>) attributes {dimension_semantics = [#tpu.dimension_semantics<parallel>, #tpu.dimension_semantics<parallel>], iteration_bounds = array<i64: 2, 1>, scalar_prefetch = 0 : i64, scratch_operands = 0 : i64, tpu.core_type = #tpu.core_type<tc>, window_params = [{transform_indices = @transform_0, window_bounds = array<i64: 1, 8, 32>}, {transform_indices = @transform_1, window_bounds = array<i64: 1, 8, 32>}, {pipeline_mode = #tpu.pipeline_mode<synchronous>, transform_indices = @transform_2, window_bounds = array<i64: 1, 8, 8>}, {pipeline_mode = #tpu.pipeline_mode<synchronous>, transform_indices = @transform_3, window_bounds = array<i64: 1, 32>}, {pipeline_mode = #tpu.pipeline_mode<synchronous>, transform_indices = @transform_4, window_bounds = array<i64: 1, 32>}, {pipeline_mode = #tpu.pipeline_mode<synchronous>, transform_indices = @transform_5, window_bounds = array<i64: 32, 32>}, {pipeline_mode = #tpu.pipeline_mode<synchronous>, transform_indices = @transform_6, window_bounds = array<i64: 1, 32>}, {pipeline_mode = #tpu.pipeline_mode<synchronous>, transform_indices = @transform_7, window_bounds = array<i64: 32, 32>}, {pipeline_mode = #tpu.pipeline_mode<synchronous>, transform_indices = @transform_8, window_bounds = array<i64: 1, 32>}, {pipeline_mode = #tpu.pipeline_mode<synchronous>, transform_indices = @transform_9, window_bounds = array<i64: 32, 32>}, {pipeline_mode = #tpu.pipeline_mode<synchronous>, transform_indices = @transform_10, window_bounds = array<i64: 1, 32>}, {pipeline_mode = #tpu.pipeline_mode<synchronous>, transform_indices = @transform_11, window_bounds = array<i64: 32, 32>}, {pipeline_mode = #tpu.pipeline_mode<synchronous>, transform_indices = @transform_12, window_bounds = array<i64: 1, 32>}, {transform_indices = @transform_13, window_bounds = array<i64: 1, 8, 32>}]} {
    %c0 = arith.constant 0 : index
    %c0_0 = arith.constant 0 : index
    %c0_1 = arith.constant 0 : index
    %0 = vector.load %arg2[%c0, %c0_0, %c0_1] : memref<1x8x32xf32, #tpu.memory_space<vmem>>, vector<1x8x32xf32>
    %1 = vector.shape_cast %0 : vector<1x8x32xf32> to vector<8x32xf32>
    %c0_2 = arith.constant 0 : index
    %c0_3 = arith.constant 0 : index
    %2 = vector.load %arg5[%c0_2, %c0_3] : memref<1x32xf32, #tpu.memory_space<vmem>>, vector<1x32xf32>
    %c0_4 = arith.constant 0 : index
    %c0_5 = arith.constant 0 : index
    %3 = vector.load %arg6[%c0_4, %c0_5] : memref<1x32xf32, #tpu.memory_space<vmem>>, vector<1x32xf32>
    %cst = arith.constant dense<0.000000e+00> : vector<8xf32>
    %4 = vector.multi_reduction <add>, %1, %cst [1] : vector<8x32xf32> to vector<8xf32>
    %5 = vector.shape_cast %4 : vector<8xf32> to vector<8x1xf32>
    %cst_6 = arith.constant 3.200000e+01 : f32
    %6 = vector.broadcast %cst_6 : f32 to vector<8x1xf32>
    %7 = arith.divf %5, %6 : vector<8x1xf32>
    %8 = vector.broadcast %7 : vector<8x1xf32> to vector<8x32xf32>
    %9 = arith.subf %1, %8 : vector<8x32xf32>
    %10 = arith.mulf %9, %9 : vector<8x32xf32>
    %cst_7 = arith.constant dense<0.000000e+00> : vector<8xf32>
    %11 = vector.multi_reduction <add>, %10, %cst_7 [1] : vector<8x32xf32> to vector<8xf32>
    %12 = vector.shape_cast %11 : vector<8xf32> to vector<8x1xf32>
    %cst_8 = arith.constant 3.200000e+01 : f32
    %13 = vector.broadcast %cst_8 : f32 to vector<8x1xf32>
    %14 = arith.divf %12, %13 : vector<8x1xf32>
    %15 = vector.broadcast %7 : vector<8x1xf32> to vector<8x32xf32>
    %16 = arith.subf %1, %15 : vector<8x32xf32>
    %cst_9 = arith.constant 9.99999974E-6 : f32
    %17 = vector.broadcast %cst_9 : f32 to vector<8x1xf32>
    %18 = arith.addf %14, %17 : vector<8x1xf32>
    %19 = math.rsqrt %18 : vector<8x1xf32>
    %20 = vector.broadcast %19 : vector<8x1xf32> to vector<8x32xf32>
    %21 = arith.mulf %16, %20 : vector<8x32xf32>
    %22 = vector.broadcast %2 : vector<1x32xf32> to vector<8x32xf32>
    %23 = arith.mulf %21, %22 : vector<8x32xf32>
    %24 = vector.broadcast %3 : vector<1x32xf32> to vector<8x32xf32>
    %25 = arith.addf %23, %24 : vector<8x32xf32>
    %c0_10 = arith.constant 0 : index
    %c0_11 = arith.constant 0 : index
    %c0_12 = arith.constant 0 : index
    %26 = vector.load %arg3[%c0_10, %c0_11, %c0_12] : memref<1x8x32xf32, #tpu.memory_space<vmem>>, vector<1x8x32xf32>
    %27 = vector.shape_cast %26 : vector<1x8x32xf32> to vector<8x32xf32>
    %28 = arith.truncf %25 : vector<8x32xf32> to vector<8x32xbf16>
    %29 = arith.truncf %27 : vector<8x32xf32> to vector<8x32xbf16>
    %c0_13 = arith.constant 0 : index
    %c0_14 = arith.constant 0 : index
    %30 = vector.load %arg7[%c0_13, %c0_14] : memref<32x32xbf16, #tpu.memory_space<vmem>>, vector<32x32xbf16>
    %cst_15 = arith.constant dense<0.000000e+00> : vector<8x32xf32>
    %31 = tpu.matmul %28, %30, %cst_15 {dimension_numbers = #tpu.dot_dimension_numbers<[1], [0], [0], [1], [0, 0, 1, 1], [], []>} : vector<8x32xbf16>, vector<32x32xbf16>, vector<8x32xf32> -> vector<8x32xf32>
    %c0_16 = arith.constant 0 : index
    %c0_17 = arith.constant 0 : index
    %32 = vector.load %arg8[%c0_16, %c0_17] : memref<1x32xf32, #tpu.memory_space<vmem>>, vector<1x32xf32>
    %33 = vector.broadcast %32 : vector<1x32xf32> to vector<8x32xf32>
    %34 = arith.addf %31, %33 : vector<8x32xf32>
    %c0_18 = arith.constant 0 : index
    %c0_19 = arith.constant 0 : index
    %35 = vector.load %arg9[%c0_18, %c0_19] : memref<32x32xbf16, #tpu.memory_space<vmem>>, vector<32x32xbf16>
    %cst_20 = arith.constant dense<0.000000e+00> : vector<8x32xf32>
    %36 = tpu.matmul %29, %35, %cst_20 {dimension_numbers = #tpu.dot_dimension_numbers<[1], [0], [0], [1], [0, 0, 1, 1], [], []>} : vector<8x32xbf16>, vector<32x32xbf16>, vector<8x32xf32> -> vector<8x32xf32>
    %c0_21 = arith.constant 0 : index
    %c0_22 = arith.constant 0 : index
    %37 = vector.load %arg10[%c0_21, %c0_22] : memref<1x32xf32, #tpu.memory_space<vmem>>, vector<1x32xf32>
    %38 = vector.broadcast %37 : vector<1x32xf32> to vector<8x32xf32>
    %39 = arith.addf %36, %38 : vector<8x32xf32>
    %c0_23 = arith.constant 0 : index
    %c0_24 = arith.constant 0 : index
    %40 = vector.load %arg11[%c0_23, %c0_24] : memref<32x32xbf16, #tpu.memory_space<vmem>>, vector<32x32xbf16>
    %cst_25 = arith.constant dense<0.000000e+00> : vector<8x32xf32>
    %41 = tpu.matmul %29, %40, %cst_25 {dimension_numbers = #tpu.dot_dimension_numbers<[1], [0], [0], [1], [0, 0, 1, 1], [], []>} : vector<8x32xbf16>, vector<32x32xbf16>, vector<8x32xf32> -> vector<8x32xf32>
    %c0_26 = arith.constant 0 : index
    %c0_27 = arith.constant 0 : index
    %42 = vector.load %arg12[%c0_26, %c0_27] : memref<1x32xf32, #tpu.memory_space<vmem>>, vector<1x32xf32>
    %43 = vector.broadcast %42 : vector<1x32xf32> to vector<8x32xf32>
    %44 = arith.addf %41, %43 : vector<8x32xf32>
    %45 = arith.truncf %34 : vector<8x32xf32> to vector<8x32xbf16>
    %46 = arith.truncf %39 : vector<8x32xf32> to vector<8x32xbf16>
    %47 = arith.truncf %44 : vector<8x32xf32> to vector<8x32xbf16>
    %c0_28 = arith.constant 0 : index
    %c0_29 = arith.constant 0 : index
    %c0_30 = arith.constant 0 : index
    %48 = vector.load %arg4[%c0_28, %c0_29, %c0_30] : memref<1x8x8xf32, #tpu.memory_space<vmem>>, vector<1x8x8xf32>
    %49 = vector.shape_cast %48 : vector<1x8x8xf32> to vector<8x8xf32>
    %50 = vector.extract_strided_slice %45 {offsets = [0, 0], sizes = [8, 8], strides = [1, 1]} : vector<8x32xbf16> to vector<8x8xbf16>
    %51 = vector.extract_strided_slice %46 {offsets = [0, 0], sizes = [8, 8], strides = [1, 1]} : vector<8x32xbf16> to vector<8x8xbf16>
    %cst_31 = arith.constant dense<0.000000e+00> : vector<8x8xf32>
    %52 = tpu.matmul %50, %51, %cst_31 {dimension_numbers = #tpu.dot_dimension_numbers<[1], [1], [0], [0], [0, 0, 1, 0], [], []>} : vector<8x8xbf16>, vector<8x8xbf16>, vector<8x8xf32> -> vector<8x8xf32>
    %cst_32 = arith.constant 0.353553385 : f32
    %53 = vector.broadcast %cst_32 : f32 to vector<8x8xf32>
    %54 = arith.mulf %52, %53 : vector<8x8xf32>
    %55 = arith.addf %54, %49 : vector<8x8xf32>
    %cst_33 = arith.constant dense<0xFF800000> : vector<8xf32>
    %56 = vector.multi_reduction <maximumf>, %55, %cst_33 [1] : vector<8x8xf32> to vector<8xf32>
    %57 = vector.shape_cast %56 : vector<8xf32> to vector<8x1xf32>
    %58 = vector.broadcast %57 : vector<8x1xf32> to vector<8x8xf32>
    %59 = arith.subf %55, %58 : vector<8x8xf32>
    %60 = math.exp %59 : vector<8x8xf32>
    %cst_34 = arith.constant dense<0.000000e+00> : vector<8xf32>
    %61 = vector.multi_reduction <add>, %60, %cst_34 [1] : vector<8x8xf32> to vector<8xf32>
    %62 = vector.shape_cast %61 : vector<8xf32> to vector<8x1xf32>
    %63 = vector.broadcast %62 : vector<8x1xf32> to vector<8x8xf32>
    %64 = arith.divf %60, %63 : vector<8x8xf32>
    %65 = arith.truncf %64 : vector<8x8xf32> to vector<8x8xbf16>
    %66 = vector.extract_strided_slice %47 {offsets = [0, 0], sizes = [8, 8], strides = [1, 1]} : vector<8x32xbf16> to vector<8x8xbf16>
    %cst_35 = arith.constant dense<0.000000e+00> : vector<8x8xf32>
    %67 = tpu.matmul %65, %66, %cst_35 {dimension_numbers = #tpu.dot_dimension_numbers<[1], [0], [0], [1], [0, 0, 1, 1], [], []>} : vector<8x8xbf16>, vector<8x8xbf16>, vector<8x8xf32> -> vector<8x8xf32>
    %68 = vector.extract_strided_slice %45 {offsets = [0, 8], sizes = [8, 8], strides = [1, 1]} : vector<8x32xbf16> to vector<8x8xbf16>
    %69 = vector.extract_strided_slice %46 {offsets = [0, 8], sizes = [8, 8], strides = [1, 1]} : vector<8x32xbf16> to vector<8x8xbf16>
    %cst_36 = arith.constant dense<0.000000e+00> : vector<8x8xf32>
    %70 = tpu.matmul %68, %69, %cst_36 {dimension_numbers = #tpu.dot_dimension_numbers<[1], [1], [0], [0], [0, 0, 1, 0], [], []>} : vector<8x8xbf16>, vector<8x8xbf16>, vector<8x8xf32> -> vector<8x8xf32>
    %cst_37 = arith.constant 0.353553385 : f32
    %71 = vector.broadcast %cst_37 : f32 to vector<8x8xf32>
    %72 = arith.mulf %70, %71 : vector<8x8xf32>
    %73 = arith.addf %72, %49 : vector<8x8xf32>
    %cst_38 = arith.constant dense<0xFF800000> : vector<8xf32>
    %74 = vector.multi_reduction <maximumf>, %73, %cst_38 [1] : vector<8x8xf32> to vector<8xf32>
    %75 = vector.shape_cast %74 : vector<8xf32> to vector<8x1xf32>
    %76 = vector.broadcast %75 : vector<8x1xf32> to vector<8x8xf32>
    %77 = arith.subf %73, %76 : vector<8x8xf32>
    %78 = math.exp %77 : vector<8x8xf32>
    %cst_39 = arith.constant dense<0.000000e+00> : vector<8xf32>
    %79 = vector.multi_reduction <add>, %78, %cst_39 [1] : vector<8x8xf32> to vector<8xf32>
    %80 = vector.shape_cast %79 : vector<8xf32> to vector<8x1xf32>
    %81 = vector.broadcast %80 : vector<8x1xf32> to vector<8x8xf32>
    %82 = arith.divf %78, %81 : vector<8x8xf32>
    %83 = arith.truncf %82 : vector<8x8xf32> to vector<8x8xbf16>
    %84 = vector.extract_strided_slice %47 {offsets = [0, 8], sizes = [8, 8], strides = [1, 1]} : vector<8x32xbf16> to vector<8x8xbf16>
    %cst_40 = arith.constant dense<0.000000e+00> : vector<8x8xf32>
    %85 = tpu.matmul %83, %84, %cst_40 {dimension_numbers = #tpu.dot_dimension_numbers<[1], [0], [0], [1], [0, 0, 1, 1], [], []>} : vector<8x8xbf16>, vector<8x8xbf16>, vector<8x8xf32> -> vector<8x8xf32>
    %86 = vector.extract_strided_slice %45 {offsets = [0, 16], sizes = [8, 8], strides = [1, 1]} : vector<8x32xbf16> to vector<8x8xbf16>
    %87 = vector.extract_strided_slice %46 {offsets = [0, 16], sizes = [8, 8], strides = [1, 1]} : vector<8x32xbf16> to vector<8x8xbf16>
    %cst_41 = arith.constant dense<0.000000e+00> : vector<8x8xf32>
    %88 = tpu.matmul %86, %87, %cst_41 {dimension_numbers = #tpu.dot_dimension_numbers<[1], [1], [0], [0], [0, 0, 1, 0], [], []>} : vector<8x8xbf16>, vector<8x8xbf16>, vector<8x8xf32> -> vector<8x8xf32>
    %cst_42 = arith.constant 0.353553385 : f32
    %89 = vector.broadcast %cst_42 : f32 to vector<8x8xf32>
    %90 = arith.mulf %88, %89 : vector<8x8xf32>
    %91 = arith.addf %90, %49 : vector<8x8xf32>
    %cst_43 = arith.constant dense<0xFF800000> : vector<8xf32>
    %92 = vector.multi_reduction <maximumf>, %91, %cst_43 [1] : vector<8x8xf32> to vector<8xf32>
    %93 = vector.shape_cast %92 : vector<8xf32> to vector<8x1xf32>
    %94 = vector.broadcast %93 : vector<8x1xf32> to vector<8x8xf32>
    %95 = arith.subf %91, %94 : vector<8x8xf32>
    %96 = math.exp %95 : vector<8x8xf32>
    %cst_44 = arith.constant dense<0.000000e+00> : vector<8xf32>
    %97 = vector.multi_reduction <add>, %96, %cst_44 [1] : vector<8x8xf32> to vector<8xf32>
    %98 = vector.shape_cast %97 : vector<8xf32> to vector<8x1xf32>
    %99 = vector.broadcast %98 : vector<8x1xf32> to vector<8x8xf32>
    %100 = arith.divf %96, %99 : vector<8x8xf32>
    %101 = arith.truncf %100 : vector<8x8xf32> to vector<8x8xbf16>
    %102 = vector.extract_strided_slice %47 {offsets = [0, 16], sizes = [8, 8], strides = [1, 1]} : vector<8x32xbf16> to vector<8x8xbf16>
    %cst_45 = arith.constant dense<0.000000e+00> : vector<8x8xf32>
    %103 = tpu.matmul %101, %102, %cst_45 {dimension_numbers = #tpu.dot_dimension_numbers<[1], [0], [0], [1], [0, 0, 1, 1], [], []>} : vector<8x8xbf16>, vector<8x8xbf16>, vector<8x8xf32> -> vector<8x8xf32>
    %104 = vector.extract_strided_slice %45 {offsets = [0, 24], sizes = [8, 8], strides = [1, 1]} : vector<8x32xbf16> to vector<8x8xbf16>
    %105 = vector.extract_strided_slice %46 {offsets = [0, 24], sizes = [8, 8], strides = [1, 1]} : vector<8x32xbf16> to vector<8x8xbf16>
    %cst_46 = arith.constant dense<0.000000e+00> : vector<8x8xf32>
    %106 = tpu.matmul %104, %105, %cst_46 {dimension_numbers = #tpu.dot_dimension_numbers<[1], [1], [0], [0], [0, 0, 1, 0], [], []>} : vector<8x8xbf16>, vector<8x8xbf16>, vector<8x8xf32> -> vector<8x8xf32>
    %cst_47 = arith.constant 0.353553385 : f32
    %107 = vector.broadcast %cst_47 : f32 to vector<8x8xf32>
    %108 = arith.mulf %106, %107 : vector<8x8xf32>
    %109 = arith.addf %108, %49 : vector<8x8xf32>
    %cst_48 = arith.constant dense<0xFF800000> : vector<8xf32>
    %110 = vector.multi_reduction <maximumf>, %109, %cst_48 [1] : vector<8x8xf32> to vector<8xf32>
    %111 = vector.shape_cast %110 : vector<8xf32> to vector<8x1xf32>
    %112 = vector.broadcast %111 : vector<8x1xf32> to vector<8x8xf32>
    %113 = arith.subf %109, %112 : vector<8x8xf32>
    %114 = math.exp %113 : vector<8x8xf32>
    %cst_49 = arith.constant dense<0.000000e+00> : vector<8xf32>
    %115 = vector.multi_reduction <add>, %114, %cst_49 [1] : vector<8x8xf32> to vector<8xf32>
    %116 = vector.shape_cast %115 : vector<8xf32> to vector<8x1xf32>
    %117 = vector.broadcast %116 : vector<8x1xf32> to vector<8x8xf32>
    %118 = arith.divf %114, %117 : vector<8x8xf32>
    %119 = arith.truncf %118 : vector<8x8xf32> to vector<8x8xbf16>
    %120 = vector.extract_strided_slice %47 {offsets = [0, 24], sizes = [8, 8], strides = [1, 1]} : vector<8x32xbf16> to vector<8x8xbf16>
    %cst_50 = arith.constant dense<0.000000e+00> : vector<8x8xf32>
    %121 = tpu.matmul %119, %120, %cst_50 {dimension_numbers = #tpu.dot_dimension_numbers<[1], [0], [0], [1], [0, 0, 1, 1], [], []>} : vector<8x8xbf16>, vector<8x8xbf16>, vector<8x8xf32> -> vector<8x8xf32>
    %122 = tpu.concatenate %67, %85, %103, %121 in 1 : vector<8x8xf32>, vector<8x8xf32>, vector<8x8xf32>, vector<8x8xf32> -> vector<8x32xf32>
    %123 = arith.truncf %122 : vector<8x32xf32> to vector<8x32xbf16>
    %c0_51 = arith.constant 0 : index
    %c0_52 = arith.constant 0 : index
    %124 = vector.load %arg13[%c0_51, %c0_52] : memref<32x32xbf16, #tpu.memory_space<vmem>>, vector<32x32xbf16>
    %cst_53 = arith.constant dense<0.000000e+00> : vector<8x32xf32>
    %125 = tpu.matmul %123, %124, %cst_53 {dimension_numbers = #tpu.dot_dimension_numbers<[1], [0], [0], [1], [0, 0, 1, 1], [], []>} : vector<8x32xbf16>, vector<32x32xbf16>, vector<8x32xf32> -> vector<8x32xf32>
    %126 = arith.addf %1, %125 : vector<8x32xf32>
    %c0_54 = arith.constant 0 : index
    %c0_55 = arith.constant 0 : index
    %127 = vector.load %arg14[%c0_54, %c0_55] : memref<1x32xf32, #tpu.memory_space<vmem>>, vector<1x32xf32>
    %128 = vector.broadcast %127 : vector<1x32xf32> to vector<8x32xf32>
    %129 = arith.addf %126, %128 : vector<8x32xf32>
    %c0_56 = arith.constant 0 : index
    %c0_57 = arith.constant 0 : index
    %c0_58 = arith.constant 0 : index
    %130 = vector.load %arg15[%c0_56, %c0_57, %c0_58] : memref<1x8x32xf32, #tpu.memory_space<vmem>>, vector<1x8x32xf32>
    %131 = vector.shape_cast %130 : vector<1x8x32xf32> to vector<8x32xf32>
    %132 = vector.shape_cast %129 : vector<8x32xf32> to vector<1x8x32xf32>
    tpu.vector_store %arg15[%c0_56, %c0_57, %c0_58], %132 {strides = array<i32>} : memref<1x8x32xf32, #tpu.memory_space<vmem>>, vector<1x8x32xf32>,
    return
  }
  func.func @transform_0(%arg0: i32, %arg1: i32) -> (i32, i32, i32) {
    %c0_i32 = arith.constant 0 : i32
    %c0_i32_0 = arith.constant 0 : i32
    return %arg0, %arg1, %c0_i32 : i32, i32, i32
  }
  func.func @transform_1(%arg0: i32, %arg1: i32) -> (i32, i32, i32) {
    %c0_i32 = arith.constant 0 : i32
    %c0_i32_0 = arith.constant 0 : i32
    %c0_i32_1 = arith.constant 0 : i32
    return %arg0, %c0_i32, %c0_i32_0 : i32, i32, i32
  }
  func.func @transform_2(%arg0: i32, %arg1: i32) -> (i32, i32, i32) {
    %c0_i32 = arith.constant 0 : i32
    %c0_i32_0 = arith.constant 0 : i32
    %c0_i32_1 = arith.constant 0 : i32
    %c0_i32_2 = arith.constant 0 : i32
    return %c0_i32, %c0_i32_0, %c0_i32_1 : i32, i32, i32
  }
  func.func @transform_3(%arg0: i32, %arg1: i32) -> (i32, i32) {
    %c0_i32 = arith.constant 0 : i32
    %c0_i32_0 = arith.constant 0 : i32
    %c0_i32_1 = arith.constant 0 : i32
    return %c0_i32, %c0_i32_0 : i32, i32
  }
  func.func @transform_4(%arg0: i32, %arg1: i32) -> (i32, i32) {
    %c0_i32 = arith.constant 0 : i32
    %c0_i32_0 = arith.constant 0 : i32
    %c0_i32_1 = arith.constant 0 : i32
    return %c0_i32, %c0_i32_0 : i32, i32
  }
  func.func @transform_5(%arg0: i32, %arg1: i32) -> (i32, i32) {
    %c0_i32 = arith.constant 0 : i32
    %c0_i32_0 = arith.constant 0 : i32
    %c0_i32_1 = arith.constant 0 : i32
    return %c0_i32, %c0_i32_0 : i32, i32
  }
  func.func @transform_6(%arg0: i32, %arg1: i32) -> (i32, i32) {
    %c0_i32 = arith.constant 0 : i32
    %c0_i32_0 = arith.constant 0 : i32
    %c0_i32_1 = arith.constant 0 : i32
    return %c0_i32, %c0_i32_0 : i32, i32
  }
  func.func @transform_7(%arg0: i32, %arg1: i32) -> (i32, i32) {
    %c0_i32 = arith.constant 0 : i32
    %c0_i32_0 = arith.constant 0 : i32
    %c0_i32_1 = arith.constant 0 : i32
    return %c0_i32, %c0_i32_0 : i32, i32
  }
  func.func @transform_8(%arg0: i32, %arg1: i32) -> (i32, i32) {
    %c0_i32 = arith.constant 0 : i32
    %c0_i32_0 = arith.constant 0 : i32
    %c0_i32_1 = arith.constant 0 : i32
    return %c0_i32, %c0_i32_0 : i32, i32
  }
  func.func @transform_9(%arg0: i32, %arg1: i32) -> (i32, i32) {
    %c0_i32 = arith.constant 0 : i32
    %c0_i32_0 = arith.constant 0 : i32
    %c0_i32_1 = arith.constant 0 : i32
    return %c0_i32, %c0_i32_0 : i32, i32
  }
  func.func @transform_10(%arg0: i32, %arg1: i32) -> (i32, i32) {
    %c0_i32 = arith.constant 0 : i32
    %c0_i32_0 = arith.constant 0 : i32
    %c0_i32_1 = arith.constant 0 : i32
    return %c0_i32, %c0_i32_0 : i32, i32
  }
  func.func @transform_11(%arg0: i32, %arg1: i32) -> (i32, i32) {
    %c0_i32 = arith.constant 0 : i32
    %c0_i32_0 = arith.constant 0 : i32
    %c0_i32_1 = arith.constant 0 : i32
    return %c0_i32, %c0_i32_0 : i32, i32
  }
  func.func @transform_12(%arg0: i32, %arg1: i32) -> (i32, i32) {
    %c0_i32 = arith.constant 0 : i32
    %c0_i32_0 = arith.constant 0 : i32
    %c0_i32_1 = arith.constant 0 : i32
    return %c0_i32, %c0_i32_0 : i32, i32
  }
  func.func @transform_13(%arg0: i32, %arg1: i32) -> (i32, i32, i32) {
    %c0_i32 = arith.constant 0 : i32
    %c0_i32_0 = arith.constant 0 : i32
    return %arg0, %arg1, %c0_i32 : i32, i32, i32
  }
}

module attributes {stable_mosaic.version = 11 : i64} {
  func.func @_layernorm_kernel(%arg0: i32, %arg1: memref<16x32xf32, #tpu.memory_space<vmem>>, %arg2: memref<1x32xf32, #tpu.memory_space<vmem>>, %arg3: memref<1x32xf32, #tpu.memory_space<vmem>>, %arg4: memref<16x32xf32, #tpu.memory_space<vmem>>) attributes {dimension_semantics = [#tpu.dimension_semantics<parallel>], iteration_bounds = array<i64: 1>, scalar_prefetch = 0 : i64, scratch_operands = 0 : i64, tpu.core_type = #tpu.core_type<tc>, window_params = [{transform_indices = @transform_0, window_bounds = array<i64: 16, 32>}, {pipeline_mode = #tpu.pipeline_mode<synchronous>, transform_indices = @transform_1, window_bounds = array<i64: 1, 32>}, {pipeline_mode = #tpu.pipeline_mode<synchronous>, transform_indices = @transform_2, window_bounds = array<i64: 1, 32>}, {transform_indices = @transform_3, window_bounds = array<i64: 16, 32>}]} {
    %c0 = arith.constant 0 : index
    %c0_0 = arith.constant 0 : index
    %0 = vector.load %arg1[%c0, %c0_0] : memref<16x32xf32, #tpu.memory_space<vmem>>, vector<16x32xf32>
    %c0_1 = arith.constant 0 : index
    %c0_2 = arith.constant 0 : index
    %1 = vector.load %arg2[%c0_1, %c0_2] : memref<1x32xf32, #tpu.memory_space<vmem>>, vector<1x32xf32>
    %c0_3 = arith.constant 0 : index
    %c0_4 = arith.constant 0 : index
    %2 = vector.load %arg3[%c0_3, %c0_4] : memref<1x32xf32, #tpu.memory_space<vmem>>, vector<1x32xf32>
    %cst = arith.constant dense<0.000000e+00> : vector<16xf32>
    %3 = vector.multi_reduction <add>, %0, %cst [1] : vector<16x32xf32> to vector<16xf32>
    %4 = vector.shape_cast %3 : vector<16xf32> to vector<16x1xf32>
    %cst_5 = arith.constant 3.200000e+01 : f32
    %5 = vector.broadcast %cst_5 : f32 to vector<16x1xf32>
    %6 = arith.divf %4, %5 : vector<16x1xf32>
    %7 = vector.broadcast %6 : vector<16x1xf32> to vector<16x32xf32>
    %8 = arith.subf %0, %7 : vector<16x32xf32>
    %9 = arith.mulf %8, %8 : vector<16x32xf32>
    %cst_6 = arith.constant dense<0.000000e+00> : vector<16xf32>
    %10 = vector.multi_reduction <add>, %9, %cst_6 [1] : vector<16x32xf32> to vector<16xf32>
    %11 = vector.shape_cast %10 : vector<16xf32> to vector<16x1xf32>
    %cst_7 = arith.constant 3.200000e+01 : f32
    %12 = vector.broadcast %cst_7 : f32 to vector<16x1xf32>
    %13 = arith.divf %11, %12 : vector<16x1xf32>
    %14 = vector.broadcast %6 : vector<16x1xf32> to vector<16x32xf32>
    %15 = arith.subf %0, %14 : vector<16x32xf32>
    %cst_8 = arith.constant 9.99999974E-6 : f32
    %16 = vector.broadcast %cst_8 : f32 to vector<16x1xf32>
    %17 = arith.addf %13, %16 : vector<16x1xf32>
    %18 = math.rsqrt %17 : vector<16x1xf32>
    %19 = vector.broadcast %18 : vector<16x1xf32> to vector<16x32xf32>
    %20 = arith.mulf %15, %19 : vector<16x32xf32>
    %21 = vector.broadcast %1 : vector<1x32xf32> to vector<16x32xf32>
    %22 = arith.mulf %20, %21 : vector<16x32xf32>
    %23 = vector.broadcast %2 : vector<1x32xf32> to vector<16x32xf32>
    %24 = arith.addf %22, %23 : vector<16x32xf32>
    %c0_9 = arith.constant 0 : index
    %c0_10 = arith.constant 0 : index
    %25 = vector.load %arg4[%c0_9, %c0_10] : memref<16x32xf32, #tpu.memory_space<vmem>>, vector<16x32xf32>
    tpu.vector_store %arg4[%c0_9, %c0_10], %24 {strides = array<i32>} : memref<16x32xf32, #tpu.memory_space<vmem>>, vector<16x32xf32>,
    return
  }
  func.func @transform_0(%arg0: i32) -> (i32, i32) {
    %c0_i32 = arith.constant 0 : i32
    %c0_i32_0 = arith.constant 0 : i32
    return %arg0, %c0_i32 : i32, i32
  }
  func.func @transform_1(%arg0: i32) -> (i32, i32) {
    %c0_i32 = arith.constant 0 : i32
    %c0_i32_0 = arith.constant 0 : i32
    %c0_i32_1 = arith.constant 0 : i32
    return %c0_i32, %c0_i32_0 : i32, i32
  }
  func.func @transform_2(%arg0: i32) -> (i32, i32) {
    %c0_i32 = arith.constant 0 : i32
    %c0_i32_0 = arith.constant 0 : i32
    %c0_i32_1 = arith.constant 0 : i32
    return %c0_i32, %c0_i32_0 : i32, i32
  }
  func.func @transform_3(%arg0: i32) -> (i32, i32) {
    %c0_i32 = arith.constant 0 : i32
    %c0_i32_0 = arith.constant 0 : i32
    return %arg0, %c0_i32 : i32, i32
  }
}

</mosaic_0001>

<llo_original>
// kernel: tpu_custom_call.1
$region0: #{tpu_custom_call.1}
  #allocation0 [shape = 'u32[]', space=smem, size = 0x4, offset = 0x4, fixed_abs, tag = 'smem constant byte address 0x4 - core index']
  #allocation1 [shape = 'u32[144,128]{1,0:T(1,128)}', space=vmem, size = 0x12000, scoped, tag = 'internal scratch']
  %s0 = inlined_call_operand.hbm [shape: f32[8,128], index: 0, kind: input, shape index: {}]
  %s1 = inlined_call_operand.hbm [shape: f32[8,128], index: 1, kind: output, shape index: {}]
  %s2 = sld [smem:[#allocation0]]
  $region18: #{tpu_custom_call.1} parent=0
    _
  %s4 = ssub.s32 1, %s2
  %s5 = scalar_select 0, %s4, %s2
  $region1: #{tpu_custom_call.1} parent=0
    #allocation2 [shape = 'u8[4096]{0}', space=vmem, size = 0x1000, scoped, tag = 'input window, operand 0, single buffered']
    #allocation3 [shape = 's32[1]{0}', space=sflag, size = 0x4, scoped, tag = 'scoped memory for tpu_custom_call.1']
    #allocation4 [shape = 's32[1]{0}', space=sflag, size = 0x4, scoped, tag = 'scoped memory for tpu_custom_call.1']
    #allocation5 [shape = 'u8[4096]{0}', space=vmem, size = 0x1000, scoped, tag = 'output window, operand 0, single buffered']
    %6 = vsyncpa [#allocation3], 0
    %7 = vsyncpa [#allocation4], 0
    // Predicated region
    $region2: #{tpu_custom_call.1} parent=1 // pred_check
      _
    $region3: #{tpu_custom_call.1} parent=1 // pred_check_branch
      %9 = sbr.rel (0) target = $region5
    $region4: #{tpu_custom_call.1} parent=1 // pred_region
      %s11 = ssub.s32 128, 128
      %12 = vsyncadd [#allocation3], %s11
      %s14 = sshll.u32 [#allocation2], 4
      %s15 = int_to_ptr.vmem [resolvable:$true] %s14
      %17 = dma.hbm_to_vmem [thread:$0]  %s0, 128, %s15, [#allocation3]
    $region5: #{tpu_custom_call.1} parent=1 // pred_fallthru
      _
    // Predicated region
    $region6: #{tpu_custom_call.1} parent=1 // pred_check
      _
    $region7: #{tpu_custom_call.1} parent=1 // pred_check_branch
      %19 = sbr.rel (0) target = $region9
    $region8: #{tpu_custom_call.1} parent=1 // pred_region
      %20 = dma.done [#allocation3], 128
    $region9: #{tpu_custom_call.1} parent=1 // pred_fallthru
      _
    %v21 = vld [vmem:[#allocation2] sm:$0xff]
    %v22 = vadd.f32 %v21, 1.0
    %23 = vst [vmem:[#allocation5] sm:$0xff] %v22
    // Predicated region
    $region10: #{tpu_custom_call.1} parent=1 // pred_check
      _
    $region11: #{tpu_custom_call.1} parent=1 // pred_check_branch
      %25 = sbr.rel (0) target = $region13
    $region12: #{tpu_custom_call.1} parent=1 // pred_region
      %s27 = ssub.s32 128, 128
      %28 = vsyncadd [#allocation4], %s27
      %s30 = sshll.u32 [#allocation5], 4
      %s31 = int_to_ptr.vmem [resolvable:$true] %s30
      %33 = dma.vmem_to_hbm [thread:$0]  %s31, 128, %s1, [#allocation4]
    $region13: #{tpu_custom_call.1} parent=1 // pred_fallthru
      _
    // Predicated region
    $region14: #{tpu_custom_call.1} parent=1 // pred_check
      _
    $region15: #{tpu_custom_call.1} parent=1 // pred_check_branch
      %35 = sbr.rel (0) target = $region17
    $region16: #{tpu_custom_call.1} parent=1 // pred_region
      %36 = dma.done [#allocation4], 128
    $region17: #{tpu_custom_call.1} parent=1 // pred_fallthru
      _
    %37 = vsyncpa [#allocation3], 1
    %38 = vsyncpa [#allocation4], 1

// kernel: decoder_forward.13
$region0: #{decoder_forward.13}
  #allocation0 [shape = 'u32[]', space=smem, size = 0x4, offset = 0x4, fixed_abs, tag = 'smem constant byte address 0x4 - core index']
  #allocation1 [shape = 'u32[144,128]{1,0:T(1,128)}', space=vmem, size = 0x12000, scoped, tag = 'internal scratch']
  %s0 = inlined_call_operand.vmem [shape: f32[16,32], index: 0, kind: input, shape index: {}]
  %s1 = inlined_call_operand.vmem [shape: f32[1,32], index: 1, kind: input, shape index: {}]
  %s2 = inlined_call_operand.vmem [shape: f32[1,32], index: 2, kind: input, shape index: {}]
  %s3 = inlined_call_operand.vmem [shape: f32[16,32], index: 3, kind: output, shape index: {}]
  %s4 = sld [smem:[#allocation0]]
  $region22: #{decoder_forward.13} parent=0
    _
  %s6 = ssub.s32 1, %s4
  %s7 = scalar_select 0, %s6, %s4
  // Predicated region
  $region2: #{decoder_forward.13} parent=0 // pred_check
    _
  $region3: #{decoder_forward.13} parent=0 // pred_check_branch
    %9 = sbr.rel (0) target = $region5
  $region4: #{decoder_forward.13} parent=0 // pred_region
    _
  $region5: #{decoder_forward.13} parent=0 // pred_fallthru
    _
  // Predicated region
  $region6: #{decoder_forward.13} parent=0 // pred_check
    _
  $region7: #{decoder_forward.13} parent=0 // pred_check_branch
    %11 = sbr.rel (0) target = $region9
  $region8: #{decoder_forward.13} parent=0 // pred_region
    _
  $region9: #{decoder_forward.13} parent=0 // pred_fallthru
    _
  // Predicated region
  $region10: #{decoder_forward.13} parent=0 // pred_check
    _
  $region11: #{decoder_forward.13} parent=0 // pred_check_branch
    %13 = sbr.rel (0) target = $region13
  $region12: #{decoder_forward.13} parent=0 // pred_region
    _
  $region13: #{decoder_forward.13} parent=0 // pred_fallthru
    _
  %v14 = vld [vmem:[%s0] sm:$0xff]
  %v15 = vld [vmem:[%s0 + $0x8] sm:$0xff]
  %v16 = vld [vmem:[%s1] sm:$0x1]
  %v17 = vld [vmem:[%s2] sm:$0x1]
  %vm18 = vcmask 261120
  %v19 = vsel %vm18, %v14, 0.0
  %20 = vadd.xlane.f32.xlu0 %v19
  %v21 = vpop.xlane.xlu0 %20
  %v22 = vsel %vm18, %v15, 0.0
  %23 = vadd.xlane.f32.xlu0 %v22
  %v24 = vpop.xlane.xlu0 %23
  %v25 = vrcp.pop 32.0
  %v26 = vmul.f32 %v21, %v25
  %v27 = vmul.f32 %v24, %v25
  %v28 = vsub.f32 %v14, %v26
  %v29 = vsub.f32 %v15, %v27
  %v30 = vmul.f32 %v28, %v28
  %v31 = vmul.f32 %v29, %v29
  %v32 = vsel %vm18, %v30, 0.0
  %33 = vadd.xlane.f32.xlu0 %v32
  %v34 = vpop.xlane.xlu0 %33
  %v35 = vsel %vm18, %v31, 0.0
  %36 = vadd.xlane.f32.xlu0 %v35
  %v37 = vpop.xlane.xlu0 %36
  %v38 = vmul.f32 %v34, %v25
  %v39 = vmul.f32 %v37, %v25
  %v40 = vadd.f32 %v38, 1e-05
  %v41 = vadd.f32 %v39, 1e-05
  %v42 = vrsqrt.pop %v40
  %v43 = vrsqrt.pop %v41
  %v44 = vmul.f32 %v28, %v42
  %v45 = vmul.f32 %v29, %v43
  %v47 = vlaneseq
  %v48 = vshrl.u32 %v47, 7
  %v49 = vsub.s32 0, %v48
  %v50 = vrot.slane %v16, %v49
  %v52 = vmul.f32 %v44, %v50
  %v53 = vmul.f32 %v45, %v50
  %v55 = vlaneseq
  %v56 = vshrl.u32 %v55, 7
  %v57 = vsub.s32 0, %v56
  %v58 = vrot.slane %v17, %v57
  %v60 = vadd.f32 %v52, %v58
  %v61 = vadd.f32 %v53, %v58
  %62 = vst.msk [vmem:[%s3] sm:$0xff] %vm18, %v60
  %63 = vst.msk [vmem:[%s3 + $0x8] sm:$0xff] %vm18, %v61
  // Predicated region
  $region14: #{decoder_forward.13} parent=0 // pred_check
    _
  $region15: #{decoder_forward.13} parent=0 // pred_check_branch
    %65 = sbr.rel (0) target = $region17
  $region16: #{decoder_forward.13} parent=0 // pred_region
    _
  $region17: #{decoder_forward.13} parent=0 // pred_fallthru
    _
  // Predicated region
  $region18: #{decoder_forward.13} parent=0 // pred_check
    _
  $region19: #{decoder_forward.13} parent=0 // pred_check_branch
    %67 = sbr.rel (0) target = $region21
  $region20: #{decoder_forward.13} parent=0 // pred_region
    _
  $region21: #{decoder_forward.13} parent=0 // pred_fallthru
    _

// kernel: decoder_forward.9
$region0: #{decoder_forward.9}
  #allocation0 [shape = 'u32[]', space=smem, size = 0x4, offset = 0x4, fixed_abs, tag = 'smem constant byte address 0x4 - core index']
  #allocation1 [shape = 'u32[144,128]{1,0:T(1,128)}', space=vmem, size = 0x12000, scoped, tag = 'internal scratch']
  %s0 = inlined_call_operand.vmem [shape: f32[16,32], index: 0, kind: input, shape index: {}]
  %s1 = inlined_call_operand.vmem [shape: f32[1,32], index: 1, kind: input, shape index: {}]
  %s2 = inlined_call_operand.vmem [shape: f32[1,32], index: 2, kind: input, shape index: {}]
  %s3 = inlined_call_operand.vmem [shape: bf16[32,64], index: 3, kind: input, shape index: {}]
  %s4 = inlined_call_operand.vmem [shape: f32[1,64], index: 4, kind: input, shape index: {}]
  %s5 = inlined_call_operand.vmem [shape: bf16[64,32], index: 5, kind: input, shape index: {}]
  %s6 = inlined_call_operand.vmem [shape: f32[1,32], index: 6, kind: input, shape index: {}]
  %s7 = inlined_call_operand.vmem [shape: f32[16,32], index: 7, kind: output, shape index: {}]
  %s8 = sld [smem:[#allocation0]]
  $region38: #{decoder_forward.9} parent=0
    _
  %s10 = ssub.s32 1, %s8
  %s11 = scalar_select 0, %s10, %s8
  // Predicated region
  $region2: #{decoder_forward.9} parent=0 // pred_check
    _
  $region3: #{decoder_forward.9} parent=0 // pred_check_branch
    %13 = sbr.rel (0) target = $region5
  $region4: #{decoder_forward.9} parent=0 // pred_region
    _
  $region5: #{decoder_forward.9} parent=0 // pred_fallthru
    _
  // Predicated region
  $region6: #{decoder_forward.9} parent=0 // pred_check
    _
  $region7: #{decoder_forward.9} parent=0 // pred_check_branch
    %15 = sbr.rel (0) target = $region9
  $region8: #{decoder_forward.9} parent=0 // pred_region
    _
  $region9: #{decoder_forward.9} parent=0 // pred_fallthru
    _
  // Predicated region
  $region10: #{decoder_forward.9} parent=0 // pred_check
    _
  $region11: #{decoder_forward.9} parent=0 // pred_check_branch
    %17 = sbr.rel (0) target = $region13
  $region12: #{decoder_forward.9} parent=0 // pred_region
    _
  $region13: #{decoder_forward.9} parent=0 // pred_fallthru
    _
  // Predicated region
  $region14: #{decoder_forward.9} parent=0 // pred_check
    _
  $region15: #{decoder_forward.9} parent=0 // pred_check_branch
    %19 = sbr.rel (0) target = $region17
  $region16: #{decoder_forward.9} parent=0 // pred_region
    _
  $region17: #{decoder_forward.9} parent=0 // pred_fallthru
    _
  // Predicated region
  $region18: #{decoder_forward.9} parent=0 // pred_check
    _
  $region19: #{decoder_forward.9} parent=0 // pred_check_branch
    %21 = sbr.rel (0) target = $region21
  $region20: #{decoder_forward.9} parent=0 // pred_region
    _
  $region21: #{decoder_forward.9} parent=0 // pred_fallthru
    _
  // Predicated region
  $region22: #{decoder_forward.9} parent=0 // pred_check
    _
  $region23: #{decoder_forward.9} parent=0 // pred_check_branch
    %23 = sbr.rel (0) target = $region25
  $region24: #{decoder_forward.9} parent=0 // pred_region
    _
  $region25: #{decoder_forward.9} parent=0 // pred_fallthru
    _
  // Predicated region
  $region26: #{decoder_forward.9} parent=0 // pred_check
    _
  $region27: #{decoder_forward.9} parent=0 // pred_check_branch
    %25 = sbr.rel (0) target = $region29
  $region28: #{decoder_forward.9} parent=0 // pred_region
    _
  $region29: #{decoder_forward.9} parent=0 // pred_fallthru
    _
  %v27 = vld [vmem:[%s0] sm:$0xff]
  %v28 = vld [vmem:[%s0 + $0x8] sm:$0xff]
  %v29 = vld [vmem:[%s1] sm:$0x1]
  %v30 = vld [vmem:[%s2] sm:$0x1]
  %vm31 = vcmask 261120
  %v32 = vsel %vm31, %v27, 0.0
  %33 = vadd.xlane.f32.xlu0 %v32
  %v34 = vpop.xlane.xlu0 %33
  %v35 = vsel %vm31, %v28, 0.0
  %36 = vadd.xlane.f32.xlu0 %v35
  %v37 = vpop.xlane.xlu0 %36
  %v38 = vrcp.pop 32.0
  %v39 = vmul.f32 %v34, %v38
  %v40 = vmul.f32 %v37, %v38
  %v41 = vsub.f32 %v27, %v39
  %v42 = vsub.f32 %v28, %v40
  %v43 = vmul.f32 %v41, %v41
  %v44 = vmul.f32 %v42, %v42
  %v45 = vsel %vm31, %v43, 0.0
  %46 = vadd.xlane.f32.xlu0 %v45
  %v47 = vpop.xlane.xlu0 %46
  %v48 = vsel %vm31, %v44, 0.0
  %49 = vadd.xlane.f32.xlu0 %v48
  %v50 = vpop.xlane.xlu0 %49
  %v51 = vmul.f32 %v47, %v38
  %v52 = vmul.f32 %v50, %v38
  %v53 = vadd.f32 %v51, 1e-05
  %v54 = vadd.f32 %v52, 1e-05
  %v55 = vrsqrt.pop %v53
  %v56 = vrsqrt.pop %v54
  %v57 = vmul.f32 %v41, %v55
  %v58 = vmul.f32 %v42, %v56
  %v60 = vlaneseq
  %v61 = vshrl.u32 %v60, 7
  %v62 = vsub.s32 0, %v61
  %v63 = vrot.slane %v29, %v62
  %v65 = vmul.f32 %v57, %v63
  %v66 = vmul.f32 %v58, %v63
  %v68 = vlaneseq
  %v69 = vshrl.u32 %v68, 7
  %v70 = vsub.s32 0, %v69
  %v71 = vrot.slane %v30, %v70
  %v73 = vadd.f32 %v65, %v71
  %v74 = vadd.f32 %v66, %v71
  %v75 = vpack.c.bf16 %v74, %v73
  %v76 = vld [vmem:[%s3] sm:$0xf]
  %v77 = vld [vmem:[%s3 + $0x4] sm:$0xf]
  %v78 = vld [vmem:[%s3 + $0x8] sm:$0xf]
  %v79 = vld [vmem:[%s3 + $0xc] sm:$0xf]
  %v80 = vld [vmem:[%s4] sm:$0x1]
  %v82 = vlaneseq
  %v83 = vshrl.u32 %v82, 7
  %v84 = vsub.s32 0, %v83
  %v85 = vrot.slane %v80, %v84
  %v91 = vunpack.c.l.b16 %v76
  %v92 = vunpack.c.l.b16 %v77
  %v93 = vunpack.c.l.b16 %v78
  %v94 = vunpack.c.l.b16 %v79
  %v95 = vpack.c.b16 %v92, %v91
  %v96 = vpack.c.b16 %v94, %v93
  %v100 = vsel %vm31, %v75, 0
  %102 = vmatprep.subr.bf16.mxu0 0
  %103 = vmatpush1.bf16.msra.mxu0 %v95
  %104 = vmatprep.subr.bf16.mxu0 0
  %105 = vmatpush1.bf16.msra.mxu0 %v96
  %106 = vmatprep.subr.bf16.mxu0 0
  %107 = vmatpush1.bf16.msra.mxu0 0
  %108 = vmatprep.subr.bf16.mxu0 0
  %109 = vmatpush1.bf16.msra.mxu0 0
  %110 = vmatprep.subr.bf16.mxu0 0
  %111 = vmatpush1.bf16.msra.mxu0 0
  %112 = vmatprep.subr.bf16.mxu0 0
  %113 = vmatpush1.bf16.msra.mxu0 0
  %114 = vmatprep.subr.bf16.mxu0 0
  %115 = vmatpush1.bf16.msra.mxu0 0
  %116 = vmatprep.subr.bf16.mxu0 0
  %117 = vmatpush1.bf16.msra.mxu0 0
  %118 = vmatprep.subr.bf16.mxu0 0
  %119 = vmatpush1.bf16.msra.mxu0 0
  %120 = vmatprep.subr.bf16.mxu0 0
  %121 = vmatpush1.bf16.msra.mxu0 0
  %122 = vmatprep.subr.bf16.mxu0 0
  %123 = vmatpush1.bf16.msra.mxu0 0
  %124 = vmatprep.subr.bf16.mxu0 0
  %125 = vmatpush1.bf16.msra.mxu0 0
  %126 = vmatprep.subr.bf16.mxu0 0
  %127 = vmatpush1.bf16.msra.mxu0 0
  %128 = vmatprep.subr.bf16.mxu0 0
  %129 = vmatpush1.bf16.msra.mxu0 0
  %130 = vmatprep.subr.bf16.mxu0 0
  %131 = vmatpush1.bf16.msra.mxu0 0
  %132 = vmatprep.subr.bf16.mxu0 0
  %133 = vmatpush1.bf16.msra.mxu0 0
  %134 = vmatprep.mubr.bf16.mxu0 0
  %135 = vmatmul.mubr.bf16.gmra.mrb[0].mxu0 %v100
  %v136 = vpop.f32.mrb[0].mxu0
  %v137 = vadd.f32 %v85, %v136
  %v138 = vpop.f32.mrb[0].mxu0
  %v139 = vpop.f32.mrb[0].mxu0
  %v140 = vadd.f32 %v85, %v139
  %v141 = vpop.f32.mrb[0].mxu0
  %142 = vdwg.mxu0
  %v143 = vmax.f32 %v137, 0.0
  %v144 = vmax.f32 %v140, 0.0
  %v145 = vpack.c.bf16 %v144, %v143
  %v146 = vld [vmem:[%s5] sm:$0xf]
  %v147 = vld [vmem:[%s5 + $0x4] sm:$0xf]
  %v148 = vld [vmem:[%s5 + $0x8] sm:$0xf]
  %v149 = vld [vmem:[%s5 + $0xc] sm:$0xf]
  %v150 = vld [vmem:[%s5 + $0x10] sm:$0xf]
  %v151 = vld [vmem:[%s5 + $0x14] sm:$0xf]
  %v152 = vld [vmem:[%s5 + $0x18] sm:$0xf]
  %v153 = vld [vmem:[%s5 + $0x1c] sm:$0xf]
  %v154 = vld [vmem:[%s6] sm:$0x1]
  %v156 = vlaneseq
  %v157 = vshrl.u32 %v156, 7
  %v158 = vsub.s32 0, %v157
  %v159 = vrot.slane %v154, %v158
  %v169 = vunpack.c.l.b16 %v146
  %v170 = vunpack.c.l.b16 %v147
  %v171 = vunpack.c.l.b16 %v148
  %v172 = vunpack.c.l.b16 %v149
  %v173 = vunpack.c.l.b16 %v150
  %v174 = vunpack.c.l.b16 %v151
  %v175 = vunpack.c.l.b16 %v152
  %v176 = vunpack.c.l.b16 %v153
  %v177 = vpack.c.b16 %v170, %v169
  %v178 = vpack.c.b16 %v172, %v171
  %v179 = vpack.c.b16 %v174, %v173
  %v180 = vpack.c.b16 %v176, %v175
  %vm185 = vcmask 523264
  %v187 = vsel %vm185, %v145, 0
  %189 = vmatprep.subr.bf16.mxu0 0
  %190 = vmatpush1.bf16.msra.mxu0 %v177
  %191 = vmatprep.subr.bf16.mxu0 0
  %192 = vmatpush1.bf16.msra.mxu0 %v178
  %193 = vmatprep.subr.bf16.mxu0 0
  %194 = vmatpush1.bf16.msra.mxu0 %v179
  %195 = vmatprep.subr.bf16.mxu0 0
  %196 = vmatpush1.bf16.msra.mxu0 %v180
  %197 = vmatprep.subr.bf16.mxu0 0
  %198 = vmatpush1.bf16.msra.mxu0 0
  %199 = vmatprep.subr.bf16.mxu0 0
  %200 = vmatpush1.bf16.msra.mxu0 0
  %201 = vmatprep.subr.bf16.mxu0 0
  %202 = vmatpush1.bf16.msra.mxu0 0
  %203 = vmatprep.subr.bf16.mxu0 0
  %204 = vmatpush1.bf16.msra.mxu0 0
  %205 = vmatprep.subr.bf16.mxu0 0
  %206 = vmatpush1.bf16.msra.mxu0 0
  %207 = vmatprep.subr.bf16.mxu0 0
  %208 = vmatpush1.bf16.msra.mxu0 0
  %209 = vmatprep.subr.bf16.mxu0 0
  %210 = vmatpush1.bf16.msra.mxu0 0
  %211 = vmatprep.subr.bf16.mxu0 0
  %212 = vmatpush1.bf16.msra.mxu0 0
  %213 = vmatprep.subr.bf16.mxu0 0
  %214 = vmatpush1.bf16.msra.mxu0 0
  %215 = vmatprep.subr.bf16.mxu0 0
  %216 = vmatpush1.bf16.msra.mxu0 0
  %217 = vmatprep.subr.bf16.mxu0 0
  %218 = vmatpush1.bf16.msra.mxu0 0
  %219 = vmatprep.subr.bf16.mxu0 0
  %220 = vmatpush1.bf16.msra.mxu0 0
  %221 = vmatprep.mubr.bf16.mxu0 0
  %222 = vmatmul.mubr.bf16.gmra.mrb[0].mxu0 %v187
  %v223 = vpop.f32.mrb[0].mxu0
  %v224 = vadd.f32 %v159, %v223
  %v225 = vpop.f32.mrb[0].mxu0
  %v226 = vpop.f32.mrb[0].mxu0
  %v227 = vadd.f32 %v159, %v226
  %v228 = vpop.f32.mrb[0].mxu0
  %229 = vdwg.mxu0
  %v230 = vadd.f32 %v27, %v224
  %v231 = vadd.f32 %v28, %v227
  %232 = vst.msk [vmem:[%s7] sm:$0xff] %vm31, %v230
  %233 = vst.msk [vmem:[%s7 + $0x8] sm:$0xff] %vm31, %v231
  // Predicated region
  $region30: #{decoder_forward.9} parent=0 // pred_check
    _
  $region31: #{decoder_forward.9} parent=0 // pred_check_branch
    %235 = sbr.rel (0) target = $region33
  $region32: #{decoder_forward.9} parent=0 // pred_region
    _
  $region33: #{decoder_forward.9} parent=0 // pred_fallthru
    _
  // Predicated region
  $region34: #{decoder_forward.9} parent=0 // pred_check
    _
  $region35: #{decoder_forward.9} parent=0 // pred_check_branch
    %237 = sbr.rel (0) target = $region37
  $region36: #{decoder_forward.9} parent=0 // pred_region
    _
  $region37: #{decoder_forward.9} parent=0 // pred_fallthru
    _

// kernel: decoder_forward.7
$region0: #{decoder_forward.7}
  #allocation0 [shape = 'u32[]', space=smem, size = 0x4, offset = 0x4, fixed_abs, tag = 'smem constant byte address 0x4 - core index']
  #allocation1 [shape = 'u32[144,128]{1,0:T(1,128)}', space=vmem, size = 0x12000, scoped, tag = 'internal scratch']
  %s0 = inlined_call_operand.vmem [shape: f32[2,8,32], index: 0, kind: input, shape index: {}]
  %s1 = inlined_call_operand.vmem [shape: f32[1,8,8], index: 1, kind: input, shape index: {}]
  %s2 = inlined_call_operand.vmem [shape: f32[1,32], index: 2, kind: input, shape index: {}]
  %s3 = inlined_call_operand.vmem [shape: f32[1,32], index: 3, kind: input, shape index: {}]
  %s4 = inlined_call_operand.vmem [shape: bf16[32,32], index: 4, kind: input, shape index: {}]
  %s5 = inlined_call_operand.vmem [shape: f32[1,32], index: 5, kind: input, shape index: {}]
  %s6 = inlined_call_operand.vmem [shape: bf16[32,32], index: 6, kind: input, shape index: {}]
  %s7 = inlined_call_operand.vmem [shape: f32[1,32], index: 7, kind: input, shape index: {}]
  %s8 = inlined_call_operand.vmem [shape: bf16[32,32], index: 8, kind: input, shape index: {}]
  %s9 = inlined_call_operand.vmem [shape: f32[1,32], index: 9, kind: input, shape index: {}]
  %s10 = inlined_call_operand.vmem [shape: bf16[32,32], index: 10, kind: input, shape index: {}]
  %s11 = inlined_call_operand.vmem [shape: f32[1,32], index: 11, kind: input, shape index: {}]
  %s12 = inlined_call_operand.vmem [shape: f32[2,8,32], index: 12, kind: output, shape index: {}]
  %s13 = sld [smem:[#allocation0]]
  $region81: #{decoder_forward.7} parent=0
    _
  %s15 = ssub.s32 1, %s13
  %s16 = scalar_select 0, %s15, %s13
  loop: start=0, step=1, limit=4
  $region2: #{decoder_forward.7} parent=0 // loop_pre_header
    _
  $region3: #{decoder_forward.7} parent=0 // loop_header
    %s18 = sphi 0, %s22
    %p19 = scmp.ge.s32.totalorder %s18, 4
    %s25 = sphi 0, %s37
    %s26 = sphi 0, %s33
    %s27 = sphi 0, %s25
    %s28 = sphi 0, %s26
    %s29 = sphi 0, %s27
    %s30 = sphi 0, %s28
    %s42 = sphi 0, %s44
    %s45 = sphi 0, %s42
    %s46 = sphi 0, %s45
    %s62 = sphi 0, %s46
    %s66 = sphi 0, %s66
    %s68 = sphi 0, %s66
    %s69 = sphi 0, %s68
    %s83 = sphi 0, %s69
    %s87 = sphi 0, %s87
    %s89 = sphi 0, %s87
    %s90 = sphi 0, %s89
    %s104 = sphi 0, %s90
    %s108 = sphi 0, %s108
    %s110 = sphi 0, %s108
    %s111 = sphi 0, %s110
    %s125 = sphi 0, %s111
    %s129 = sphi 0, %s129
    %s131 = sphi 0, %s129
    %s132 = sphi 0, %s131
    %s146 = sphi 0, %s132
    %s150 = sphi 0, %s150
    %s152 = sphi 0, %s150
    %s153 = sphi 0, %s152
    %s167 = sphi 0, %s153
    %s171 = sphi 0, %s171
    %s173 = sphi 0, %s171
    %s174 = sphi 0, %s173
    %s188 = sphi 0, %s174
    %s192 = sphi 0, %s192
    %s194 = sphi 0, %s192
    %s195 = sphi 0, %s194
    %s209 = sphi 0, %s195
    %s213 = sphi 0, %s213
    %s215 = sphi 0, %s213
    %s216 = sphi 0, %s215
    %s230 = sphi 0, %s216
    %s234 = sphi 0, %s234
    %s236 = sphi 0, %s234
    %s237 = sphi 0, %s236
    %s251 = sphi 0, %s237
    %s255 = sphi 0, %s255
    %s257 = sphi 0, %s255
    %s258 = sphi 0, %s257
    %s272 = sphi 0, %s258
    %s276 = sphi 0, %s276
    %s278 = sphi 0, %s276
    %s279 = sphi 0, %s278
    %s293 = sphi 0, %s279
    %s301 = sphi 0, %s303
    %s304 = sphi 0, %s301
    %s305 = sphi 0, %s304
    %s321 = sphi 0, %s305
  $region4: #{decoder_forward.7} parent=0 // loop_header_branch
    %21 = sbr.rel (%p19) target = $region8
  $region5: #{decoder_forward.7} parent=0 // loop_body
    %s23 = ssub.s32 %s18, 1
    %s24 = ssub.s32 %s18, 2
    %s31 = sadd.s32 1, %s26
    %p32 = scmp.ge.s32.totalorder %s31, 1
    %s33 = scalar_select %p32, 0, %s31
    %s34 = sadd.s32 1, %s25
    %s35 = scalar_select %p32, %s34, %s25
    %p36 = scmp.ge.s32.totalorder %s35, 2
    %s37 = scalar_select %p36, 0, %s35
    %s38 = ssub.s32 %s25, %s37
    %s39 = ssub.s32 %s26, %s33
    %s40 = sor.u32 %s38, %s39
    %p41 = scmp.eq.s32.totalorder %s40, 0
    %s43 = sadd.s32 %s42, 1
    %s44 = scalar_select %p41, %s42, %s43
    %p47 = pneg %p41
    %p48 = scmp.eq.s32.totalorder %s18, 1
    %p49 = por %p47, %p48
    %p50 = scmp.ne.s32.totalorder %s42, %s45
    %p51 = scmp.eq.s32.totalorder %s18, 0
    %p52 = por %p50, %p51
    %p53 = scmp.ne.s32.totalorder %s42, %s45
    %p54 = scmp.eq.s32.totalorder %s23, 1
    %p55 = por %p53, %p54
    %p56 = scmp.ne.s32.totalorder %s45, %s46
    %p57 = scmp.eq.s32.totalorder %s23, 0
    %p58 = por %p56, %p57
    %p59 = scmp.ne.s32.totalorder %s45, %s46
    %p60 = scmp.eq.s32.totalorder %s24, 1
    %p61 = por %p59, %p60
    %p63 = scmp.ne.s32.totalorder %s46, %s62
    %p64 = scmp.eq.s32.totalorder %s24, 0
    %p65 = por %p63, %p64
    %s67 = sadd.s32 %s66, 1
    %p70 = scmp.eq.s32.totalorder %s18, 1
    %p71 = scmp.ne.s32.totalorder %s66, %s68
    %p72 = scmp.eq.s32.totalorder %s18, 0
    %p73 = por %p71, %p72
    %p74 = scmp.ne.s32.totalorder %s66, %s68
    %p75 = scmp.eq.s32.totalorder %s23, 1
    %p76 = por %p74, %p75
    %p77 = scmp.ne.s32.totalorder %s68, %s69
    %p78 = scmp.eq.s32.totalorder %s23, 0
    %p79 = por %p77, %p78
    %p80 = scmp.ne.s32.totalorder %s68, %s69
    %p81 = scmp.eq.s32.totalorder %s24, 1
    %p82 = por %p80, %p81
    %p84 = scmp.ne.s32.totalorder %s69, %s83
    %p85 = scmp.eq.s32.totalorder %s24, 0
    %p86 = por %p84, %p85
    %s88 = sadd.s32 %s87, 1
    %p91 = scmp.eq.s32.totalorder %s18, 1
    %p92 = scmp.ne.s32.totalorder %s87, %s89
    %p93 = scmp.eq.s32.totalorder %s18, 0
    %p94 = por %p92, %p93
    %p95 = scmp.ne.s32.totalorder %s87, %s89
    %p96 = scmp.eq.s32.totalorder %s23, 1
    %p97 = por %p95, %p96
    %p98 = scmp.ne.s32.totalorder %s89, %s90
    %p99 = scmp.eq.s32.totalorder %s23, 0
    %p100 = por %p98, %p99
    %p101 = scmp.ne.s32.totalorder %s89, %s90
    %p102 = scmp.eq.s32.totalorder %s24, 1
    %p103 = por %p101, %p102
    %p105 = scmp.ne.s32.totalorder %s90, %s104
    %p106 = scmp.eq.s32.totalorder %s24, 0
    %p107 = por %p105, %p106
    %s109 = sadd.s32 %s108, 1
    %p112 = scmp.eq.s32.totalorder %s18, 1
    %p113 = scmp.ne.s32.totalorder %s108, %s110
    %p114 = scmp.eq.s32.totalorder %s18, 0
    %p115 = por %p113, %p114
    %p116 = scmp.ne.s32.totalorder %s108, %s110
    %p117 = scmp.eq.s32.totalorder %s23, 1
    %p118 = por %p116, %p117
    %p119 = scmp.ne.s32.totalorder %s110, %s111
    %p120 = scmp.eq.s32.totalorder %s23, 0
    %p121 = por %p119, %p120
    %p122 = scmp.ne.s32.totalorder %s110, %s111
    %p123 = scmp.eq.s32.totalorder %s24, 1
    %p124 = por %p122, %p123
    %p126 = scmp.ne.s32.totalorder %s111, %s125
    %p127 = scmp.eq.s32.totalorder %s24, 0
    %p128 = por %p126, %p127
    %s130 = sadd.s32 %s129, 1
    %p133 = scmp.eq.s32.totalorder %s18, 1
    %p134 = scmp.ne.s32.totalorder %s129, %s131
    %p135 = scmp.eq.s32.totalorder %s18, 0
    %p136 = por %p134, %p135
    %p137 = scmp.ne.s32.totalorder %s129, %s131
    %p138 = scmp.eq.s32.totalorder %s23, 1
    %p139 = por %p137, %p138
    %p140 = scmp.ne.s32.totalorder %s131, %s132
    %p141 = scmp.eq.s32.totalorder %s23, 0
    %p142 = por %p140, %p141
    %p143 = scmp.ne.s32.totalorder %s131, %s132
    %p144 = scmp.eq.s32.totalorder %s24, 1
    %p145 = por %p143, %p144
    %p147 = scmp.ne.s32.totalorder %s132, %s146
    %p148 = scmp.eq.s32.totalorder %s24, 0
    %p149 = por %p147, %p148
    %s151 = sadd.s32 %s150, 1
    %p154 = scmp.eq.s32.totalorder %s18, 1
    %p155 = scmp.ne.s32.totalorder %s150, %s152
    %p156 = scmp.eq.s32.totalorder %s18, 0
    %p157 = por %p155, %p156
    %p158 = scmp.ne.s32.totalorder %s150, %s152
    %p159 = scmp.eq.s32.totalorder %s23, 1
    %p160 = por %p158, %p159
    %p161 = scmp.ne.s32.totalorder %s152, %s153
    %p162 = scmp.eq.s32.totalorder %s23, 0
    %p163 = por %p161, %p162
    %p164 = scmp.ne.s32.totalorder %s152, %s153
    %p165 = scmp.eq.s32.totalorder %s24, 1
    %p166 = por %p164, %p165
    %p168 = scmp.ne.s32.totalorder %s153, %s167
    %p169 = scmp.eq.s32.totalorder %s24, 0
    %p170 = por %p168, %p169
    %s172 = sadd.s32 %s171, 1
    %p175 = scmp.eq.s32.totalorder %s18, 1
    %p176 = scmp.ne.s32.totalorder %s171, %s173
    %p177 = scmp.eq.s32.totalorder %s18, 0
    %p178 = por %p176, %p177
    %p179 = scmp.ne.s32.totalorder %s171, %s173
    %p180 = scmp.eq.s32.totalorder %s23, 1
    %p181 = por %p179, %p180
    %p182 = scmp.ne.s32.totalorder %s173, %s174
    %p183 = scmp.eq.s32.totalorder %s23, 0
    %p184 = por %p182, %p183
    %p185 = scmp.ne.s32.totalorder %s173, %s174
    %p186 = scmp.eq.s32.totalorder %s24, 1
    %p187 = por %p185, %p186
    %p189 = scmp.ne.s32.totalorder %s174, %s188
    %p190 = scmp.eq.s32.totalorder %s24, 0
    %p191 = por %p189, %p190
    %s193 = sadd.s32 %s192, 1
    %p196 = scmp.eq.s32.totalorder %s18, 1
    %p197 = scmp.ne.s32.totalorder %s192, %s194
    %p198 = scmp.eq.s32.totalorder %s18, 0
    %p199 = por %p197, %p198
    %p200 = scmp.ne.s32.totalorder %s192, %s194
    %p201 = scmp.eq.s32.totalorder %s23, 1
    %p202 = por %p200, %p201
    %p203 = scmp.ne.s32.totalorder %s194, %s195
    %p204 = scmp.eq.s32.totalorder %s23, 0
    %p205 = por %p203, %p204
    %p206 = scmp.ne.s32.totalorder %s194, %s195
    %p207 = scmp.eq.s32.totalorder %s24, 1
    %p208 = por %p206, %p207
    %p210 = scmp.ne.s32.totalorder %s195, %s209
    %p211 = scmp.eq.s32.totalorder %s24, 0
    %p212 = por %p210, %p211
    %s214 = sadd.s32 %s213, 1
    %p217 = scmp.eq.s32.totalorder %s18, 1
    %p218 = scmp.ne.s32.totalorder %s213, %s215
    %p219 = scmp.eq.s32.totalorder %s18, 0
    %p220 = por %p218, %p219
    %p221 = scmp.ne.s32.totalorder %s213, %s215
    %p222 = scmp.eq.s32.totalorder %s23, 1
    %p223 = por %p221, %p222
    %p224 = scmp.ne.s32.totalorder %s215, %s216
    %p225 = scmp.eq.s32.totalorder %s23, 0
    %p226 = por %p224, %p225
    %p227 = scmp.ne.s32.totalorder %s215, %s216
    %p228 = scmp.eq.s32.totalorder %s24, 1
    %p229 = por %p227, %p228
    %p231 = scmp.ne.s32.totalorder %s216, %s230
    %p232 = scmp.eq.s32.totalorder %s24, 0
    %p233 = por %p231, %p232
    %s235 = sadd.s32 %s234, 1
    %p238 = scmp.eq.s32.totalorder %s18, 1
    %p239 = scmp.ne.s32.totalorder %s234, %s236
    %p240 = scmp.eq.s32.totalorder %s18, 0
    %p241 = por %p239, %p240
    %p242 = scmp.ne.s32.totalorder %s234, %s236
    %p243 = scmp.eq.s32.totalorder %s23, 1
    %p244 = por %p242, %p243
    %p245 = scmp.ne.s32.totalorder %s236, %s237
    %p246 = scmp.eq.s32.totalorder %s23, 0
    %p247 = por %p245, %p246
    %p248 = scmp.ne.s32.totalorder %s236, %s237
    %p249 = scmp.eq.s32.totalorder %s24, 1
    %p250 = por %p248, %p249
    %p252 = scmp.ne.s32.totalorder %s237, %s251
    %p253 = scmp.eq.s32.totalorder %s24, 0
    %p254 = por %p252, %p253
    %s256 = sadd.s32 %s255, 1
    %p259 = scmp.eq.s32.totalorder %s18, 1
    %p260 = scmp.ne.s32.totalorder %s255, %s257
    %p261 = scmp.eq.s32.totalorder %s18, 0
    %p262 = por %p260, %p261
    %p263 = scmp.ne.s32.totalorder %s255, %s257
    %p264 = scmp.eq.s32.totalorder %s23, 1
    %p265 = por %p263, %p264
    %p266 = scmp.ne.s32.totalorder %s257, %s258
    %p267 = scmp.eq.s32.totalorder %s23, 0
    %p268 = por %p266, %p267
    %p269 = scmp.ne.s32.totalorder %s257, %s258
    %p270 = scmp.eq.s32.totalorder %s24, 1
    %p271 = por %p269, %p270
    %p273 = scmp.ne.s32.totalorder %s258, %s272
    %p274 = scmp.eq.s32.totalorder %s24, 0
    %p275 = por %p273, %p274
    %s277 = sadd.s32 %s276, 1
    %p280 = scmp.eq.s32.totalorder %s18, 1
    %p281 = scmp.ne.s32.totalorder %s276, %s278
    %p282 = scmp.eq.s32.totalorder %s18, 0
    %p283 = por %p281, %p282
    %p284 = scmp.ne.s32.totalorder %s276, %s278
    %p285 = scmp.eq.s32.totalorder %s23, 1
    %p286 = por %p284, %p285
    %p287 = scmp.ne.s32.totalorder %s278, %s279
    %p288 = scmp.eq.s32.totalorder %s23, 0
    %p289 = por %p287, %p288
    %p290 = scmp.ne.s32.totalorder %s278, %s279
    %p291 = scmp.eq.s32.totalorder %s24, 1
    %p292 = por %p290, %p291
    %p294 = scmp.ne.s32.totalorder %s279, %s293
    %p295 = scmp.eq.s32.totalorder %s24, 0
    %p296 = por %p294, %p295
    %s297 = ssub.s32 %s25, %s37
    %s298 = ssub.s32 %s26, %s33
    %s299 = sor.u32 %s297, %s298
    %p300 = scmp.eq.s32.totalorder %s299, 0
    %s302 = sadd.s32 %s301, 1
    %s303 = scalar_select %p300, %s301, %s302
    %p306 = pneg %p300
    %p307 = scmp.eq.s32.totalorder %s18, 1
    %p308 = por %p306, %p307
    %p309 = scmp.ne.s32.totalorder %s301, %s304
    %p310 = scmp.eq.s32.totalorder %s18, 0
    %p311 = por %p309, %p310
    %p312 = scmp.ne.s32.totalorder %s301, %s304
    %p313 = scmp.eq.s32.totalorder %s23, 1
    %p314 = por %p312, %p313
    %p315 = scmp.ne.s32.totalorder %s304, %s305
    %p316 = scmp.eq.s32.totalorder %s23, 0
    %p317 = por %p315, %p316
    %p318 = scmp.ne.s32.totalorder %s304, %s305
    %p319 = scmp.eq.s32.totalorder %s24, 1
    %p320 = por %p318, %p319
    %p322 = scmp.ne.s32.totalorder %s305, %s321
    %p323 = scmp.eq.s32.totalorder %s24, 0
    %p324 = por %p322, %p323
    %p325 = scmp.le.s32.totalorder 1, %s18
    %p326 = scmp.lt.s32.totalorder %s18, 3
    %p327 = pnand %p325, %p326
    %p328 = pneg %p327
    // Predicated region
    $region9: #{decoder_forward.7} parent=5 // pred_check
      _
    $region10: #{decoder_forward.7} parent=5 // pred_check_branch
      %330 = sbr.rel (%p327) target = $region12
    $region11: #{decoder_forward.7} parent=5 // pred_region
      %s331 = ssub.s32 %s18, 1
      // Predicated region
      $region13: #{decoder_forward.7} parent=11 // pred_check
        %p332 = pneg %p79
      $region14: #{decoder_forward.7} parent=11 // pred_check_branch
        %334 = sbr.rel (%p332) target = $region16
      $region15: #{decoder_forward.7} parent=11 // pred_region
        _
      $region16: #{decoder_forward.7} parent=11 // pred_fallthru
        _
      // Predicated region
      $region17: #{decoder_forward.7} parent=11 // pred_check
        %p335 = pneg %p100
      $region18: #{decoder_forward.7} parent=11 // pred_check_branch
        %337 = sbr.rel (%p335) target = $region20
      $region19: #{decoder_forward.7} parent=11 // pred_region
        _
      $region20: #{decoder_forward.7} parent=11 // pred_fallthru
        _
      // Predicated region
      $region21: #{decoder_forward.7} parent=11 // pred_check
        %p338 = pneg %p121
      $region22: #{decoder_forward.7} parent=11 // pred_check_branch
        %340 = sbr.rel (%p338) target = $region24
      $region23: #{decoder_forward.7} parent=11 // pred_region
        _
      $region24: #{decoder_forward.7} parent=11 // pred_fallthru
        _
      // Predicated region
      $region25: #{decoder_forward.7} parent=11 // pred_check
        %p341 = pneg %p142
      $region26: #{decoder_forward.7} parent=11 // pred_check_branch
        %343 = sbr.rel (%p341) target = $region28
      $region27: #{decoder_forward.7} parent=11 // pred_region
        _
      $region28: #{decoder_forward.7} parent=11 // pred_fallthru
        _
      // Predicated region
      $region29: #{decoder_forward.7} parent=11 // pred_check
        %p344 = pneg %p163
      $region30: #{decoder_forward.7} parent=11 // pred_check_branch
        %346 = sbr.rel (%p344) target = $region32
      $region31: #{decoder_forward.7} parent=11 // pred_region
        _
      $region32: #{decoder_forward.7} parent=11 // pred_fallthru
        _
      // Predicated region
      $region33: #{decoder_forward.7} parent=11 // pred_check
        %p347 = pneg %p184
      $region34: #{decoder_forward.7} parent=11 // pred_check_branch
        %349 = sbr.rel (%p347) target = $region36
      $region35: #{decoder_forward.7} parent=11 // pred_region
        _
      $region36: #{decoder_forward.7} parent=11 // pred_fallthru
        _
      // Predicated region
      $region37: #{decoder_forward.7} parent=11 // pred_check
        %p350 = pneg %p205
      $region38: #{decoder_forward.7} parent=11 // pred_check_branch
        %352 = sbr.rel (%p350) target = $region40
      $region39: #{decoder_forward.7} parent=11 // pred_region
        _
      $region40: #{decoder_forward.7} parent=11 // pred_fallthru
        _
      // Predicated region
      $region41: #{decoder_forward.7} parent=11 // pred_check
        %p353 = pneg %p226
      $region42: #{decoder_forward.7} parent=11 // pred_check_branch
        %355 = sbr.rel (%p353) target = $region44
      $region43: #{decoder_forward.7} parent=11 // pred_region
        _
      $region44: #{decoder_forward.7} parent=11 // pred_fallthru
        _
      // Predicated region
      $region45: #{decoder_forward.7} parent=11 // pred_check
        %p356 = pneg %p247
      $region46: #{decoder_forward.7} parent=11 // pred_check_branch
        %358 = sbr.rel (%p356) target = $region48
      $region47: #{decoder_forward.7} parent=11 // pred_region
        _
      $region48: #{decoder_forward.7} parent=11 // pred_fallthru
        _
      // Predicated region
      $region49: #{decoder_forward.7} parent=11 // pred_check
        %p359 = pneg %p268
      $region50: #{decoder_forward.7} parent=11 // pred_check_branch
        %361 = sbr.rel (%p359) target = $region52
      $region51: #{decoder_forward.7} parent=11 // pred_region
        _
      $region52: #{decoder_forward.7} parent=11 // pred_fallthru
        _
      // Predicated region
      $region53: #{decoder_forward.7} parent=11 // pred_check
        %p362 = pneg %p289
      $region54: #{decoder_forward.7} parent=11 // pred_check_branch
        %364 = sbr.rel (%p362) target = $region56
      $region55: #{decoder_forward.7} parent=11 // pred_region
        _
      $region56: #{decoder_forward.7} parent=11 // pred_fallthru
        _
    $region12: #{decoder_forward.7} parent=5 // pred_fallthru
      _
    %p365 = scmp.lt.s32.totalorder %s18, 2
    // Predicated region
    $region57: #{decoder_forward.7} parent=5 // pred_check
      %p366 = pneg %p365
    $region58: #{decoder_forward.7} parent=5 // pred_check_branch
      %368 = sbr.rel (%p366) target = $region60
    $region59: #{decoder_forward.7} parent=5 // pred_region
      // Predicated region
      $region61: #{decoder_forward.7} parent=59 // pred_check
        %p369 = pneg %p52
      $region62: #{decoder_forward.7} parent=59 // pred_check_branch
        %371 = sbr.rel (%p369) target = $region64
      $region63: #{decoder_forward.7} parent=59 // pred_region
        %p372 = scmp.lt.s32.totalorder %s25, 1
        %s373 = scalar_select %p372, %s25, 1
        %p374 = scmp.lt.s32.totalorder %s26, 0
        %s375 = scalar_select %p374, %s26, 0
        %s376 = sadd.s32 %s375, %s373
        %s377 = smul.addr %s376, 8
        %s378 = scalar_lea.vmem %s0, %s377
      $region64: #{decoder_forward.7} parent=59 // pred_fallthru
        _
    $region60: #{decoder_forward.7} parent=5 // pred_fallthru
      _
    %p379 = scmp.le.s32.totalorder 1, %s18
    %p380 = scmp.lt.s32.totalorder %s18, 3
    %p381 = pnand %p379, %p380
    %p382 = pneg %p381
    // Predicated region
    $region65: #{decoder_forward.7} parent=5 // pred_check
      _
    $region66: #{decoder_forward.7} parent=5 // pred_check_branch
      %384 = sbr.rel (%p381) target = $region68
    $region67: #{decoder_forward.7} parent=5 // pred_region
      %s385 = ssub.s32 %s18, 1
      %p386 = scmp.lt.s32.totalorder %s27, 1
      %s387 = scalar_select %p386, %s27, 1
      %p388 = scmp.lt.s32.totalorder %s28, 0
      %s389 = scalar_select %p388, %s28, 0
      %s390 = sadd.s32 %s389, %s387
      %s391 = smul.addr %s390, 8
      %s392 = scalar_lea.vmem %s0, %s391
      %p393 = pneg %p58
      %p394 = pneg %p55
      %p395 = pneg %p79
      %p396 = pneg %p76
      %p397 = pneg %p100
      %p398 = pneg %p97
      %p399 = pneg %p121
      %p400 = pneg %p118
      %p401 = pneg %p142
      %p402 = pneg %p139
      %p403 = pneg %p163
      %p404 = pneg %p160
      %p405 = pneg %p184
      %p406 = pneg %p181
      %p407 = pneg %p205
      %p408 = pneg %p202
      %p409 = pneg %p226
      %p410 = pneg %p223
      %p411 = pneg %p247
      %p412 = pneg %p244
      %p413 = pneg %p268
      %p414 = pneg %p265
      %p415 = pneg %p289
      %p416 = pneg %p286
      %p417 = pneg %p317
      %p418 = pneg %p314
      %p419 = scmp.lt.s32.totalorder %s27, 1
      %s420 = scalar_select %p419, %s27, 1
      %p421 = scmp.lt.s32.totalorder %s28, 0
      %s422 = scalar_select %p421, %s28, 0
      %s423 = sadd.s32 %s422, %s420
      %s424 = smul.addr %s423, 8
      %s425 = scalar_lea.vmem %s12, %s424
      %p426 = scmp.lt.s32.totalorder %s27, 1
      %s427 = scalar_select %p426, %s27, 1
      %p428 = scmp.lt.s32.totalorder %s28, 0
      %s429 = scalar_select %p428, %s28, 0
      %s430 = sadd.s32 %s429, %s427
      %s431 = smul.addr %s430, 8
      %s432 = scalar_lea.vmem %s0, %s431
      %p433 = scmp.lt.s32.totalorder %s27, 1
      %s434 = scalar_select %p433, %s27, 1
      %p435 = scmp.lt.s32.totalorder %s28, 0
      %s436 = scalar_select %p435, %s28, 0
      %s437 = sadd.s32 %s436, %s434
      %s438 = smul.addr %s437, 8
      %s439 = scalar_lea.vmem %s12, %s438
      %v441 = vld [vmem:[%s432] sm:$0xff]
      %v442 = vld [vmem:[%s2] sm:$0x1]
      %v443 = vld [vmem:[%s3] sm:$0x1]
      %vm444 = vcmask 261120
      %v445 = vsel %vm444, %v441, 0.0
      %446 = vadd.xlane.f32.xlu0 %v445
      %v447 = vpop.xlane.xlu0 %446
      %v448 = vrcp.pop 32.0
      %v449 = vmul.f32 %v447, %v448
      %v450 = vsub.f32 %v441, %v449
      %v451 = vmul.f32 %v450, %v450
      %v452 = vsel %vm444, %v451, 0.0
      %453 = vadd.xlane.f32.xlu0 %v452
      %v454 = vpop.xlane.xlu0 %453
      %v455 = vmul.f32 %v454, %v448
      %v456 = vadd.f32 %v455, 1e-05
      %v457 = vrsqrt.pop %v456
      %v458 = vmul.f32 %v450, %v457
      %v460 = vlaneseq
      %v461 = vshrl.u32 %v460, 7
      %v462 = vsub.s32 0, %v461
      %v463 = vrot.slane %v442, %v462
      %v465 = vmul.f32 %v458, %v463
      %v467 = vlaneseq
      %v468 = vshrl.u32 %v467, 7
      %v469 = vsub.s32 0, %v468
      %v470 = vrot.slane %v443, %v469
      %v472 = vadd.f32 %v465, %v470
      %v473 = vpack.c.bf16 %v472, %v472
      %v474 = vld [vmem:[%s4] sm:$0xf]
      %v475 = vld [vmem:[%s4 + $0x4] sm:$0xf]
      %v476 = vld [vmem:[%s4 + $0x8] sm:$0xf]
      %v477 = vld [vmem:[%s4 + $0xc] sm:$0xf]
      %v478 = vld [vmem:[%s5] sm:$0x1]
      %v480 = vlaneseq
      %v481 = vshrl.u32 %v480, 7
      %v482 = vsub.s32 0, %v481
      %v483 = vrot.slane %v478, %v482
      %v489 = vunpack.c.l.b16 %v474
      %v490 = vunpack.c.l.b16 %v475
      %v491 = vunpack.c.l.b16 %v476
      %v492 = vunpack.c.l.b16 %v477
      %v493 = vpack.c.b16 %v490, %v489
      %v494 = vpack.c.b16 %v492, %v491
      %v498 = vsel %vm444, %v473, 0
      %500 = vmatprep.subr.bf16.mxu0 0
      %501 = vmatpush1.bf16.msra.mxu0 %v493
      %502 = vmatprep.subr.bf16.mxu0 0
      %503 = vmatpush1.bf16.msra.mxu0 %v494
      %504 = vmatprep.subr.bf16.mxu0 0
      %505 = vmatpush1.bf16.msra.mxu0 0
      %506 = vmatprep.subr.bf16.mxu0 0
      %507 = vmatpush1.bf16.msra.mxu0 0
      %508 = vmatprep.subr.bf16.mxu0 0
      %509 = vmatpush1.bf16.msra.mxu0 0
      %510 = vmatprep.subr.bf16.mxu0 0
      %511 = vmatpush1.bf16.msra.mxu0 0
      %512 = vmatprep.subr.bf16.mxu0 0
      %513 = vmatpush1.bf16.msra.mxu0 0
      %514 = vmatprep.subr.bf16.mxu0 0
      %515 = vmatpush1.bf16.msra.mxu0 0
      %516 = vmatprep.subr.bf16.mxu0 0
      %517 = vmatpush1.bf16.msra.mxu0 0
      %518 = vmatprep.subr.bf16.mxu0 0
      %519 = vmatpush1.bf16.msra.mxu0 0
      %520 = vmatprep.subr.bf16.mxu0 0
      %521 = vmatpush1.bf16.msra.mxu0 0
      %522 = vmatprep.subr.bf16.mxu0 0
      %523 = vmatpush1.bf16.msra.mxu0 0
      %524 = vmatprep.subr.bf16.mxu0 0
      %525 = vmatpush1.bf16.msra.mxu0 0
      %526 = vmatprep.subr.bf16.mxu0 0
      %527 = vmatpush1.bf16.msra.mxu0 0
      %528 = vmatprep.subr.bf16.mxu0 0
      %529 = vmatpush1.bf16.msra.mxu0 0
      %530 = vmatprep.subr.bf16.mxu0 0
      %531 = vmatpush1.bf16.msra.mxu0 0
      %532 = vmatprep.mubr.bf16.mxu0 0
      %533 = vmatmul.mubr.bf16.gmra.mrb[0].mxu0 %v498
      %v534 = vpop.f32.mrb[0].mxu0
      %v535 = vadd.f32 %v483, %v534
      %v536 = vpop.f32.mrb[0].mxu0
      %v537 = vpop.f32.mrb[0].mxu0
      %v538 = vpop.f32.mrb[0].mxu0
      %539 = vdwg.mxu0
      %v540 = vld [vmem:[%s6] sm:$0xf]
      %v541 = vld [vmem:[%s6 + $0x4] sm:$0xf]
      %v542 = vld [vmem:[%s6 + $0x8] sm:$0xf]
      %v543 = vld [vmem:[%s6 + $0xc] sm:$0xf]
      %v544 = vld [vmem:[%s7] sm:$0x1]
      %v546 = vlaneseq
      %v547 = vshrl.u32 %v546, 7
      %v548 = vsub.s32 0, %v547
      %v549 = vrot.slane %v544, %v548
      %v555 = vunpack.c.l.b16 %v540
      %v556 = vunpack.c.l.b16 %v541
      %v557 = vunpack.c.l.b16 %v542
      %v558 = vunpack.c.l.b16 %v543
      %v559 = vpack.c.b16 %v556, %v555
      %v560 = vpack.c.b16 %v558, %v557
      %563 = vmatprep.subr.bf16.mxu0 0
      %564 = vmatpush1.bf16.msra.mxu0 %v559
      %565 = vmatprep.subr.bf16.mxu0 0
      %566 = vmatpush1.bf16.msra.mxu0 %v560
      %567 = vmatprep.subr.bf16.mxu0 0
      %568 = vmatpush1.bf16.msra.mxu0 0
      %569 = vmatprep.subr.bf16.mxu0 0
      %570 = vmatpush1.bf16.msra.mxu0 0
      %571 = vmatprep.subr.bf16.mxu0 0
      %572 = vmatpush1.bf16.msra.mxu0 0
      %573 = vmatprep.subr.bf16.mxu0 0
      %574 = vmatpush1.bf16.msra.mxu0 0
      %575 = vmatprep.subr.bf16.mxu0 0
      %576 = vmatpush1.bf16.msra.mxu0 0
      %577 = vmatprep.subr.bf16.mxu0 0
      %578 = vmatpush1.bf16.msra.mxu0 0
      %579 = vmatprep.subr.bf16.mxu0 0
      %580 = vmatpush1.bf16.msra.mxu0 0
      %581 = vmatprep.subr.bf16.mxu0 0
      %582 = vmatpush1.bf16.msra.mxu0 0
      %583 = vmatprep.subr.bf16.mxu0 0
      %584 = vmatpush1.bf16.msra.mxu0 0
      %585 = vmatprep.subr.bf16.mxu0 0
      %586 = vmatpush1.bf16.msra.mxu0 0
      %587 = vmatprep.subr.bf16.mxu0 0
      %588 = vmatpush1.bf16.msra.mxu0 0
      %589 = vmatprep.subr.bf16.mxu0 0
      %590 = vmatpush1.bf16.msra.mxu0 0
      %591 = vmatprep.subr.bf16.mxu0 0
      %592 = vmatpush1.bf16.msra.mxu0 0
      %593 = vmatprep.subr.bf16.mxu0 0
      %594 = vmatpush1.bf16.msra.mxu0 0
      %595 = vmatprep.mubr.bf16.mxu0 0
      %596 = vmatmul.mubr.bf16.gmra.mrb[0].mxu0 %v498
      %v597 = vpop.f32.mrb[0].mxu0
      %v598 = vadd.f32 %v549, %v597
      %v599 = vpop.f32.mrb[0].mxu0
      %v600 = vpop.f32.mrb[0].mxu0
      %v601 = vpop.f32.mrb[0].mxu0
      %602 = vdwg.mxu0
      %v603 = vld [vmem:[%s8] sm:$0xf]
      %v604 = vld [vmem:[%s8 + $0x4] sm:$0xf]
      %v605 = vld [vmem:[%s8 + $0x8] sm:$0xf]
      %v606 = vld [vmem:[%s8 + $0xc] sm:$0xf]
      %v607 = vld [vmem:[%s9] sm:$0x1]
      %v609 = vlaneseq
      %v610 = vshrl.u32 %v609, 7
      %v611 = vsub.s32 0, %v610
      %v612 = vrot.slane %v607, %v611
      %v618 = vunpack.c.l.b16 %v603
      %v619 = vunpack.c.l.b16 %v604
      %v620 = vunpack.c.l.b16 %v605
      %v621 = vunpack.c.l.b16 %v606
      %v622 = vpack.c.b16 %v619, %v618
      %v623 = vpack.c.b16 %v621, %v620
      %626 = vmatprep.subr.bf16.mxu0 0
      %627 = vmatpush1.bf16.msra.mxu0 %v622
      %628 = vmatprep.subr.bf16.mxu0 0
      %629 = vmatpush1.bf16.msra.mxu0 %v623
      %630 = vmatprep.subr.bf16.mxu0 0
      %631 = vmatpush1.bf16.msra.mxu0 0
      %632 = vmatprep.subr.bf16.mxu0 0
      %633 = vmatpush1.bf16.msra.mxu0 0
      %634 = vmatprep.subr.bf16.mxu0 0
      %635 = vmatpush1.bf16.msra.mxu0 0
      %636 = vmatprep.subr.bf16.mxu0 0
      %637 = vmatpush1.bf16.msra.mxu0 0
      %638 = vmatprep.subr.bf16.mxu0 0
      %639 = vmatpush1.bf16.msra.mxu0 0
      %640 = vmatprep.subr.bf16.mxu0 0
      %641 = vmatpush1.bf16.msra.mxu0 0
      %642 = vmatprep.subr.bf16.mxu0 0
      %643 = vmatpush1.bf16.msra.mxu0 0
      %644 = vmatprep.subr.bf16.mxu0 0
      %645 = vmatpush1.bf16.msra.mxu0 0
      %646 = vmatprep.subr.bf16.mxu0 0
      %647 = vmatpush1.bf16.msra.mxu0 0
      %648 = vmatprep.subr.bf16.mxu0 0
      %649 = vmatpush1.bf16.msra.mxu0 0
      %650 = vmatprep.subr.bf16.mxu0 0
      %651 = vmatpush1.bf16.msra.mxu0 0
      %652 = vmatprep.subr.bf16.mxu0 0
      %653 = vmatpush1.bf16.msra.mxu0 0
      %654 = vmatprep.subr.bf16.mxu0 0
      %655 = vmatpush1.bf16.msra.mxu0 0
      %656 = vmatprep.subr.bf16.mxu0 0
      %657 = vmatpush1.bf16.msra.mxu0 0
      %658 = vmatprep.mubr.bf16.mxu0 0
      %659 = vmatmul.mubr.bf16.gmra.mrb[0].mxu0 %v498
      %v660 = vpop.f32.mrb[0].mxu0
      %v661 = vadd.f32 %v612, %v660
      %v662 = vpop.f32.mrb[0].mxu0
      %v663 = vpop.f32.mrb[0].mxu0
      %v664 = vpop.f32.mrb[0].mxu0
      %665 = vdwg.mxu0
      %v666 = vpack.c.bf16 %v535, %v535
      %v667 = vpack.c.bf16 %v598, %v598
      %v668 = vpack.c.bf16 %v661, %v661
      %v669 = vld [vmem:[%s1] sm:$0xff]
      %vm670 = vcmask 64512
      %v672 = vsel %vm670, %v666, 0
      %v675 = vsel %vm670, %v667, 0
      %677 = vmatprep.subr.bf16.mxu0 0
      %678 = vmatpush1.bf16.xpose.msra.mxu0 %v675
      %679 = vmatprep.subr.bf16.mxu0 0
      %680 = vmatpush1.bf16.xpose.msra.mxu0 0
      %681 = vmatprep.subr.bf16.mxu0 0
      %682 = vmatpush1.bf16.xpose.msra.mxu0 0
      %683 = vmatprep.subr.bf16.mxu0 0
      %684 = vmatpush1.bf16.xpose.msra.mxu0 0
      %685 = vmatprep.subr.bf16.mxu0 0
      %686 = vmatpush1.bf16.xpose.msra.mxu0 0
      %687 = vmatprep.subr.bf16.mxu0 0
      %688 = vmatpush1.bf16.xpose.msra.mxu0 0
      %689 = vmatprep.subr.bf16.mxu0 0
      %690 = vmatpush1.bf16.xpose.msra.mxu0 0
      %691 = vmatprep.subr.bf16.mxu0 0
      %692 = vmatpush1.bf16.xpose.msra.mxu0 0
      %693 = vmatprep.subr.bf16.mxu0 0
      %694 = vmatpush1.bf16.xpose.msra.mxu0 0
      %695 = vmatprep.subr.bf16.mxu0 0
      %696 = vmatpush1.bf16.xpose.msra.mxu0 0
      %697 = vmatprep.subr.bf16.mxu0 0
      %698 = vmatpush1.bf16.xpose.msra.mxu0 0
      %699 = vmatprep.subr.bf16.mxu0 0
      %700 = vmatpush1.bf16.xpose.msra.mxu0 0
      %701 = vmatprep.subr.bf16.mxu0 0
      %702 = vmatpush1.bf16.xpose.msra.mxu0 0
      %703 = vmatprep.subr.bf16.mxu0 0
      %704 = vmatpush1.bf16.xpose.msra.mxu0 0
      %705 = vmatprep.subr.bf16.mxu0 0
      %706 = vmatpush1.bf16.xpose.msra.mxu0 0
      %707 = vmatprep.subr.bf16.mxu0 0
      %708 = vmatpush1.bf16.xpose.msra.mxu0 0
      %709 = vmatprep.mubr.bf16.mxu0 0
      %710 = vmatmul.mubr.bf16.gmra.mrb[0].mxu0 %v672
      %v711 = vpop.f32.mrb[0].mxu0
      %v712 = vadd.f32 0.0, %v711
      %v713 = vpop.f32.mrb[0].mxu0
      %v714 = vpop.f32.mrb[0].mxu0
      %v715 = vpop.f32.mrb[0].mxu0
      %716 = vdwg.mxu0
      %v717 = vmul.f32 %v712, 0.35355338
      %v718 = vadd.f32 %v717, %v669
      %v719 = vsel %vm670, %v718, -inf
      %720 = vmax.xlane.f32.xlu0 %v719
      %v721 = vpop.xlane.xlu0 %720
      %v722 = vsub.f32 %v718, %v721
      %v723 = vmul.f32 %v722, 1.442695
      %v724 = vpow.pop %v723
      %v725 = vsel %vm670, %v724, 0.0
      %726 = vadd.xlane.f32.xlu0 %v725
      %v727 = vpop.xlane.xlu0 %726
      %v728 = vrcp.pop %v727
      %v729 = vmul.f32 %v724, %v728
      %v730 = vpack.c.bf16 %v729, %v729
      %v732 = vsel %vm670, %v730, 0
      %vm734 = vcmask 1043456
      %v736 = vsel %vm734, %v668, 0
      %738 = vmatprep.subr.bf16.mxu0 0
      %739 = vmatpush1.bf16.msra.mxu0 %v736
      %740 = vmatprep.subr.bf16.mxu0 0
      %741 = vmatpush1.bf16.msra.mxu0 0
      %742 = vmatprep.subr.bf16.mxu0 0
      %743 = vmatpush1.bf16.msra.mxu0 0
      %744 = vmatprep.subr.bf16.mxu0 0
      %745 = vmatpush1.bf16.msra.mxu0 0
      %746 = vmatprep.subr.bf16.mxu0 0
      %747 = vmatpush1.bf16.msra.mxu0 0
      %748 = vmatprep.subr.bf16.mxu0 0
      %749 = vmatpush1.bf16.msra.mxu0 0
      %750 = vmatprep.subr.bf16.mxu0 0
      %751 = vmatpush1.bf16.msra.mxu0 0
      %752 = vmatprep.subr.bf16.mxu0 0
      %753 = vmatpush1.bf16.msra.mxu0 0
      %754 = vmatprep.subr.bf16.mxu0 0
      %755 = vmatpush1.bf16.msra.mxu0 0
      %756 = vmatprep.subr.bf16.mxu0 0
      %757 = vmatpush1.bf16.msra.mxu0 0
      %758 = vmatprep.subr.bf16.mxu0 0
      %759 = vmatpush1.bf16.msra.mxu0 0
      %760 = vmatprep.subr.bf16.mxu0 0
      %761 = vmatpush1.bf16.msra.mxu0 0
      %762 = vmatprep.subr.bf16.mxu0 0
      %763 = vmatpush1.bf16.msra.mxu0 0
      %764 = vmatprep.subr.bf16.mxu0 0
      %765 = vmatpush1.bf16.msra.mxu0 0
      %766 = vmatprep.subr.bf16.mxu0 0
      %767 = vmatpush1.bf16.msra.mxu0 0
      %768 = vmatprep.subr.bf16.mxu0 0
      %769 = vmatpush1.bf16.msra.mxu0 0
      %770 = vmatprep.mubr.bf16.mxu0 0
      %771 = vmatmul.mubr.bf16.gmra.mrb[0].mxu0 %v732
      %v772 = vpop.f32.mrb[0].mxu0
      %v773 = vadd.f32 0.0, %v772
      %v774 = vpop.f32.mrb[0].mxu0
      %v775 = vpop.f32.mrb[0].mxu0
      %v776 = vpop.f32.mrb[0].mxu0
      %777 = vdwg.mxu0
      %779 = vrot.lane.b32.xlu0 %v666, 120
      %v780 = vpop.permute.xlu0 %779
      %782 = vrot.lane.b32.xlu0 %v667, 120
      %v783 = vpop.permute.xlu0 %782
      %v785 = vsel %vm670, %v780, 0
      %v788 = vsel %vm670, %v783, 0
      %790 = vmatprep.subr.bf16.mxu0 0
      %791 = vmatpush1.bf16.xpose.msra.mxu0 %v788
      %792 = vmatprep.subr.bf16.mxu0 0
      %793 = vmatpush1.bf16.xpose.msra.mxu0 0
      %794 = vmatprep.subr.bf16.mxu0 0
      %795 = vmatpush1.bf16.xpose.msra.mxu0 0
      %796 = vmatprep.subr.bf16.mxu0 0
      %797 = vmatpush1.bf16.xpose.msra.mxu0 0
      %798 = vmatprep.subr.bf16.mxu0 0
      %799 = vmatpush1.bf16.xpose.msra.mxu0 0
      %800 = vmatprep.subr.bf16.mxu0 0
      %801 = vmatpush1.bf16.xpose.msra.mxu0 0
      %802 = vmatprep.subr.bf16.mxu0 0
      %803 = vmatpush1.bf16.xpose.msra.mxu0 0
      %804 = vmatprep.subr.bf16.mxu0 0
      %805 = vmatpush1.bf16.xpose.msra.mxu0 0
      %806 = vmatprep.subr.bf16.mxu0 0
      %807 = vmatpush1.bf16.xpose.msra.mxu0 0
      %808 = vmatprep.subr.bf16.mxu0 0
      %809 = vmatpush1.bf16.xpose.msra.mxu0 0
      %810 = vmatprep.subr.bf16.mxu0 0
      %811 = vmatpush1.bf16.xpose.msra.mxu0 0
      %812 = vmatprep.subr.bf16.mxu0 0
      %813 = vmatpush1.bf16.xpose.msra.mxu0 0
      %814 = vmatprep.subr.bf16.mxu0 0
      %815 = vmatpush1.bf16.xpose.msra.mxu0 0
      %816 = vmatprep.subr.bf16.mxu0 0
      %817 = vmatpush1.bf16.xpose.msra.mxu0 0
      %818 = vmatprep.subr.bf16.mxu0 0
      %819 = vmatpush1.bf16.xpose.msra.mxu0 0
      %820 = vmatprep.subr.bf16.mxu0 0
      %821 = vmatpush1.bf16.xpose.msra.mxu0 0
      %822 = vmatprep.mubr.bf16.mxu0 0
      %823 = vmatmul.mubr.bf16.gmra.mrb[0].mxu0 %v785
      %v824 = vpop.f32.mrb[0].mxu0
      %v825 = vadd.f32 0.0, %v824
      %v826 = vpop.f32.mrb[0].mxu0
      %v827 = vpop.f32.mrb[0].mxu0
      %v828 = vpop.f32.mrb[0].mxu0
      %829 = vdwg.mxu0
      %v830 = vmul.f32 %v825, 0.35355338
      %v831 = vadd.f32 %v830, %v669
      %v832 = vsel %vm670, %v831, -inf
      %833 = vmax.xlane.f32.xlu0 %v832
      %v834 = vpop.xlane.xlu0 %833
      %v835 = vsub.f32 %v831, %v834
      %v836 = vmul.f32 %v835, 1.442695
      %v837 = vpow.pop %v836
      %v838 = vsel %vm670, %v837, 0.0
      %839 = vadd.xlane.f32.xlu0 %v838
      %v840 = vpop.xlane.xlu0 %839
      %v841 = vrcp.pop %v840
      %v842 = vmul.f32 %v837, %v841
      %v843 = vpack.c.bf16 %v842, %v842
      %845 = vrot.lane.b32.xlu0 %v668, 120
      %v846 = vpop.permute.xlu0 %845
      %v848 = vsel %vm670, %v843, 0
      %v851 = vsel %vm734, %v846, 0
      %853 = vmatprep.subr.bf16.mxu0 0
      %854 = vmatpush1.bf16.msra.mxu0 %v851
      %855 = vmatprep.subr.bf16.mxu0 0
      %856 = vmatpush1.bf16.msra.mxu0 0
      %857 = vmatprep.subr.bf16.mxu0 0
      %858 = vmatpush1.bf16.msra.mxu0 0
      %859 = vmatprep.subr.bf16.mxu0 0
      %860 = vmatpush1.bf16.msra.mxu0 0
      %861 = vmatprep.subr.bf16.mxu0 0
      %862 = vmatpush1.bf16.msra.mxu0 0
      %863 = vmatprep.subr.bf16.mxu0 0
      %864 = vmatpush1.bf16.msra.mxu0 0
      %865 = vmatprep.subr.bf16.mxu0 0
      %866 = vmatpush1.bf16.msra.mxu0 0
      %867 = vmatprep.subr.bf16.mxu0 0
      %868 = vmatpush1.bf16.msra.mxu0 0
      %869 = vmatprep.subr.bf16.mxu0 0
      %870 = vmatpush1.bf16.msra.mxu0 0
      %871 = vmatprep.subr.bf16.mxu0 0
      %872 = vmatpush1.bf16.msra.mxu0 0
      %873 = vmatprep.subr.bf16.mxu0 0
      %874 = vmatpush1.bf16.msra.mxu0 0
      %875 = vmatprep.subr.bf16.mxu0 0
      %876 = vmatpush1.bf16.msra.mxu0 0
      %877 = vmatprep.subr.bf16.mxu0 0
      %878 = vmatpush1.bf16.msra.mxu0 0
      %879 = vmatprep.subr.bf16.mxu0 0
      %880 = vmatpush1.bf16.msra.mxu0 0
      %881 = vmatprep.subr.bf16.mxu0 0
      %882 = vmatpush1.bf16.msra.mxu0 0
      %883 = vmatprep.subr.bf16.mxu0 0
      %884 = vmatpush1.bf16.msra.mxu0 0
      %885 = vmatprep.mubr.bf16.mxu0 0
      %886 = vmatmul.mubr.bf16.gmra.mrb[0].mxu0 %v848
      %v887 = vpop.f32.mrb[0].mxu0
      %v888 = vadd.f32 0.0, %v887
      %v889 = vpop.f32.mrb[0].mxu0
      %v890 = vpop.f32.mrb[0].mxu0
      %v891 = vpop.f32.mrb[0].mxu0
      %892 = vdwg.mxu0
      %893 = vrot.lane.b32.xlu0 %v666, 112
      %v894 = vpop.permute.xlu0 %893
      %895 = vrot.lane.b32.xlu0 %v667, 112
      %v896 = vpop.permute.xlu0 %895
      %v898 = vsel %vm670, %v894, 0
      %v901 = vsel %vm670, %v896, 0
      %903 = vmatprep.subr.bf16.mxu0 0
      %904 = vmatpush1.bf16.xpose.msra.mxu0 %v901
      %905 = vmatprep.subr.bf16.mxu0 0
      %906 = vmatpush1.bf16.xpose.msra.mxu0 0
      %907 = vmatprep.subr.bf16.mxu0 0
      %908 = vmatpush1.bf16.xpose.msra.mxu0 0
      %909 = vmatprep.subr.bf16.mxu0 0
      %910 = vmatpush1.bf16.xpose.msra.mxu0 0
      %911 = vmatprep.subr.bf16.mxu0 0
      %912 = vmatpush1.bf16.xpose.msra.mxu0 0
      %913 = vmatprep.subr.bf16.mxu0 0
      %914 = vmatpush1.bf16.xpose.msra.mxu0 0
      %915 = vmatprep.subr.bf16.mxu0 0
      %916 = vmatpush1.bf16.xpose.msra.mxu0 0
      %917 = vmatprep.subr.bf16.mxu0 0
      %918 = vmatpush1.bf16.xpose.msra.mxu0 0
      %919 = vmatprep.subr.bf16.mxu0 0
      %920 = vmatpush1.bf16.xpose.msra.mxu0 0
      %921 = vmatprep.subr.bf16.mxu0 0
      %922 = vmatpush1.bf16.xpose.msra.mxu0 0
      %923 = vmatprep.subr.bf16.mxu0 0
      %924 = vmatpush1.bf16.xpose.msra.mxu0 0
      %925 = vmatprep.subr.bf16.mxu0 0
      %926 = vmatpush1.bf16.xpose.msra.mxu0 0
      %927 = vmatprep.subr.bf16.mxu0 0
      %928 = vmatpush1.bf16.xpose.msra.mxu0 0
      %929 = vmatprep.subr.bf16.mxu0 0
      %930 = vmatpush1.bf16.xpose.msra.mxu0 0
      %931 = vmatprep.subr.bf16.mxu0 0
      %932 = vmatpush1.bf16.xpose.msra.mxu0 0
      %933 = vmatprep.subr.bf16.mxu0 0
      %934 = vmatpush1.bf16.xpose.msra.mxu0 0
      %935 = vmatprep.mubr.bf16.mxu0 0
      %936 = vmatmul.mubr.bf16.gmra.mrb[0].mxu0 %v898
      %v937 = vpop.f32.mrb[0].mxu0
      %v938 = vadd.f32 0.0, %v937
      %v939 = vpop.f32.mrb[0].mxu0
      %v940 = vpop.f32.mrb[0].mxu0
      %v941 = vpop.f32.mrb[0].mxu0
      %942 = vdwg.mxu0
      %v943 = vmul.f32 %v938, 0.35355338
      %v944 = vadd.f32 %v943, %v669
      %v945 = vsel %vm670, %v944, -inf
      %946 = vmax.xlane.f32.xlu0 %v945
      %v947 = vpop.xlane.xlu0 %946
      %v948 = vsub.f32 %v944, %v947
      %v949 = vmul.f32 %v948, 1.442695
      %v950 = vpow.pop %v949
      %v951 = vsel %vm670, %v950, 0.0
      %952 = vadd.xlane.f32.xlu0 %v951
      %v953 = vpop.xlane.xlu0 %952
      %v954 = vrcp.pop %v953
      %v955 = vmul.f32 %v950, %v954
      %v956 = vpack.c.bf16 %v955, %v955
      %957 = vrot.lane.b32.xlu0 %v668, 112
      %v958 = vpop.permute.xlu0 %957
      %v960 = vsel %vm670, %v956, 0
      %v963 = vsel %vm734, %v958, 0
      %965 = vmatprep.subr.bf16.mxu0 0
      %966 = vmatpush1.bf16.msra.mxu0 %v963
      %967 = vmatprep.subr.bf16.mxu0 0
      %968 = vmatpush1.bf16.msra.mxu0 0
      %969 = vmatprep.subr.bf16.mxu0 0
      %970 = vmatpush1.bf16.msra.mxu0 0
      %971 = vmatprep.subr.bf16.mxu0 0
      %972 = vmatpush1.bf16.msra.mxu0 0
      %973 = vmatprep.subr.bf16.mxu0 0
      %974 = vmatpush1.bf16.msra.mxu0 0
      %975 = vmatprep.subr.bf16.mxu0 0
      %976 = vmatpush1.bf16.msra.mxu0 0
      %977 = vmatprep.subr.bf16.mxu0 0
      %978 = vmatpush1.bf16.msra.mxu0 0
      %979 = vmatprep.subr.bf16.mxu0 0
      %980 = vmatpush1.bf16.msra.mxu0 0
      %981 = vmatprep.subr.bf16.mxu0 0
      %982 = vmatpush1.bf16.msra.mxu0 0
      %983 = vmatprep.subr.bf16.mxu0 0
      %984 = vmatpush1.bf16.msra.mxu0 0
      %985 = vmatprep.subr.bf16.mxu0 0
      %986 = vmatpush1.bf16.msra.mxu0 0
      %987 = vmatprep.subr.bf16.mxu0 0
      %988 = vmatpush1.bf16.msra.mxu0 0
      %989 = vmatprep.subr.bf16.mxu0 0
      %990 = vmatpush1.bf16.msra.mxu0 0
      %991 = vmatprep.subr.bf16.mxu0 0
      %992 = vmatpush1.bf16.msra.mxu0 0
      %993 = vmatprep.subr.bf16.mxu0 0
      %994 = vmatpush1.bf16.msra.mxu0 0
      %995 = vmatprep.subr.bf16.mxu0 0
      %996 = vmatpush1.bf16.msra.mxu0 0
      %997 = vmatprep.mubr.bf16.mxu0 0
      %998 = vmatmul.mubr.bf16.gmra.mrb[0].mxu0 %v960
      %v999 = vpop.f32.mrb[0].mxu0
      %v1000 = vadd.f32 0.0, %v999
      %v1001 = vpop.f32.mrb[0].mxu0
      %v1002 = vpop.f32.mrb[0].mxu0
      %v1003 = vpop.f32.mrb[0].mxu0
      %1004 = vdwg.mxu0
      %1005 = vrot.lane.b32.xlu0 %v666, 104
      %v1006 = vpop.permute.xlu0 %1005
      %1007 = vrot.lane.b32.xlu0 %v667, 104
      %v1008 = vpop.permute.xlu0 %1007
      %v1010 = vsel %vm670, %v1006, 0
      %v1013 = vsel %vm670, %v1008, 0
      %1015 = vmatprep.subr.bf16.mxu0 0
      %1016 = vmatpush1.bf16.xpose.msra.mxu0 %v1013
      %1017 = vmatprep.subr.bf16.mxu0 0
      %1018 = vmatpush1.bf16.xpose.msra.mxu0 0
      %1019 = vmatprep.subr.bf16.mxu0 0
      %1020 = vmatpush1.bf16.xpose.msra.mxu0 0
      %1021 = vmatprep.subr.bf16.mxu0 0
      %1022 = vmatpush1.bf16.xpose.msra.mxu0 0
      %1023 = vmatprep.subr.bf16.mxu0 0
      %1024 = vmatpush1.bf16.xpose.msra.mxu0 0
      %1025 = vmatprep.subr.bf16.mxu0 0
      %1026 = vmatpush1.bf16.xpose.msra.mxu0 0
      %1027 = vmatprep.subr.bf16.mxu0 0
      %1028 = vmatpush1.bf16.xpose.msra.mxu0 0
      %1029 = vmatprep.subr.bf16.mxu0 0
      %1030 = vmatpush1.bf16.xpose.msra.mxu0 0
      %1031 = vmatprep.subr.bf16.mxu0 0
      %1032 = vmatpush1.bf16.xpose.msra.mxu0 0
      %1033 = vmatprep.subr.bf16.mxu0 0
      %1034 = vmatpush1.bf16.xpose.msra.mxu0 0
      %1035 = vmatprep.subr.bf16.mxu0 0
      %1036 = vmatpush1.bf16.xpose.msra.mxu0 0
      %1037 = vmatprep.subr.bf16.mxu0 0
      %1038 = vmatpush1.bf16.xpose.msra.mxu0 0
      %1039 = vmatprep.subr.bf16.mxu0 0
      %1040 = vmatpush1.bf16.xpose.msra.mxu0 0
      %1041 = vmatprep.subr.bf16.mxu0 0
      %1042 = vmatpush1.bf16.xpose.msra.mxu0 0
      %1043 = vmatprep.subr.bf16.mxu0 0
      %1044 = vmatpush1.bf16.xpose.msra.mxu0 0
      %1045 = vmatprep.subr.bf16.mxu0 0
      %1046 = vmatpush1.bf16.xpose.msra.mxu0 0
      %1047 = vmatprep.mubr.bf16.mxu0 0
      %1048 = vmatmul.mubr.bf16.gmra.mrb[0].mxu0 %v1010
      %v1049 = vpop.f32.mrb[0].mxu0
      %v1050 = vadd.f32 0.0, %v1049
      %v1051 = vpop.f32.mrb[0].mxu0
      %v1052 = vpop.f32.mrb[0].mxu0
      %v1053 = vpop.f32.mrb[0].mxu0
      %1054 = vdwg.mxu0
      %v1055 = vmul.f32 %v1050, 0.35355338
      %v1056 = vadd.f32 %v1055, %v669
      %v1057 = vsel %vm670, %v1056, -inf
      %1058 = vmax.xlane.f32.xlu0 %v1057
      %v1059 = vpop.xlane.xlu0 %1058
      %v1060 = vsub.f32 %v1056, %v1059
      %v1061 = vmul.f32 %v1060, 1.442695
      %v1062 = vpow.pop %v1061
      %v1063 = vsel %vm670, %v1062, 0.0
      %1064 = vadd.xlane.f32.xlu0 %v1063
      %v1065 = vpop.xlane.xlu0 %1064
      %v1066 = vrcp.pop %v1065
      %v1067 = vmul.f32 %v1062, %v1066
      %v1068 = vpack.c.bf16 %v1067, %v1067
      %1069 = vrot.lane.b32.xlu0 %v668, 104
      %v1070 = vpop.permute.xlu0 %1069
      %v1072 = vsel %vm670, %v1068, 0
      %v1075 = vsel %vm734, %v1070, 0
      %1077 = vmatprep.subr.bf16.mxu0 0
      %1078 = vmatpush1.bf16.msra.mxu0 %v1075
      %1079 = vmatprep.subr.bf16.mxu0 0
      %1080 = vmatpush1.bf16.msra.mxu0 0
      %1081 = vmatprep.subr.bf16.mxu0 0
      %1082 = vmatpush1.bf16.msra.mxu0 0
      %1083 = vmatprep.subr.bf16.mxu0 0
      %1084 = vmatpush1.bf16.msra.mxu0 0
      %1085 = vmatprep.subr.bf16.mxu0 0
      %1086 = vmatpush1.bf16.msra.mxu0 0
      %1087 = vmatprep.subr.bf16.mxu0 0
      %1088 = vmatpush1.bf16.msra.mxu0 0
      %1089 = vmatprep.subr.bf16.mxu0 0
      %1090 = vmatpush1.bf16.msra.mxu0 0
      %1091 = vmatprep.subr.bf16.mxu0 0
      %1092 = vmatpush1.bf16.msra.mxu0 0
      %1093 = vmatprep.subr.bf16.mxu0 0
      %1094 = vmatpush1.bf16.msra.mxu0 0
      %1095 = vmatprep.subr.bf16.mxu0 0
      %1096 = vmatpush1.bf16.msra.mxu0 0
      %1097 = vmatprep.subr.bf16.mxu0 0
      %1098 = vmatpush1.bf16.msra.mxu0 0
      %1099 = vmatprep.subr.bf16.mxu0 0
      %1100 = vmatpush1.bf16.msra.mxu0 0
      %1101 = vmatprep.subr.bf16.mxu0 0
      %1102 = vmatpush1.bf16.msra.mxu0 0
      %1103 = vmatprep.subr.bf16.mxu0 0
      %1104 = vmatpush1.bf16.msra.mxu0 0
      %1105 = vmatprep.subr.bf16.mxu0 0
      %1106 = vmatpush1.bf16.msra.mxu0 0
      %1107 = vmatprep.subr.bf16.mxu0 0
      %1108 = vmatpush1.bf16.msra.mxu0 0
      %1109 = vmatprep.mubr.bf16.mxu0 0
      %1110 = vmatmul.mubr.bf16.gmra.mrb[0].mxu0 %v1072
      %v1111 = vpop.f32.mrb[0].mxu0
      %v1112 = vadd.f32 0.0, %v1111
      %v1113 = vpop.f32.mrb[0].mxu0
      %v1114 = vpop.f32.mrb[0].mxu0
      %v1115 = vpop.f32.mrb[0].mxu0
      %1116 = vdwg.mxu0
      %1118 = vrot.lane.b32.xlu0 %v888, 8
      %v1119 = vpop.permute.xlu0 %1118
      %1122 = vrot.lane.b32.xlu0 %v1000, 16
      %v1123 = vpop.permute.xlu0 %1122
      %1126 = vrot.lane.b32.xlu0 %v1112, 24
      %v1127 = vpop.permute.xlu0 %1126
      %v1129 = vsel %vm670, %v773, %v1119
      %vm1130 = vcmask 130048
      %v1131 = vsel %vm1130, %v1129, %v1123
      %vm1132 = vcmask 195584
      %v1133 = vsel %vm1132, %v1131, %v1127
      %v1134 = vpack.c.bf16 %v1133, %v1133
      %v1135 = vld [vmem:[%s10] sm:$0xf]
      %v1136 = vld [vmem:[%s10 + $0x4] sm:$0xf]
      %v1137 = vld [vmem:[%s10 + $0x8] sm:$0xf]
      %v1138 = vld [vmem:[%s10 + $0xc] sm:$0xf]
      %v1143 = vunpack.c.l.b16 %v1135
      %v1144 = vunpack.c.l.b16 %v1136
      %v1145 = vunpack.c.l.b16 %v1137
      %v1146 = vunpack.c.l.b16 %v1138
      %v1147 = vpack.c.b16 %v1144, %v1143
      %v1148 = vpack.c.b16 %v1146, %v1145
      %v1152 = vsel %vm444, %v1134, 0
      %1154 = vmatprep.subr.bf16.mxu0 0
      %1155 = vmatpush1.bf16.msra.mxu0 %v1147
      %1156 = vmatprep.subr.bf16.mxu0 0
      %1157 = vmatpush1.bf16.msra.mxu0 %v1148
      %1158 = vmatprep.subr.bf16.mxu0 0
      %1159 = vmatpush1.bf16.msra.mxu0 0
      %1160 = vmatprep.subr.bf16.mxu0 0
      %1161 = vmatpush1.bf16.msra.mxu0 0
      %1162 = vmatprep.subr.bf16.mxu0 0
      %1163 = vmatpush1.bf16.msra.mxu0 0
      %1164 = vmatprep.subr.bf16.mxu0 0
      %1165 = vmatpush1.bf16.msra.mxu0 0
      %1166 = vmatprep.subr.bf16.mxu0 0
      %1167 = vmatpush1.bf16.msra.mxu0 0
      %1168 = vmatprep.subr.bf16.mxu0 0
      %1169 = vmatpush1.bf16.msra.mxu0 0
      %1170 = vmatprep.subr.bf16.mxu0 0
      %1171 = vmatpush1.bf16.msra.mxu0 0
      %1172 = vmatprep.subr.bf16.mxu0 0
      %1173 = vmatpush1.bf16.msra.mxu0 0
      %1174 = vmatprep.subr.bf16.mxu0 0
      %1175 = vmatpush1.bf16.msra.mxu0 0
      %1176 = vmatprep.subr.bf16.mxu0 0
      %1177 = vmatpush1.bf16.msra.mxu0 0
      %1178 = vmatprep.subr.bf16.mxu0 0
      %1179 = vmatpush1.bf16.msra.mxu0 0
      %1180 = vmatprep.subr.bf16.mxu0 0
      %1181 = vmatpush1.bf16.msra.mxu0 0
      %1182 = vmatprep.subr.bf16.mxu0 0
      %1183 = vmatpush1.bf16.msra.mxu0 0
      %1184 = vmatprep.subr.bf16.mxu0 0
      %1185 = vmatpush1.bf16.msra.mxu0 0
      %1186 = vmatprep.mubr.bf16.mxu0 0
      %1187 = vmatmul.mubr.bf16.gmra.mrb[0].mxu0 %v1152
      %v1188 = vpop.f32.mrb[0].mxu0
      %v1189 = vadd.f32 0.0, %v1188
      %v1190 = vpop.f32.mrb[0].mxu0
      %v1191 = vpop.f32.mrb[0].mxu0
      %v1192 = vpop.f32.mrb[0].mxu0
      %1193 = vdwg.mxu0
      %v1194 = vadd.f32 %v441, %v1189
      %v1195 = vld [vmem:[%s11] sm:$0x1]
      %v1197 = vlaneseq
      %v1198 = vshrl.u32 %v1197, 7
      %v1199 = vsub.s32 0, %v1198
      %v1200 = vrot.slane %v1195, %v1199
      %v1202 = vadd.f32 %v1194, %v1200
      %1203 = vst.msk [vmem:[%s439] sm:$0xff] %vm444, %v1202
      %p1204 = scmp.lt.s32.totalorder %s27, 1
      %s1205 = scalar_select %p1204, %s27, 1
      %p1206 = scmp.lt.s32.totalorder %s28, 0
      %s1207 = scalar_select %p1206, %s28, 0
      %s1208 = sadd.s32 %s1207, %s1205
      %s1209 = smul.addr %s1208, 8
      %s1210 = scalar_lea.vmem %s12, %s1209
      // Predicated region
      $region69: #{decoder_forward.7} parent=67 // pred_check
        %p1211 = pneg %p314
      $region70: #{decoder_forward.7} parent=67 // pred_check_branch
        %1213 = sbr.rel (%p1211) target = $region72
      $region71: #{decoder_forward.7} parent=67 // pred_region
        _
      $region72: #{decoder_forward.7} parent=67 // pred_fallthru
        _
    $region68: #{decoder_forward.7} parent=5 // pred_fallthru
      _
    %p1214 = scmp.le.s32.totalorder 2, %s18
    // Predicated region
    $region73: #{decoder_forward.7} parent=5 // pred_check
      %p1215 = pneg %p1214
    $region74: #{decoder_forward.7} parent=5 // pred_check_branch
      %1217 = sbr.rel (%p1215) target = $region76
    $region75: #{decoder_forward.7} parent=5 // pred_region
      %s1218 = ssub.s32 %s18, 2
      // Predicated region
      $region77: #{decoder_forward.7} parent=75 // pred_check
        %p1219 = pneg %p320
      $region78: #{decoder_forward.7} parent=75 // pred_check_branch
        %1221 = sbr.rel (%p1219) target = $region80
      $region79: #{decoder_forward.7} parent=75 // pred_region
        %p1222 = scmp.lt.s32.totalorder %s29, 1
        %s1223 = scalar_select %p1222, %s29, 1
        %p1224 = scmp.lt.s32.totalorder %s30, 0
        %s1225 = scalar_select %p1224, %s30, 0
        %s1226 = sadd.s32 %s1225, %s1223
        %s1227 = smul.addr %s1226, 8
        %s1228 = scalar_lea.vmem %s12, %s1227
      $region80: #{decoder_forward.7} parent=75 // pred_fallthru
        _
    $region76: #{decoder_forward.7} parent=5 // pred_fallthru
      _
  $region6: #{decoder_forward.7} parent=0 // loop_footer
    %s22 = sadd.s32 1, %s18
  $region7: #{decoder_forward.7} parent=0 // loop_footer_branch
    %17 = sbr.rel target = $region3
  $region8: #{decoder_forward.7} parent=0 // loop_exit
    _

// kernel: decoder_forward.8
$region0: #{decoder_forward.8}
  #allocation0 [shape = 'u32[]', space=smem, size = 0x4, offset = 0x4, fixed_abs, tag = 'smem constant byte address 0x4 - core index']
  #allocation1 [shape = 'u32[144,128]{1,0:T(1,128)}', space=vmem, size = 0x12000, scoped, tag = 'internal scratch']
  %s0 = inlined_call_operand.vmem [shape: f32[2,8,32], index: 0, kind: input, shape index: {}]
  %s1 = inlined_call_operand.vmem [shape: f32[2,8,32], index: 1, kind: input, shape index: {}]
  %s2 = inlined_call_operand.vmem [shape: f32[1,8,8], index: 2, kind: input, shape index: {}]
  %s3 = inlined_call_operand.vmem [shape: f32[1,32], index: 3, kind: input, shape index: {}]
  %s4 = inlined_call_operand.vmem [shape: f32[1,32], index: 4, kind: input, shape index: {}]
  %s5 = inlined_call_operand.vmem [shape: bf16[32,32], index: 5, kind: input, shape index: {}]
  %s6 = inlined_call_operand.vmem [shape: f32[1,32], index: 6, kind: input, shape index: {}]
  %s7 = inlined_call_operand.vmem [shape: bf16[32,32], index: 7, kind: input, shape index: {}]
  %s8 = inlined_call_operand.vmem [shape: f32[1,32], index: 8, kind: input, shape index: {}]
  %s9 = inlined_call_operand.vmem [shape: bf16[32,32], index: 9, kind: input, shape index: {}]
  %s10 = inlined_call_operand.vmem [shape: f32[1,32], index: 10, kind: input, shape index: {}]
  %s11 = inlined_call_operand.vmem [shape: bf16[32,32], index: 11, kind: input, shape index: {}]
  %s12 = inlined_call_operand.vmem [shape: f32[1,32], index: 12, kind: input, shape index: {}]
  %s13 = inlined_call_operand.vmem [shape: f32[2,8,32], index: 13, kind: output, shape index: {}]
  %s14 = sld [smem:[#allocation0]]
  $region85: #{decoder_forward.8} parent=0
    _
  %s16 = ssub.s32 1, %s14
  %s17 = scalar_select 0, %s16, %s14
  loop: start=0, step=1, limit=4
  $region2: #{decoder_forward.8} parent=0 // loop_pre_header
    _
  $region3: #{decoder_forward.8} parent=0 // loop_header
    %s19 = sphi 0, %s23
    %p20 = scmp.ge.s32.totalorder %s19, 4
    %s26 = sphi 0, %s38
    %s27 = sphi 0, %s34
    %s28 = sphi 0, %s26
    %s29 = sphi 0, %s27
    %s30 = sphi 0, %s28
    %s31 = sphi 0, %s29
    %s43 = sphi 0, %s45
    %s46 = sphi 0, %s43
    %s47 = sphi 0, %s46
    %s63 = sphi 0, %s47
    %s69 = sphi 0, %s71
    %s72 = sphi 0, %s69
    %s73 = sphi 0, %s72
    %s89 = sphi 0, %s73
    %s93 = sphi 0, %s93
    %s95 = sphi 0, %s93
    %s96 = sphi 0, %s95
    %s110 = sphi 0, %s96
    %s114 = sphi 0, %s114
    %s116 = sphi 0, %s114
    %s117 = sphi 0, %s116
    %s131 = sphi 0, %s117
    %s135 = sphi 0, %s135
    %s137 = sphi 0, %s135
    %s138 = sphi 0, %s137
    %s152 = sphi 0, %s138
    %s156 = sphi 0, %s156
    %s158 = sphi 0, %s156
    %s159 = sphi 0, %s158
    %s173 = sphi 0, %s159
    %s177 = sphi 0, %s177
    %s179 = sphi 0, %s177
    %s180 = sphi 0, %s179
    %s194 = sphi 0, %s180
    %s198 = sphi 0, %s198
    %s200 = sphi 0, %s198
    %s201 = sphi 0, %s200
    %s215 = sphi 0, %s201
    %s219 = sphi 0, %s219
    %s221 = sphi 0, %s219
    %s222 = sphi 0, %s221
    %s236 = sphi 0, %s222
    %s240 = sphi 0, %s240
    %s242 = sphi 0, %s240
    %s243 = sphi 0, %s242
    %s257 = sphi 0, %s243
    %s261 = sphi 0, %s261
    %s263 = sphi 0, %s261
    %s264 = sphi 0, %s263
    %s278 = sphi 0, %s264
    %s282 = sphi 0, %s282
    %s284 = sphi 0, %s282
    %s285 = sphi 0, %s284
    %s299 = sphi 0, %s285
    %s303 = sphi 0, %s303
    %s305 = sphi 0, %s303
    %s306 = sphi 0, %s305
    %s320 = sphi 0, %s306
    %s328 = sphi 0, %s330
    %s331 = sphi 0, %s328
    %s332 = sphi 0, %s331
    %s348 = sphi 0, %s332
  $region4: #{decoder_forward.8} parent=0 // loop_header_branch
    %22 = sbr.rel (%p20) target = $region8
  $region5: #{decoder_forward.8} parent=0 // loop_body
    %s24 = ssub.s32 %s19, 1
    %s25 = ssub.s32 %s19, 2
    %s32 = sadd.s32 1, %s27
    %p33 = scmp.ge.s32.totalorder %s32, 1
    %s34 = scalar_select %p33, 0, %s32
    %s35 = sadd.s32 1, %s26
    %s36 = scalar_select %p33, %s35, %s26
    %p37 = scmp.ge.s32.totalorder %s36, 2
    %s38 = scalar_select %p37, 0, %s36
    %s39 = ssub.s32 %s26, %s38
    %s40 = ssub.s32 %s27, %s34
    %s41 = sor.u32 %s39, %s40
    %p42 = scmp.eq.s32.totalorder %s41, 0
    %s44 = sadd.s32 %s43, 1
    %s45 = scalar_select %p42, %s43, %s44
    %p48 = pneg %p42
    %p49 = scmp.eq.s32.totalorder %s19, 1
    %p50 = por %p48, %p49
    %p51 = scmp.ne.s32.totalorder %s43, %s46
    %p52 = scmp.eq.s32.totalorder %s19, 0
    %p53 = por %p51, %p52
    %p54 = scmp.ne.s32.totalorder %s43, %s46
    %p55 = scmp.eq.s32.totalorder %s24, 1
    %p56 = por %p54, %p55
    %p57 = scmp.ne.s32.totalorder %s46, %s47
    %p58 = scmp.eq.s32.totalorder %s24, 0
    %p59 = por %p57, %p58
    %p60 = scmp.ne.s32.totalorder %s46, %s47
    %p61 = scmp.eq.s32.totalorder %s25, 1
    %p62 = por %p60, %p61
    %p64 = scmp.ne.s32.totalorder %s47, %s63
    %p65 = scmp.eq.s32.totalorder %s25, 0
    %p66 = por %p64, %p65
    %s67 = ssub.s32 %s26, %s38
    %p68 = scmp.eq.s32.totalorder %s67, 0
    %s70 = sadd.s32 %s69, 1
    %s71 = scalar_select %p68, %s69, %s70
    %p74 = pneg %p68
    %p75 = scmp.eq.s32.totalorder %s19, 1
    %p76 = por %p74, %p75
    %p77 = scmp.ne.s32.totalorder %s69, %s72
    %p78 = scmp.eq.s32.totalorder %s19, 0
    %p79 = por %p77, %p78
    %p80 = scmp.ne.s32.totalorder %s69, %s72
    %p81 = scmp.eq.s32.totalorder %s24, 1
    %p82 = por %p80, %p81
    %p83 = scmp.ne.s32.totalorder %s72, %s73
    %p84 = scmp.eq.s32.totalorder %s24, 0
    %p85 = por %p83, %p84
    %p86 = scmp.ne.s32.totalorder %s72, %s73
    %p87 = scmp.eq.s32.totalorder %s25, 1
    %p88 = por %p86, %p87
    %p90 = scmp.ne.s32.totalorder %s73, %s89
    %p91 = scmp.eq.s32.totalorder %s25, 0
    %p92 = por %p90, %p91
    %s94 = sadd.s32 %s93, 1
    %p97 = scmp.eq.s32.totalorder %s19, 1
    %p98 = scmp.ne.s32.totalorder %s93, %s95
    %p99 = scmp.eq.s32.totalorder %s19, 0
    %p100 = por %p98, %p99
    %p101 = scmp.ne.s32.totalorder %s93, %s95
    %p102 = scmp.eq.s32.totalorder %s24, 1
    %p103 = por %p101, %p102
    %p104 = scmp.ne.s32.totalorder %s95, %s96
    %p105 = scmp.eq.s32.totalorder %s24, 0
    %p106 = por %p104, %p105
    %p107 = scmp.ne.s32.totalorder %s95, %s96
    %p108 = scmp.eq.s32.totalorder %s25, 1
    %p109 = por %p107, %p108
    %p111 = scmp.ne.s32.totalorder %s96, %s110
    %p112 = scmp.eq.s32.totalorder %s25, 0
    %p113 = por %p111, %p112
    %s115 = sadd.s32 %s114, 1
    %p118 = scmp.eq.s32.totalorder %s19, 1
    %p119 = scmp.ne.s32.totalorder %s114, %s116
    %p120 = scmp.eq.s32.totalorder %s19, 0
    %p121 = por %p119, %p120
    %p122 = scmp.ne.s32.totalorder %s114, %s116
    %p123 = scmp.eq.s32.totalorder %s24, 1
    %p124 = por %p122, %p123
    %p125 = scmp.ne.s32.totalorder %s116, %s117
    %p126 = scmp.eq.s32.totalorder %s24, 0
    %p127 = por %p125, %p126
    %p128 = scmp.ne.s32.totalorder %s116, %s117
    %p129 = scmp.eq.s32.totalorder %s25, 1
    %p130 = por %p128, %p129
    %p132 = scmp.ne.s32.totalorder %s117, %s131
    %p133 = scmp.eq.s32.totalorder %s25, 0
    %p134 = por %p132, %p133
    %s136 = sadd.s32 %s135, 1
    %p139 = scmp.eq.s32.totalorder %s19, 1
    %p140 = scmp.ne.s32.totalorder %s135, %s137
    %p141 = scmp.eq.s32.totalorder %s19, 0
    %p142 = por %p140, %p141
    %p143 = scmp.ne.s32.totalorder %s135, %s137
    %p144 = scmp.eq.s32.totalorder %s24, 1
    %p145 = por %p143, %p144
    %p146 = scmp.ne.s32.totalorder %s137, %s138
    %p147 = scmp.eq.s32.totalorder %s24, 0
    %p148 = por %p146, %p147
    %p149 = scmp.ne.s32.totalorder %s137, %s138
    %p150 = scmp.eq.s32.totalorder %s25, 1
    %p151 = por %p149, %p150
    %p153 = scmp.ne.s32.totalorder %s138, %s152
    %p154 = scmp.eq.s32.totalorder %s25, 0
    %p155 = por %p153, %p154
    %s157 = sadd.s32 %s156, 1
    %p160 = scmp.eq.s32.totalorder %s19, 1
    %p161 = scmp.ne.s32.totalorder %s156, %s158
    %p162 = scmp.eq.s32.totalorder %s19, 0
    %p163 = por %p161, %p162
    %p164 = scmp.ne.s32.totalorder %s156, %s158
    %p165 = scmp.eq.s32.totalorder %s24, 1
    %p166 = por %p164, %p165
    %p167 = scmp.ne.s32.totalorder %s158, %s159
    %p168 = scmp.eq.s32.totalorder %s24, 0
    %p169 = por %p167, %p168
    %p170 = scmp.ne.s32.totalorder %s158, %s159
    %p171 = scmp.eq.s32.totalorder %s25, 1
    %p172 = por %p170, %p171
    %p174 = scmp.ne.s32.totalorder %s159, %s173
    %p175 = scmp.eq.s32.totalorder %s25, 0
    %p176 = por %p174, %p175
    %s178 = sadd.s32 %s177, 1
    %p181 = scmp.eq.s32.totalorder %s19, 1
    %p182 = scmp.ne.s32.totalorder %s177, %s179
    %p183 = scmp.eq.s32.totalorder %s19, 0
    %p184 = por %p182, %p183
    %p185 = scmp.ne.s32.totalorder %s177, %s179
    %p186 = scmp.eq.s32.totalorder %s24, 1
    %p187 = por %p185, %p186
    %p188 = scmp.ne.s32.totalorder %s179, %s180
    %p189 = scmp.eq.s32.totalorder %s24, 0
    %p190 = por %p188, %p189
    %p191 = scmp.ne.s32.totalorder %s179, %s180
    %p192 = scmp.eq.s32.totalorder %s25, 1
    %p193 = por %p191, %p192
    %p195 = scmp.ne.s32.totalorder %s180, %s194
    %p196 = scmp.eq.s32.totalorder %s25, 0
    %p197 = por %p195, %p196
    %s199 = sadd.s32 %s198, 1
    %p202 = scmp.eq.s32.totalorder %s19, 1
    %p203 = scmp.ne.s32.totalorder %s198, %s200
    %p204 = scmp.eq.s32.totalorder %s19, 0
    %p205 = por %p203, %p204
    %p206 = scmp.ne.s32.totalorder %s198, %s200
    %p207 = scmp.eq.s32.totalorder %s24, 1
    %p208 = por %p206, %p207
    %p209 = scmp.ne.s32.totalorder %s200, %s201
    %p210 = scmp.eq.s32.totalorder %s24, 0
    %p211 = por %p209, %p210
    %p212 = scmp.ne.s32.totalorder %s200, %s201
    %p213 = scmp.eq.s32.totalorder %s25, 1
    %p214 = por %p212, %p213
    %p216 = scmp.ne.s32.totalorder %s201, %s215
    %p217 = scmp.eq.s32.totalorder %s25, 0
    %p218 = por %p216, %p217
    %s220 = sadd.s32 %s219, 1
    %p223 = scmp.eq.s32.totalorder %s19, 1
    %p224 = scmp.ne.s32.totalorder %s219, %s221
    %p225 = scmp.eq.s32.totalorder %s19, 0
    %p226 = por %p224, %p225
    %p227 = scmp.ne.s32.totalorder %s219, %s221
    %p228 = scmp.eq.s32.totalorder %s24, 1
    %p229 = por %p227, %p228
    %p230 = scmp.ne.s32.totalorder %s221, %s222
    %p231 = scmp.eq.s32.totalorder %s24, 0
    %p232 = por %p230, %p231
    %p233 = scmp.ne.s32.totalorder %s221, %s222
    %p234 = scmp.eq.s32.totalorder %s25, 1
    %p235 = por %p233, %p234
    %p237 = scmp.ne.s32.totalorder %s222, %s236
    %p238 = scmp.eq.s32.totalorder %s25, 0
    %p239 = por %p237, %p238
    %s241 = sadd.s32 %s240, 1
    %p244 = scmp.eq.s32.totalorder %s19, 1
    %p245 = scmp.ne.s32.totalorder %s240, %s242
    %p246 = scmp.eq.s32.totalorder %s19, 0
    %p247 = por %p245, %p246
    %p248 = scmp.ne.s32.totalorder %s240, %s242
    %p249 = scmp.eq.s32.totalorder %s24, 1
    %p250 = por %p248, %p249
    %p251 = scmp.ne.s32.totalorder %s242, %s243
    %p252 = scmp.eq.s32.totalorder %s24, 0
    %p253 = por %p251, %p252
    %p254 = scmp.ne.s32.totalorder %s242, %s243
    %p255 = scmp.eq.s32.totalorder %s25, 1
    %p256 = por %p254, %p255
    %p258 = scmp.ne.s32.totalorder %s243, %s257
    %p259 = scmp.eq.s32.totalorder %s25, 0
    %p260 = por %p258, %p259
    %s262 = sadd.s32 %s261, 1
    %p265 = scmp.eq.s32.totalorder %s19, 1
    %p266 = scmp.ne.s32.totalorder %s261, %s263
    %p267 = scmp.eq.s32.totalorder %s19, 0
    %p268 = por %p266, %p267
    %p269 = scmp.ne.s32.totalorder %s261, %s263
    %p270 = scmp.eq.s32.totalorder %s24, 1
    %p271 = por %p269, %p270
    %p272 = scmp.ne.s32.totalorder %s263, %s264
    %p273 = scmp.eq.s32.totalorder %s24, 0
    %p274 = por %p272, %p273
    %p275 = scmp.ne.s32.totalorder %s263, %s264
    %p276 = scmp.eq.s32.totalorder %s25, 1
    %p277 = por %p275, %p276
    %p279 = scmp.ne.s32.totalorder %s264, %s278
    %p280 = scmp.eq.s32.totalorder %s25, 0
    %p281 = por %p279, %p280
    %s283 = sadd.s32 %s282, 1
    %p286 = scmp.eq.s32.totalorder %s19, 1
    %p287 = scmp.ne.s32.totalorder %s282, %s284
    %p288 = scmp.eq.s32.totalorder %s19, 0
    %p289 = por %p287, %p288
    %p290 = scmp.ne.s32.totalorder %s282, %s284
    %p291 = scmp.eq.s32.totalorder %s24, 1
    %p292 = por %p290, %p291
    %p293 = scmp.ne.s32.totalorder %s284, %s285
    %p294 = scmp.eq.s32.totalorder %s24, 0
    %p295 = por %p293, %p294
    %p296 = scmp.ne.s32.totalorder %s284, %s285
    %p297 = scmp.eq.s32.totalorder %s25, 1
    %p298 = por %p296, %p297
    %p300 = scmp.ne.s32.totalorder %s285, %s299
    %p301 = scmp.eq.s32.totalorder %s25, 0
    %p302 = por %p300, %p301
    %s304 = sadd.s32 %s303, 1
    %p307 = scmp.eq.s32.totalorder %s19, 1
    %p308 = scmp.ne.s32.totalorder %s303, %s305
    %p309 = scmp.eq.s32.totalorder %s19, 0
    %p310 = por %p308, %p309
    %p311 = scmp.ne.s32.totalorder %s303, %s305
    %p312 = scmp.eq.s32.totalorder %s24, 1
    %p313 = por %p311, %p312
    %p314 = scmp.ne.s32.totalorder %s305, %s306
    %p315 = scmp.eq.s32.totalorder %s24, 0
    %p316 = por %p314, %p315
    %p317 = scmp.ne.s32.totalorder %s305, %s306
    %p318 = scmp.eq.s32.totalorder %s25, 1
    %p319 = por %p317, %p318
    %p321 = scmp.ne.s32.totalorder %s306, %s320
    %p322 = scmp.eq.s32.totalorder %s25, 0
    %p323 = por %p321, %p322
    %s324 = ssub.s32 %s26, %s38
    %s325 = ssub.s32 %s27, %s34
    %s326 = sor.u32 %s324, %s325
    %p327 = scmp.eq.s32.totalorder %s326, 0
    %s329 = sadd.s32 %s328, 1
    %s330 = scalar_select %p327, %s328, %s329
    %p333 = pneg %p327
    %p334 = scmp.eq.s32.totalorder %s19, 1
    %p335 = por %p333, %p334
    %p336 = scmp.ne.s32.totalorder %s328, %s331
    %p337 = scmp.eq.s32.totalorder %s19, 0
    %p338 = por %p336, %p337
    %p339 = scmp.ne.s32.totalorder %s328, %s331
    %p340 = scmp.eq.s32.totalorder %s24, 1
    %p341 = por %p339, %p340
    %p342 = scmp.ne.s32.totalorder %s331, %s332
    %p343 = scmp.eq.s32.totalorder %s24, 0
    %p344 = por %p342, %p343
    %p345 = scmp.ne.s32.totalorder %s331, %s332
    %p346 = scmp.eq.s32.totalorder %s25, 1
    %p347 = por %p345, %p346
    %p349 = scmp.ne.s32.totalorder %s332, %s348
    %p350 = scmp.eq.s32.totalorder %s25, 0
    %p351 = por %p349, %p350
    %p352 = scmp.le.s32.totalorder 1, %s19
    %p353 = scmp.lt.s32.totalorder %s19, 3
    %p354 = pnand %p352, %p353
    %p355 = pneg %p354
    // Predicated region
    $region9: #{decoder_forward.8} parent=5 // pred_check
      _
    $region10: #{decoder_forward.8} parent=5 // pred_check_branch
      %357 = sbr.rel (%p354) target = $region12
    $region11: #{decoder_forward.8} parent=5 // pred_region
      %s358 = ssub.s32 %s19, 1
      // Predicated region
      $region13: #{decoder_forward.8} parent=11 // pred_check
        %p359 = pneg %p106
      $region14: #{decoder_forward.8} parent=11 // pred_check_branch
        %361 = sbr.rel (%p359) target = $region16
      $region15: #{decoder_forward.8} parent=11 // pred_region
        _
      $region16: #{decoder_forward.8} parent=11 // pred_fallthru
        _
      // Predicated region
      $region17: #{decoder_forward.8} parent=11 // pred_check
        %p362 = pneg %p127
      $region18: #{decoder_forward.8} parent=11 // pred_check_branch
        %364 = sbr.rel (%p362) target = $region20
      $region19: #{decoder_forward.8} parent=11 // pred_region
        _
      $region20: #{decoder_forward.8} parent=11 // pred_fallthru
        _
      // Predicated region
      $region21: #{decoder_forward.8} parent=11 // pred_check
        %p365 = pneg %p148
      $region22: #{decoder_forward.8} parent=11 // pred_check_branch
        %367 = sbr.rel (%p365) target = $region24
      $region23: #{decoder_forward.8} parent=11 // pred_region
        _
      $region24: #{decoder_forward.8} parent=11 // pred_fallthru
        _
      // Predicated region
      $region25: #{decoder_forward.8} parent=11 // pred_check
        %p368 = pneg %p169
      $region26: #{decoder_forward.8} parent=11 // pred_check_branch
        %370 = sbr.rel (%p368) target = $region28
      $region27: #{decoder_forward.8} parent=11 // pred_region
        _
      $region28: #{decoder_forward.8} parent=11 // pred_fallthru
        _
      // Predicated region
      $region29: #{decoder_forward.8} parent=11 // pred_check
        %p371 = pneg %p190
      $region30: #{decoder_forward.8} parent=11 // pred_check_branch
        %373 = sbr.rel (%p371) target = $region32
      $region31: #{decoder_forward.8} parent=11 // pred_region
        _
      $region32: #{decoder_forward.8} parent=11 // pred_fallthru
        _
      // Predicated region
      $region33: #{decoder_forward.8} parent=11 // pred_check
        %p374 = pneg %p211
      $region34: #{decoder_forward.8} parent=11 // pred_check_branch
        %376 = sbr.rel (%p374) target = $region36
      $region35: #{decoder_forward.8} parent=11 // pred_region
        _
      $region36: #{decoder_forward.8} parent=11 // pred_fallthru
        _
      // Predicated region
      $region37: #{decoder_forward.8} parent=11 // pred_check
        %p377 = pneg %p232
      $region38: #{decoder_forward.8} parent=11 // pred_check_branch
        %379 = sbr.rel (%p377) target = $region40
      $region39: #{decoder_forward.8} parent=11 // pred_region
        _
      $region40: #{decoder_forward.8} parent=11 // pred_fallthru
        _
      // Predicated region
      $region41: #{decoder_forward.8} parent=11 // pred_check
        %p380 = pneg %p253
      $region42: #{decoder_forward.8} parent=11 // pred_check_branch
        %382 = sbr.rel (%p380) target = $region44
      $region43: #{decoder_forward.8} parent=11 // pred_region
        _
      $region44: #{decoder_forward.8} parent=11 // pred_fallthru
        _
      // Predicated region
      $region45: #{decoder_forward.8} parent=11 // pred_check
        %p383 = pneg %p274
      $region46: #{decoder_forward.8} parent=11 // pred_check_branch
        %385 = sbr.rel (%p383) target = $region48
      $region47: #{decoder_forward.8} parent=11 // pred_region
        _
      $region48: #{decoder_forward.8} parent=11 // pred_fallthru
        _
      // Predicated region
      $region49: #{decoder_forward.8} parent=11 // pred_check
        %p386 = pneg %p295
      $region50: #{decoder_forward.8} parent=11 // pred_check_branch
        %388 = sbr.rel (%p386) target = $region52
      $region51: #{decoder_forward.8} parent=11 // pred_region
        _
      $region52: #{decoder_forward.8} parent=11 // pred_fallthru
        _
      // Predicated region
      $region53: #{decoder_forward.8} parent=11 // pred_check
        %p389 = pneg %p316
      $region54: #{decoder_forward.8} parent=11 // pred_check_branch
        %391 = sbr.rel (%p389) target = $region56
      $region55: #{decoder_forward.8} parent=11 // pred_region
        _
      $region56: #{decoder_forward.8} parent=11 // pred_fallthru
        _
    $region12: #{decoder_forward.8} parent=5 // pred_fallthru
      _
    %p392 = scmp.lt.s32.totalorder %s19, 2
    // Predicated region
    $region57: #{decoder_forward.8} parent=5 // pred_check
      %p393 = pneg %p392
    $region58: #{decoder_forward.8} parent=5 // pred_check_branch
      %395 = sbr.rel (%p393) target = $region60
    $region59: #{decoder_forward.8} parent=5 // pred_region
      // Predicated region
      $region61: #{decoder_forward.8} parent=59 // pred_check
        %p396 = pneg %p53
      $region62: #{decoder_forward.8} parent=59 // pred_check_branch
        %398 = sbr.rel (%p396) target = $region64
      $region63: #{decoder_forward.8} parent=59 // pred_region
        %p399 = scmp.lt.s32.totalorder %s26, 1
        %s400 = scalar_select %p399, %s26, 1
        %p401 = scmp.lt.s32.totalorder %s27, 0
        %s402 = scalar_select %p401, %s27, 0
        %s403 = sadd.s32 %s402, %s400
        %s404 = smul.addr %s403, 8
        %s405 = scalar_lea.vmem %s0, %s404
      $region64: #{decoder_forward.8} parent=59 // pred_fallthru
        _
      // Predicated region
      $region65: #{decoder_forward.8} parent=59 // pred_check
        %p406 = pneg %p79
      $region66: #{decoder_forward.8} parent=59 // pred_check_branch
        %408 = sbr.rel (%p406) target = $region68
      $region67: #{decoder_forward.8} parent=59 // pred_region
        %p409 = scmp.lt.s32.totalorder %s26, 1
        %s410 = scalar_select %p409, %s26, 1
        %s411 = smul.addr %s410, 8
        %s412 = scalar_lea.vmem %s1, %s411
      $region68: #{decoder_forward.8} parent=59 // pred_fallthru
        _
    $region60: #{decoder_forward.8} parent=5 // pred_fallthru
      _
    %p413 = scmp.le.s32.totalorder 1, %s19
    %p414 = scmp.lt.s32.totalorder %s19, 3
    %p415 = pnand %p413, %p414
    %p416 = pneg %p415
    // Predicated region
    $region69: #{decoder_forward.8} parent=5 // pred_check
      _
    $region70: #{decoder_forward.8} parent=5 // pred_check_branch
      %418 = sbr.rel (%p415) target = $region72
    $region71: #{decoder_forward.8} parent=5 // pred_region
      %s419 = ssub.s32 %s19, 1
      %p420 = scmp.lt.s32.totalorder %s28, 1
      %s421 = scalar_select %p420, %s28, 1
      %p422 = scmp.lt.s32.totalorder %s29, 0
      %s423 = scalar_select %p422, %s29, 0
      %s424 = sadd.s32 %s423, %s421
      %s425 = smul.addr %s424, 8
      %s426 = scalar_lea.vmem %s0, %s425
      %p427 = pneg %p59
      %p428 = pneg %p56
      %p429 = scmp.lt.s32.totalorder %s28, 1
      %s430 = scalar_select %p429, %s28, 1
      %s431 = smul.addr %s430, 8
      %s432 = scalar_lea.vmem %s1, %s431
      %p433 = pneg %p85
      %p434 = pneg %p82
      %p435 = pneg %p106
      %p436 = pneg %p103
      %p437 = pneg %p127
      %p438 = pneg %p124
      %p439 = pneg %p148
      %p440 = pneg %p145
      %p441 = pneg %p169
      %p442 = pneg %p166
      %p443 = pneg %p190
      %p444 = pneg %p187
      %p445 = pneg %p211
      %p446 = pneg %p208
      %p447 = pneg %p232
      %p448 = pneg %p229
      %p449 = pneg %p253
      %p450 = pneg %p250
      %p451 = pneg %p274
      %p452 = pneg %p271
      %p453 = pneg %p295
      %p454 = pneg %p292
      %p455 = pneg %p316
      %p456 = pneg %p313
      %p457 = pneg %p344
      %p458 = pneg %p341
      %p459 = scmp.lt.s32.totalorder %s28, 1
      %s460 = scalar_select %p459, %s28, 1
      %p461 = scmp.lt.s32.totalorder %s29, 0
      %s462 = scalar_select %p461, %s29, 0
      %s463 = sadd.s32 %s462, %s460
      %s464 = smul.addr %s463, 8
      %s465 = scalar_lea.vmem %s13, %s464
      %p466 = scmp.lt.s32.totalorder %s28, 1
      %s467 = scalar_select %p466, %s28, 1
      %p468 = scmp.lt.s32.totalorder %s29, 0
      %s469 = scalar_select %p468, %s29, 0
      %s470 = sadd.s32 %s469, %s467
      %s471 = smul.addr %s470, 8
      %s472 = scalar_lea.vmem %s0, %s471
      %p473 = scmp.lt.s32.totalorder %s28, 1
      %s474 = scalar_select %p473, %s28, 1
      %s475 = smul.addr %s474, 8
      %s476 = scalar_lea.vmem %s1, %s475
      %p477 = scmp.lt.s32.totalorder %s28, 1
      %s478 = scalar_select %p477, %s28, 1
      %p479 = scmp.lt.s32.totalorder %s29, 0
      %s480 = scalar_select %p479, %s29, 0
      %s481 = sadd.s32 %s480, %s478
      %s482 = smul.addr %s481, 8
      %s483 = scalar_lea.vmem %s13, %s482
      %v485 = vld [vmem:[%s472] sm:$0xff]
      %v486 = vld [vmem:[%s3] sm:$0x1]
      %v487 = vld [vmem:[%s4] sm:$0x1]
      %vm488 = vcmask 261120
      %v489 = vsel %vm488, %v485, 0.0
      %490 = vadd.xlane.f32.xlu0 %v489
      %v491 = vpop.xlane.xlu0 %490
      %v492 = vrcp.pop 32.0
      %v493 = vmul.f32 %v491, %v492
      %v494 = vsub.f32 %v485, %v493
      %v495 = vmul.f32 %v494, %v494
      %v496 = vsel %vm488, %v495, 0.0
      %497 = vadd.xlane.f32.xlu0 %v496
      %v498 = vpop.xlane.xlu0 %497
      %v499 = vmul.f32 %v498, %v492
      %v500 = vadd.f32 %v499, 1e-05
      %v501 = vrsqrt.pop %v500
      %v502 = vmul.f32 %v494, %v501
      %v504 = vlaneseq
      %v505 = vshrl.u32 %v504, 7
      %v506 = vsub.s32 0, %v505
      %v507 = vrot.slane %v486, %v506
      %v509 = vmul.f32 %v502, %v507
      %v511 = vlaneseq
      %v512 = vshrl.u32 %v511, 7
      %v513 = vsub.s32 0, %v512
      %v514 = vrot.slane %v487, %v513
      %v516 = vadd.f32 %v509, %v514
      %v517 = vld [vmem:[%s476] sm:$0xff]
      %v518 = vpack.c.bf16 %v516, %v516
      %v519 = vpack.c.bf16 %v517, %v517
      %v520 = vld [vmem:[%s5] sm:$0xf]
      %v521 = vld [vmem:[%s5 + $0x4] sm:$0xf]
      %v522 = vld [vmem:[%s5 + $0x8] sm:$0xf]
      %v523 = vld [vmem:[%s5 + $0xc] sm:$0xf]
      %v524 = vld [vmem:[%s6] sm:$0x1]
      %v526 = vlaneseq
      %v527 = vshrl.u32 %v526, 7
      %v528 = vsub.s32 0, %v527
      %v529 = vrot.slane %v524, %v528
      %v535 = vunpack.c.l.b16 %v520
      %v536 = vunpack.c.l.b16 %v521
      %v537 = vunpack.c.l.b16 %v522
      %v538 = vunpack.c.l.b16 %v523
      %v539 = vpack.c.b16 %v536, %v535
      %v540 = vpack.c.b16 %v538, %v537
      %v544 = vsel %vm488, %v518, 0
      %546 = vmatprep.subr.bf16.mxu0 0
      %547 = vmatpush1.bf16.msra.mxu0 %v539
      %548 = vmatprep.subr.bf16.mxu0 0
      %549 = vmatpush1.bf16.msra.mxu0 %v540
      %550 = vmatprep.subr.bf16.mxu0 0
      %551 = vmatpush1.bf16.msra.mxu0 0
      %552 = vmatprep.subr.bf16.mxu0 0
      %553 = vmatpush1.bf16.msra.mxu0 0
      %554 = vmatprep.subr.bf16.mxu0 0
      %555 = vmatpush1.bf16.msra.mxu0 0
      %556 = vmatprep.subr.bf16.mxu0 0
      %557 = vmatpush1.bf16.msra.mxu0 0
      %558 = vmatprep.subr.bf16.mxu0 0
      %559 = vmatpush1.bf16.msra.mxu0 0
      %560 = vmatprep.subr.bf16.mxu0 0
      %561 = vmatpush1.bf16.msra.mxu0 0
      %562 = vmatprep.subr.bf16.mxu0 0
      %563 = vmatpush1.bf16.msra.mxu0 0
      %564 = vmatprep.subr.bf16.mxu0 0
      %565 = vmatpush1.bf16.msra.mxu0 0
      %566 = vmatprep.subr.bf16.mxu0 0
      %567 = vmatpush1.bf16.msra.mxu0 0
      %568 = vmatprep.subr.bf16.mxu0 0
      %569 = vmatpush1.bf16.msra.mxu0 0
      %570 = vmatprep.subr.bf16.mxu0 0
      %571 = vmatpush1.bf16.msra.mxu0 0
      %572 = vmatprep.subr.bf16.mxu0 0
      %573 = vmatpush1.bf16.msra.mxu0 0
      %574 = vmatprep.subr.bf16.mxu0 0
      %575 = vmatpush1.bf16.msra.mxu0 0
      %576 = vmatprep.subr.bf16.mxu0 0
      %577 = vmatpush1.bf16.msra.mxu0 0
      %578 = vmatprep.mubr.bf16.mxu0 0
      %579 = vmatmul.mubr.bf16.gmra.mrb[0].mxu0 %v544
      %v580 = vpop.f32.mrb[0].mxu0
      %v581 = vadd.f32 %v529, %v580
      %v582 = vpop.f32.mrb[0].mxu0
      %v583 = vpop.f32.mrb[0].mxu0
      %v584 = vpop.f32.mrb[0].mxu0
      %585 = vdwg.mxu0
      %v586 = vld [vmem:[%s7] sm:$0xf]
      %v587 = vld [vmem:[%s7 + $0x4] sm:$0xf]
      %v588 = vld [vmem:[%s7 + $0x8] sm:$0xf]
      %v589 = vld [vmem:[%s7 + $0xc] sm:$0xf]
      %v590 = vld [vmem:[%s8] sm:$0x1]
      %v592 = vlaneseq
      %v593 = vshrl.u32 %v592, 7
      %v594 = vsub.s32 0, %v593
      %v595 = vrot.slane %v590, %v594
      %v601 = vunpack.c.l.b16 %v586
      %v602 = vunpack.c.l.b16 %v587
      %v603 = vunpack.c.l.b16 %v588
      %v604 = vunpack.c.l.b16 %v589
      %v605 = vpack.c.b16 %v602, %v601
      %v606 = vpack.c.b16 %v604, %v603
      %v610 = vsel %vm488, %v519, 0
      %612 = vmatprep.subr.bf16.mxu0 0
      %613 = vmatpush1.bf16.msra.mxu0 %v605
      %614 = vmatprep.subr.bf16.mxu0 0
      %615 = vmatpush1.bf16.msra.mxu0 %v606
      %616 = vmatprep.subr.bf16.mxu0 0
      %617 = vmatpush1.bf16.msra.mxu0 0
      %618 = vmatprep.subr.bf16.mxu0 0
      %619 = vmatpush1.bf16.msra.mxu0 0
      %620 = vmatprep.subr.bf16.mxu0 0
      %621 = vmatpush1.bf16.msra.mxu0 0
      %622 = vmatprep.subr.bf16.mxu0 0
      %623 = vmatpush1.bf16.msra.mxu0 0
      %624 = vmatprep.subr.bf16.mxu0 0
      %625 = vmatpush1.bf16.msra.mxu0 0
      %626 = vmatprep.subr.bf16.mxu0 0
      %627 = vmatpush1.bf16.msra.mxu0 0
      %628 = vmatprep.subr.bf16.mxu0 0
      %629 = vmatpush1.bf16.msra.mxu0 0
      %630 = vmatprep.subr.bf16.mxu0 0
      %631 = vmatpush1.bf16.msra.mxu0 0
      %632 = vmatprep.subr.bf16.mxu0 0
      %633 = vmatpush1.bf16.msra.mxu0 0
      %634 = vmatprep.subr.bf16.mxu0 0
      %635 = vmatpush1.bf16.msra.mxu0 0
      %636 = vmatprep.subr.bf16.mxu0 0
      %637 = vmatpush1.bf16.msra.mxu0 0
      %638 = vmatprep.subr.bf16.mxu0 0
      %639 = vmatpush1.bf16.msra.mxu0 0
      %640 = vmatprep.subr.bf16.mxu0 0
      %641 = vmatpush1.bf16.msra.mxu0 0
      %642 = vmatprep.subr.bf16.mxu0 0
      %643 = vmatpush1.bf16.msra.mxu0 0
      %644 = vmatprep.mubr.bf16.mxu0 0
      %645 = vmatmul.mubr.bf16.gmra.mrb[0].mxu0 %v610
      %v646 = vpop.f32.mrb[0].mxu0
      %v647 = vadd.f32 %v595, %v646
      %v648 = vpop.f32.mrb[0].mxu0
      %v649 = vpop.f32.mrb[0].mxu0
      %v650 = vpop.f32.mrb[0].mxu0
      %651 = vdwg.mxu0
      %v652 = vld [vmem:[%s9] sm:$0xf]
      %v653 = vld [vmem:[%s9 + $0x4] sm:$0xf]
      %v654 = vld [vmem:[%s9 + $0x8] sm:$0xf]
      %v655 = vld [vmem:[%s9 + $0xc] sm:$0xf]
      %v656 = vld [vmem:[%s10] sm:$0x1]
      %v658 = vlaneseq
      %v659 = vshrl.u32 %v658, 7
      %v660 = vsub.s32 0, %v659
      %v661 = vrot.slane %v656, %v660
      %v667 = vunpack.c.l.b16 %v652
      %v668 = vunpack.c.l.b16 %v653
      %v669 = vunpack.c.l.b16 %v654
      %v670 = vunpack.c.l.b16 %v655
      %v671 = vpack.c.b16 %v668, %v667
      %v672 = vpack.c.b16 %v670, %v669
      %675 = vmatprep.subr.bf16.mxu0 0
      %676 = vmatpush1.bf16.msra.mxu0 %v671
      %677 = vmatprep.subr.bf16.mxu0 0
      %678 = vmatpush1.bf16.msra.mxu0 %v672
      %679 = vmatprep.subr.bf16.mxu0 0
      %680 = vmatpush1.bf16.msra.mxu0 0
      %681 = vmatprep.subr.bf16.mxu0 0
      %682 = vmatpush1.bf16.msra.mxu0 0
      %683 = vmatprep.subr.bf16.mxu0 0
      %684 = vmatpush1.bf16.msra.mxu0 0
      %685 = vmatprep.subr.bf16.mxu0 0
      %686 = vmatpush1.bf16.msra.mxu0 0
      %687 = vmatprep.subr.bf16.mxu0 0
      %688 = vmatpush1.bf16.msra.mxu0 0
      %689 = vmatprep.subr.bf16.mxu0 0
      %690 = vmatpush1.bf16.msra.mxu0 0
      %691 = vmatprep.subr.bf16.mxu0 0
      %692 = vmatpush1.bf16.msra.mxu0 0
      %693 = vmatprep.subr.bf16.mxu0 0
      %694 = vmatpush1.bf16.msra.mxu0 0
      %695 = vmatprep.subr.bf16.mxu0 0
      %696 = vmatpush1.bf16.msra.mxu0 0
      %697 = vmatprep.subr.bf16.mxu0 0
      %698 = vmatpush1.bf16.msra.mxu0 0
      %699 = vmatprep.subr.bf16.mxu0 0
      %700 = vmatpush1.bf16.msra.mxu0 0
      %701 = vmatprep.subr.bf16.mxu0 0
      %702 = vmatpush1.bf16.msra.mxu0 0
      %703 = vmatprep.subr.bf16.mxu0 0
      %704 = vmatpush1.bf16.msra.mxu0 0
      %705 = vmatprep.subr.bf16.mxu0 0
      %706 = vmatpush1.bf16.msra.mxu0 0
      %707 = vmatprep.mubr.bf16.mxu0 0
      %708 = vmatmul.mubr.bf16.gmra.mrb[0].mxu0 %v610
      %v709 = vpop.f32.mrb[0].mxu0
      %v710 = vadd.f32 %v661, %v709
      %v711 = vpop.f32.mrb[0].mxu0
      %v712 = vpop.f32.mrb[0].mxu0
      %v713 = vpop.f32.mrb[0].mxu0
      %714 = vdwg.mxu0
      %v715 = vpack.c.bf16 %v581, %v581
      %v716 = vpack.c.bf16 %v647, %v647
      %v717 = vpack.c.bf16 %v710, %v710
      %v718 = vld [vmem:[%s2] sm:$0xff]
      %vm719 = vcmask 64512
      %v721 = vsel %vm719, %v715, 0
      %v724 = vsel %vm719, %v716, 0
      %726 = vmatprep.subr.bf16.mxu0 0
      %727 = vmatpush1.bf16.xpose.msra.mxu0 %v724
      %728 = vmatprep.subr.bf16.mxu0 0
      %729 = vmatpush1.bf16.xpose.msra.mxu0 0
      %730 = vmatprep.subr.bf16.mxu0 0
      %731 = vmatpush1.bf16.xpose.msra.mxu0 0
      %732 = vmatprep.subr.bf16.mxu0 0
      %733 = vmatpush1.bf16.xpose.msra.mxu0 0
      %734 = vmatprep.subr.bf16.mxu0 0
      %735 = vmatpush1.bf16.xpose.msra.mxu0 0
      %736 = vmatprep.subr.bf16.mxu0 0
      %737 = vmatpush1.bf16.xpose.msra.mxu0 0
      %738 = vmatprep.subr.bf16.mxu0 0
      %739 = vmatpush1.bf16.xpose.msra.mxu0 0
      %740 = vmatprep.subr.bf16.mxu0 0
      %741 = vmatpush1.bf16.xpose.msra.mxu0 0
      %742 = vmatprep.subr.bf16.mxu0 0
      %743 = vmatpush1.bf16.xpose.msra.mxu0 0
      %744 = vmatprep.subr.bf16.mxu0 0
      %745 = vmatpush1.bf16.xpose.msra.mxu0 0
      %746 = vmatprep.subr.bf16.mxu0 0
      %747 = vmatpush1.bf16.xpose.msra.mxu0 0
      %748 = vmatprep.subr.bf16.mxu0 0
      %749 = vmatpush1.bf16.xpose.msra.mxu0 0
      %750 = vmatprep.subr.bf16.mxu0 0
      %751 = vmatpush1.bf16.xpose.msra.mxu0 0
      %752 = vmatprep.subr.bf16.mxu0 0
      %753 = vmatpush1.bf16.xpose.msra.mxu0 0
      %754 = vmatprep.subr.bf16.mxu0 0
      %755 = vmatpush1.bf16.xpose.msra.mxu0 0
      %756 = vmatprep.subr.bf16.mxu0 0
      %757 = vmatpush1.bf16.xpose.msra.mxu0 0
      %758 = vmatprep.mubr.bf16.mxu0 0
      %759 = vmatmul.mubr.bf16.gmra.mrb[0].mxu0 %v721
      %v760 = vpop.f32.mrb[0].mxu0
      %v761 = vadd.f32 0.0, %v760
      %v762 = vpop.f32.mrb[0].mxu0
      %v763 = vpop.f32.mrb[0].mxu0
      %v764 = vpop.f32.mrb[0].mxu0
      %765 = vdwg.mxu0
      %v766 = vmul.f32 %v761, 0.35355338
      %v767 = vadd.f32 %v766, %v718
      %v768 = vsel %vm719, %v767, -inf
      %769 = vmax.xlane.f32.xlu0 %v768
      %v770 = vpop.xlane.xlu0 %769
      %v771 = vsub.f32 %v767, %v770
      %v772 = vmul.f32 %v771, 1.442695
      %v773 = vpow.pop %v772
      %v774 = vsel %vm719, %v773, 0.0
      %775 = vadd.xlane.f32.xlu0 %v774
      %v776 = vpop.xlane.xlu0 %775
      %v777 = vrcp.pop %v776
      %v778 = vmul.f32 %v773, %v777
      %v779 = vpack.c.bf16 %v778, %v778
      %v781 = vsel %vm719, %v779, 0
      %vm783 = vcmask 1043456
      %v785 = vsel %vm783, %v717, 0
      %787 = vmatprep.subr.bf16.mxu0 0
      %788 = vmatpush1.bf16.msra.mxu0 %v785
      %789 = vmatprep.subr.bf16.mxu0 0
      %790 = vmatpush1.bf16.msra.mxu0 0
      %791 = vmatprep.subr.bf16.mxu0 0
      %792 = vmatpush1.bf16.msra.mxu0 0
      %793 = vmatprep.subr.bf16.mxu0 0
      %794 = vmatpush1.bf16.msra.mxu0 0
      %795 = vmatprep.subr.bf16.mxu0 0
      %796 = vmatpush1.bf16.msra.mxu0 0
      %797 = vmatprep.subr.bf16.mxu0 0
      %798 = vmatpush1.bf16.msra.mxu0 0
      %799 = vmatprep.subr.bf16.mxu0 0
      %800 = vmatpush1.bf16.msra.mxu0 0
      %801 = vmatprep.subr.bf16.mxu0 0
      %802 = vmatpush1.bf16.msra.mxu0 0
      %803 = vmatprep.subr.bf16.mxu0 0
      %804 = vmatpush1.bf16.msra.mxu0 0
      %805 = vmatprep.subr.bf16.mxu0 0
      %806 = vmatpush1.bf16.msra.mxu0 0
      %807 = vmatprep.subr.bf16.mxu0 0
      %808 = vmatpush1.bf16.msra.mxu0 0
      %809 = vmatprep.subr.bf16.mxu0 0
      %810 = vmatpush1.bf16.msra.mxu0 0
      %811 = vmatprep.subr.bf16.mxu0 0
      %812 = vmatpush1.bf16.msra.mxu0 0
      %813 = vmatprep.subr.bf16.mxu0 0
      %814 = vmatpush1.bf16.msra.mxu0 0
      %815 = vmatprep.subr.bf16.mxu0 0
      %816 = vmatpush1.bf16.msra.mxu0 0
      %817 = vmatprep.subr.bf16.mxu0 0
      %818 = vmatpush1.bf16.msra.mxu0 0
      %819 = vmatprep.mubr.bf16.mxu0 0
      %820 = vmatmul.mubr.bf16.gmra.mrb[0].mxu0 %v781
      %v821 = vpop.f32.mrb[0].mxu0
      %v822 = vadd.f32 0.0, %v821
      %v823 = vpop.f32.mrb[0].mxu0
      %v824 = vpop.f32.mrb[0].mxu0
      %v825 = vpop.f32.mrb[0].mxu0
      %826 = vdwg.mxu0
      %828 = vrot.lane.b32.xlu0 %v715, 120
      %v829 = vpop.permute.xlu0 %828
      %831 = vrot.lane.b32.xlu0 %v716, 120
      %v832 = vpop.permute.xlu0 %831
      %v834 = vsel %vm719, %v829, 0
      %v837 = vsel %vm719, %v832, 0
      %839 = vmatprep.subr.bf16.mxu0 0
      %840 = vmatpush1.bf16.xpose.msra.mxu0 %v837
      %841 = vmatprep.subr.bf16.mxu0 0
      %842 = vmatpush1.bf16.xpose.msra.mxu0 0
      %843 = vmatprep.subr.bf16.mxu0 0
      %844 = vmatpush1.bf16.xpose.msra.mxu0 0
      %845 = vmatprep.subr.bf16.mxu0 0
      %846 = vmatpush1.bf16.xpose.msra.mxu0 0
      %847 = vmatprep.subr.bf16.mxu0 0
      %848 = vmatpush1.bf16.xpose.msra.mxu0 0
      %849 = vmatprep.subr.bf16.mxu0 0
      %850 = vmatpush1.bf16.xpose.msra.mxu0 0
      %851 = vmatprep.subr.bf16.mxu0 0
      %852 = vmatpush1.bf16.xpose.msra.mxu0 0
      %853 = vmatprep.subr.bf16.mxu0 0
      %854 = vmatpush1.bf16.xpose.msra.mxu0 0
      %855 = vmatprep.subr.bf16.mxu0 0
      %856 = vmatpush1.bf16.xpose.msra.mxu0 0
      %857 = vmatprep.subr.bf16.mxu0 0
      %858 = vmatpush1.bf16.xpose.msra.mxu0 0
      %859 = vmatprep.subr.bf16.mxu0 0
      %860 = vmatpush1.bf16.xpose.msra.mxu0 0
      %861 = vmatprep.subr.bf16.mxu0 0
      %862 = vmatpush1.bf16.xpose.msra.mxu0 0
      %863 = vmatprep.subr.bf16.mxu0 0
      %864 = vmatpush1.bf16.xpose.msra.mxu0 0
      %865 = vmatprep.subr.bf16.mxu0 0
      %866 = vmatpush1.bf16.xpose.msra.mxu0 0
      %867 = vmatprep.subr.bf16.mxu0 0
      %868 = vmatpush1.bf16.xpose.msra.mxu0 0
      %869 = vmatprep.subr.bf16.mxu0 0
      %870 = vmatpush1.bf16.xpose.msra.mxu0 0
      %871 = vmatprep.mubr.bf16.mxu0 0
      %872 = vmatmul.mubr.bf16.gmra.mrb[0].mxu0 %v834
      %v873 = vpop.f32.mrb[0].mxu0
      %v874 = vadd.f32 0.0, %v873
      %v875 = vpop.f32.mrb[0].mxu0
      %v876 = vpop.f32.mrb[0].mxu0
      %v877 = vpop.f32.mrb[0].mxu0
      %878 = vdwg.mxu0
      %v879 = vmul.f32 %v874, 0.35355338
      %v880 = vadd.f32 %v879, %v718
      %v881 = vsel %vm719, %v880, -inf
      %882 = vmax.xlane.f32.xlu0 %v881
      %v883 = vpop.xlane.xlu0 %882
      %v884 = vsub.f32 %v880, %v883
      %v885 = vmul.f32 %v884, 1.442695
      %v886 = vpow.pop %v885
      %v887 = vsel %vm719, %v886, 0.0
      %888 = vadd.xlane.f32.xlu0 %v887
      %v889 = vpop.xlane.xlu0 %888
      %v890 = vrcp.pop %v889
      %v891 = vmul.f32 %v886, %v890
      %v892 = vpack.c.bf16 %v891, %v891
      %894 = vrot.lane.b32.xlu0 %v717, 120
      %v895 = vpop.permute.xlu0 %894
      %v897 = vsel %vm719, %v892, 0
      %v900 = vsel %vm783, %v895, 0
      %902 = vmatprep.subr.bf16.mxu0 0
      %903 = vmatpush1.bf16.msra.mxu0 %v900
      %904 = vmatprep.subr.bf16.mxu0 0
      %905 = vmatpush1.bf16.msra.mxu0 0
      %906 = vmatprep.subr.bf16.mxu0 0
      %907 = vmatpush1.bf16.msra.mxu0 0
      %908 = vmatprep.subr.bf16.mxu0 0
      %909 = vmatpush1.bf16.msra.mxu0 0
      %910 = vmatprep.subr.bf16.mxu0 0
      %911 = vmatpush1.bf16.msra.mxu0 0
      %912 = vmatprep.subr.bf16.mxu0 0
      %913 = vmatpush1.bf16.msra.mxu0 0
      %914 = vmatprep.subr.bf16.mxu0 0
      %915 = vmatpush1.bf16.msra.mxu0 0
      %916 = vmatprep.subr.bf16.mxu0 0
      %917 = vmatpush1.bf16.msra.mxu0 0
      %918 = vmatprep.subr.bf16.mxu0 0
      %919 = vmatpush1.bf16.msra.mxu0 0
      %920 = vmatprep.subr.bf16.mxu0 0
      %921 = vmatpush1.bf16.msra.mxu0 0
      %922 = vmatprep.subr.bf16.mxu0 0
      %923 = vmatpush1.bf16.msra.mxu0 0
      %924 = vmatprep.subr.bf16.mxu0 0
      %925 = vmatpush1.bf16.msra.mxu0 0
      %926 = vmatprep.subr.bf16.mxu0 0
      %927 = vmatpush1.bf16.msra.mxu0 0
      %928 = vmatprep.subr.bf16.mxu0 0
      %929 = vmatpush1.bf16.msra.mxu0 0
      %930 = vmatprep.subr.bf16.mxu0 0
      %931 = vmatpush1.bf16.msra.mxu0 0
      %932 = vmatprep.subr.bf16.mxu0 0
      %933 = vmatpush1.bf16.msra.mxu0 0
      %934 = vmatprep.mubr.bf16.mxu0 0
      %935 = vmatmul.mubr.bf16.gmra.mrb[0].mxu0 %v897
      %v936 = vpop.f32.mrb[0].mxu0
      %v937 = vadd.f32 0.0, %v936
      %v938 = vpop.f32.mrb[0].mxu0
      %v939 = vpop.f32.mrb[0].mxu0
      %v940 = vpop.f32.mrb[0].mxu0
      %941 = vdwg.mxu0
      %942 = vrot.lane.b32.xlu0 %v715, 112
      %v943 = vpop.permute.xlu0 %942
      %944 = vrot.lane.b32.xlu0 %v716, 112
      %v945 = vpop.permute.xlu0 %944
      %v947 = vsel %vm719, %v943, 0
      %v950 = vsel %vm719, %v945, 0
      %952 = vmatprep.subr.bf16.mxu0 0
      %953 = vmatpush1.bf16.xpose.msra.mxu0 %v950
      %954 = vmatprep.subr.bf16.mxu0 0
      %955 = vmatpush1.bf16.xpose.msra.mxu0 0
      %956 = vmatprep.subr.bf16.mxu0 0
      %957 = vmatpush1.bf16.xpose.msra.mxu0 0
      %958 = vmatprep.subr.bf16.mxu0 0
      %959 = vmatpush1.bf16.xpose.msra.mxu0 0
      %960 = vmatprep.subr.bf16.mxu0 0
      %961 = vmatpush1.bf16.xpose.msra.mxu0 0
      %962 = vmatprep.subr.bf16.mxu0 0
      %963 = vmatpush1.bf16.xpose.msra.mxu0 0
      %964 = vmatprep.subr.bf16.mxu0 0
      %965 = vmatpush1.bf16.xpose.msra.mxu0 0
      %966 = vmatprep.subr.bf16.mxu0 0
      %967 = vmatpush1.bf16.xpose.msra.mxu0 0
      %968 = vmatprep.subr.bf16.mxu0 0
      %969 = vmatpush1.bf16.xpose.msra.mxu0 0
      %970 = vmatprep.subr.bf16.mxu0 0
      %971 = vmatpush1.bf16.xpose.msra.mxu0 0
      %972 = vmatprep.subr.bf16.mxu0 0
      %973 = vmatpush1.bf16.xpose.msra.mxu0 0
      %974 = vmatprep.subr.bf16.mxu0 0
      %975 = vmatpush1.bf16.xpose.msra.mxu0 0
      %976 = vmatprep.subr.bf16.mxu0 0
      %977 = vmatpush1.bf16.xpose.msra.mxu0 0
      %978 = vmatprep.subr.bf16.mxu0 0
      %979 = vmatpush1.bf16.xpose.msra.mxu0 0
      %980 = vmatprep.subr.bf16.mxu0 0
      %981 = vmatpush1.bf16.xpose.msra.mxu0 0
      %982 = vmatprep.subr.bf16.mxu0 0
      %983 = vmatpush1.bf16.xpose.msra.mxu0 0
      %984 = vmatprep.mubr.bf16.mxu0 0
      %985 = vmatmul.mubr.bf16.gmra.mrb[0].mxu0 %v947
      %v986 = vpop.f32.mrb[0].mxu0
      %v987 = vadd.f32 0.0, %v986
      %v988 = vpop.f32.mrb[0].mxu0
      %v989 = vpop.f32.mrb[0].mxu0
      %v990 = vpop.f32.mrb[0].mxu0
      %991 = vdwg.mxu0
      %v992 = vmul.f32 %v987, 0.35355338
      %v993 = vadd.f32 %v992, %v718
      %v994 = vsel %vm719, %v993, -inf
      %995 = vmax.xlane.f32.xlu0 %v994
      %v996 = vpop.xlane.xlu0 %995
      %v997 = vsub.f32 %v993, %v996
      %v998 = vmul.f32 %v997, 1.442695
      %v999 = vpow.pop %v998
      %v1000 = vsel %vm719, %v999, 0.0
      %1001 = vadd.xlane.f32.xlu0 %v1000
      %v1002 = vpop.xlane.xlu0 %1001
      %v1003 = vrcp.pop %v1002
      %v1004 = vmul.f32 %v999, %v1003
      %v1005 = vpack.c.bf16 %v1004, %v1004
      %1006 = vrot.lane.b32.xlu0 %v717, 112
      %v1007 = vpop.permute.xlu0 %1006
      %v1009 = vsel %vm719, %v1005, 0
      %v1012 = vsel %vm783, %v1007, 0
      %1014 = vmatprep.subr.bf16.mxu0 0
      %1015 = vmatpush1.bf16.msra.mxu0 %v1012
      %1016 = vmatprep.subr.bf16.mxu0 0
      %1017 = vmatpush1.bf16.msra.mxu0 0
      %1018 = vmatprep.subr.bf16.mxu0 0
      %1019 = vmatpush1.bf16.msra.mxu0 0
      %1020 = vmatprep.subr.bf16.mxu0 0
      %1021 = vmatpush1.bf16.msra.mxu0 0
      %1022 = vmatprep.subr.bf16.mxu0 0
      %1023 = vmatpush1.bf16.msra.mxu0 0
      %1024 = vmatprep.subr.bf16.mxu0 0
      %1025 = vmatpush1.bf16.msra.mxu0 0
      %1026 = vmatprep.subr.bf16.mxu0 0
      %1027 = vmatpush1.bf16.msra.mxu0 0
      %1028 = vmatprep.subr.bf16.mxu0 0
      %1029 = vmatpush1.bf16.msra.mxu0 0
      %1030 = vmatprep.subr.bf16.mxu0 0
      %1031 = vmatpush1.bf16.msra.mxu0 0
      %1032 = vmatprep.subr.bf16.mxu0 0
      %1033 = vmatpush1.bf16.msra.mxu0 0
      %1034 = vmatprep.subr.bf16.mxu0 0
      %1035 = vmatpush1.bf16.msra.mxu0 0
      %1036 = vmatprep.subr.bf16.mxu0 0
      %1037 = vmatpush1.bf16.msra.mxu0 0
      %1038 = vmatprep.subr.bf16.mxu0 0
      %1039 = vmatpush1.bf16.msra.mxu0 0
      %1040 = vmatprep.subr.bf16.mxu0 0
      %1041 = vmatpush1.bf16.msra.mxu0 0
      %1042 = vmatprep.subr.bf16.mxu0 0
      %1043 = vmatpush1.bf16.msra.mxu0 0
      %1044 = vmatprep.subr.bf16.mxu0 0
      %1045 = vmatpush1.bf16.msra.mxu0 0
      %1046 = vmatprep.mubr.bf16.mxu0 0
      %1047 = vmatmul.mubr.bf16.gmra.mrb[0].mxu0 %v1009
      %v1048 = vpop.f32.mrb[0].mxu0
      %v1049 = vadd.f32 0.0, %v1048
      %v1050 = vpop.f32.mrb[0].mxu0
      %v1051 = vpop.f32.mrb[0].mxu0
      %v1052 = vpop.f32.mrb[0].mxu0
      %1053 = vdwg.mxu0
      %1054 = vrot.lane.b32.xlu0 %v715, 104
      %v1055 = vpop.permute.xlu0 %1054
      %1056 = vrot.lane.b32.xlu0 %v716, 104
      %v1057 = vpop.permute.xlu0 %1056
      %v1059 = vsel %vm719, %v1055, 0
      %v1062 = vsel %vm719, %v1057, 0
      %1064 = vmatprep.subr.bf16.mxu0 0
      %1065 = vmatpush1.bf16.xpose.msra.mxu0 %v1062
      %1066 = vmatprep.subr.bf16.mxu0 0
      %1067 = vmatpush1.bf16.xpose.msra.mxu0 0
      %1068 = vmatprep.subr.bf16.mxu0 0
      %1069 = vmatpush1.bf16.xpose.msra.mxu0 0
      %1070 = vmatprep.subr.bf16.mxu0 0
      %1071 = vmatpush1.bf16.xpose.msra.mxu0 0
      %1072 = vmatprep.subr.bf16.mxu0 0
      %1073 = vmatpush1.bf16.xpose.msra.mxu0 0
      %1074 = vmatprep.subr.bf16.mxu0 0
      %1075 = vmatpush1.bf16.xpose.msra.mxu0 0
      %1076 = vmatprep.subr.bf16.mxu0 0
      %1077 = vmatpush1.bf16.xpose.msra.mxu0 0
      %1078 = vmatprep.subr.bf16.mxu0 0
      %1079 = vmatpush1.bf16.xpose.msra.mxu0 0
      %1080 = vmatprep.subr.bf16.mxu0 0
      %1081 = vmatpush1.bf16.xpose.msra.mxu0 0
      %1082 = vmatprep.subr.bf16.mxu0 0
      %1083 = vmatpush1.bf16.xpose.msra.mxu0 0
      %1084 = vmatprep.subr.bf16.mxu0 0
      %1085 = vmatpush1.bf16.xpose.msra.mxu0 0
      %1086 = vmatprep.subr.bf16.mxu0 0
      %1087 = vmatpush1.bf16.xpose.msra.mxu0 0
      %1088 = vmatprep.subr.bf16.mxu0 0
      %1089 = vmatpush1.bf16.xpose.msra.mxu0 0
      %1090 = vmatprep.subr.bf16.mxu0 0
      %1091 = vmatpush1.bf16.xpose.msra.mxu0 0
      %1092 = vmatprep.subr.bf16.mxu0 0
      %1093 = vmatpush1.bf16.xpose.msra.mxu0 0
      %1094 = vmatprep.subr.bf16.mxu0 0
      %1095 = vmatpush1.bf16.xpose.msra.mxu0 0
      %1096 = vmatprep.mubr.bf16.mxu0 0
      %1097 = vmatmul.mubr.bf16.gmra.mrb[0].mxu0 %v1059
      %v1098 = vpop.f32.mrb[0].mxu0
      %v1099 = vadd.f32 0.0, %v1098
      %v1100 = vpop.f32.mrb[0].mxu0
      %v1101 = vpop.f32.mrb[0].mxu0
      %v1102 = vpop.f32.mrb[0].mxu0
      %1103 = vdwg.mxu0
      %v1104 = vmul.f32 %v1099, 0.35355338
      %v1105 = vadd.f32 %v1104, %v718
      %v1106 = vsel %vm719, %v1105, -inf
      %1107 = vmax.xlane.f32.xlu0 %v1106
      %v1108 = vpop.xlane.xlu0 %1107
      %v1109 = vsub.f32 %v1105, %v1108
      %v1110 = vmul.f32 %v1109, 1.442695
      %v1111 = vpow.pop %v1110
      %v1112 = vsel %vm719, %v1111, 0.0
      %1113 = vadd.xlane.f32.xlu0 %v1112
      %v1114 = vpop.xlane.xlu0 %1113
      %v1115 = vrcp.pop %v1114
      %v1116 = vmul.f32 %v1111, %v1115
      %v1117 = vpack.c.bf16 %v1116, %v1116
      %1118 = vrot.lane.b32.xlu0 %v717, 104
      %v1119 = vpop.permute.xlu0 %1118
      %v1121 = vsel %vm719, %v1117, 0
      %v1124 = vsel %vm783, %v1119, 0
      %1126 = vmatprep.subr.bf16.mxu0 0
      %1127 = vmatpush1.bf16.msra.mxu0 %v1124
      %1128 = vmatprep.subr.bf16.mxu0 0
      %1129 = vmatpush1.bf16.msra.mxu0 0
      %1130 = vmatprep.subr.bf16.mxu0 0
      %1131 = vmatpush1.bf16.msra.mxu0 0
      %1132 = vmatprep.subr.bf16.mxu0 0
      %1133 = vmatpush1.bf16.msra.mxu0 0
      %1134 = vmatprep.subr.bf16.mxu0 0
      %1135 = vmatpush1.bf16.msra.mxu0 0
      %1136 = vmatprep.subr.bf16.mxu0 0
      %1137 = vmatpush1.bf16.msra.mxu0 0
      %1138 = vmatprep.subr.bf16.mxu0 0
      %1139 = vmatpush1.bf16.msra.mxu0 0
      %1140 = vmatprep.subr.bf16.mxu0 0
      %1141 = vmatpush1.bf16.msra.mxu0 0
      %1142 = vmatprep.subr.bf16.mxu0 0
      %1143 = vmatpush1.bf16.msra.mxu0 0
      %1144 = vmatprep.subr.bf16.mxu0 0
      %1145 = vmatpush1.bf16.msra.mxu0 0
      %1146 = vmatprep.subr.bf16.mxu0 0
      %1147 = vmatpush1.bf16.msra.mxu0 0
      %1148 = vmatprep.subr.bf16.mxu0 0
      %1149 = vmatpush1.bf16.msra.mxu0 0
      %1150 = vmatprep.subr.bf16.mxu0 0
      %1151 = vmatpush1.bf16.msra.mxu0 0
      %1152 = vmatprep.subr.bf16.mxu0 0
      %1153 = vmatpush1.bf16.msra.mxu0 0
      %1154 = vmatprep.subr.bf16.mxu0 0
      %1155 = vmatpush1.bf16.msra.mxu0 0
      %1156 = vmatprep.subr.bf16.mxu0 0
      %1157 = vmatpush1.bf16.msra.mxu0 0
      %1158 = vmatprep.mubr.bf16.mxu0 0
      %1159 = vmatmul.mubr.bf16.gmra.mrb[0].mxu0 %v1121
      %v1160 = vpop.f32.mrb[0].mxu0
      %v1161 = vadd.f32 0.0, %v1160
      %v1162 = vpop.f32.mrb[0].mxu0
      %v1163 = vpop.f32.mrb[0].mxu0
      %v1164 = vpop.f32.mrb[0].mxu0
      %1165 = vdwg.mxu0
      %1167 = vrot.lane.b32.xlu0 %v937, 8
      %v1168 = vpop.permute.xlu0 %1167
      %1171 = vrot.lane.b32.xlu0 %v1049, 16
      %v1172 = vpop.permute.xlu0 %1171
      %1175 = vrot.lane.b32.xlu0 %v1161, 24
      %v1176 = vpop.permute.xlu0 %1175
      %v1178 = vsel %vm719, %v822, %v1168
      %vm1179 = vcmask 130048
      %v1180 = vsel %vm1179, %v1178, %v1172
      %vm1181 = vcmask 195584
      %v1182 = vsel %vm1181, %v1180, %v1176
      %v1183 = vpack.c.bf16 %v1182, %v1182
      %v1184 = vld [vmem:[%s11] sm:$0xf]
      %v1185 = vld [vmem:[%s11 + $0x4] sm:$0xf]
      %v1186 = vld [vmem:[%s11 + $0x8] sm:$0xf]
      %v1187 = vld [vmem:[%s11 + $0xc] sm:$0xf]
      %v1192 = vunpack.c.l.b16 %v1184
      %v1193 = vunpack.c.l.b16 %v1185
      %v1194 = vunpack.c.l.b16 %v1186
      %v1195 = vunpack.c.l.b16 %v1187
      %v1196 = vpack.c.b16 %v1193, %v1192
      %v1197 = vpack.c.b16 %v1195, %v1194
      %v1201 = vsel %vm488, %v1183, 0
      %1203 = vmatprep.subr.bf16.mxu0 0
      %1204 = vmatpush1.bf16.msra.mxu0 %v1196
      %1205 = vmatprep.subr.bf16.mxu0 0
      %1206 = vmatpush1.bf16.msra.mxu0 %v1197
      %1207 = vmatprep.subr.bf16.mxu0 0
      %1208 = vmatpush1.bf16.msra.mxu0 0
      %1209 = vmatprep.subr.bf16.mxu0 0
      %1210 = vmatpush1.bf16.msra.mxu0 0
      %1211 = vmatprep.subr.bf16.mxu0 0
      %1212 = vmatpush1.bf16.msra.mxu0 0
      %1213 = vmatprep.subr.bf16.mxu0 0
      %1214 = vmatpush1.bf16.msra.mxu0 0
      %1215 = vmatprep.subr.bf16.mxu0 0
      %1216 = vmatpush1.bf16.msra.mxu0 0
      %1217 = vmatprep.subr.bf16.mxu0 0
      %1218 = vmatpush1.bf16.msra.mxu0 0
      %1219 = vmatprep.subr.bf16.mxu0 0
      %1220 = vmatpush1.bf16.msra.mxu0 0
      %1221 = vmatprep.subr.bf16.mxu0 0
      %1222 = vmatpush1.bf16.msra.mxu0 0
      %1223 = vmatprep.subr.bf16.mxu0 0
      %1224 = vmatpush1.bf16.msra.mxu0 0
      %1225 = vmatprep.subr.bf16.mxu0 0
      %1226 = vmatpush1.bf16.msra.mxu0 0
      %1227 = vmatprep.subr.bf16.mxu0 0
      %1228 = vmatpush1.bf16.msra.mxu0 0
      %1229 = vmatprep.subr.bf16.mxu0 0
      %1230 = vmatpush1.bf16.msra.mxu0 0
      %1231 = vmatprep.subr.bf16.mxu0 0
      %1232 = vmatpush1.bf16.msra.mxu0 0
      %1233 = vmatprep.subr.bf16.mxu0 0
      %1234 = vmatpush1.bf16.msra.mxu0 0
      %1235 = vmatprep.mubr.bf16.mxu0 0
      %1236 = vmatmul.mubr.bf16.gmra.mrb[0].mxu0 %v1201
      %v1237 = vpop.f32.mrb[0].mxu0
      %v1238 = vadd.f32 0.0, %v1237
      %v1239 = vpop.f32.mrb[0].mxu0
      %v1240 = vpop.f32.mrb[0].mxu0
      %v1241 = vpop.f32.mrb[0].mxu0
      %1242 = vdwg.mxu0
      %v1243 = vadd.f32 %v485, %v1238
      %v1244 = vld [vmem:[%s12] sm:$0x1]
      %v1246 = vlaneseq
      %v1247 = vshrl.u32 %v1246, 7
      %v1248 = vsub.s32 0, %v1247
      %v1249 = vrot.slane %v1244, %v1248
      %v1251 = vadd.f32 %v1243, %v1249
      %1252 = vst.msk [vmem:[%s483] sm:$0xff] %vm488, %v1251
      %p1253 = scmp.lt.s32.totalorder %s28, 1
      %s1254 = scalar_select %p1253, %s28, 1
      %p1255 = scmp.lt.s32.totalorder %s29, 0
      %s1256 = scalar_select %p1255, %s29, 0
      %s1257 = sadd.s32 %s1256, %s1254
      %s1258 = smul.addr %s1257, 8
      %s1259 = scalar_lea.vmem %s13, %s1258
      // Predicated region
      $region73: #{decoder_forward.8} parent=71 // pred_check
        %p1260 = pneg %p341
      $region74: #{decoder_forward.8} parent=71 // pred_check_branch
        %1262 = sbr.rel (%p1260) target = $region76
      $region75: #{decoder_forward.8} parent=71 // pred_region
        _
      $region76: #{decoder_forward.8} parent=71 // pred_fallthru
        _
    $region72: #{decoder_forward.8} parent=5 // pred_fallthru
      _
    %p1263 = scmp.le.s32.totalorder 2, %s19
    // Predicated region
    $region77: #{decoder_forward.8} parent=5 // pred_check
      %p1264 = pneg %p1263
    $region78: #{decoder_forward.8} parent=5 // pred_check_branch
      %1266 = sbr.rel (%p1264) target = $region80
    $region79: #{decoder_forward.8} parent=5 // pred_region
      %s1267 = ssub.s32 %s19, 2
      // Predicated region
      $region81: #{decoder_forward.8} parent=79 // pred_check
        %p1268 = pneg %p347
      $region82: #{decoder_forward.8} parent=79 // pred_check_branch
        %1270 = sbr.rel (%p1268) target = $region84
      $region83: #{decoder_forward.8} parent=79 // pred_region
        %p1271 = scmp.lt.s32.totalorder %s30, 1
        %s1272 = scalar_select %p1271, %s30, 1
        %p1273 = scmp.lt.s32.totalorder %s31, 0
        %s1274 = scalar_select %p1273, %s31, 0
        %s1275 = sadd.s32 %s1274, %s1272
        %s1276 = smul.addr %s1275, 8
        %s1277 = scalar_lea.vmem %s13, %s1276
      $region84: #{decoder_forward.8} parent=79 // pred_fallthru
        _
    $region80: #{decoder_forward.8} parent=5 // pred_fallthru
      _
  $region6: #{decoder_forward.8} parent=0 // loop_footer
    %s23 = sadd.s32 1, %s19
  $region7: #{decoder_forward.8} parent=0 // loop_footer_branch
    %18 = sbr.rel target = $region3
  $region8: #{decoder_forward.8} parent=0 // loop_exit
    _

</llo_original>
